<compile_context>
chip_gen: v5e
topology: v5e:2x2
jax: 0.10.0
libtpu: 0.0.40
codegen_flags: <defaults>
</compile_context>

<pallas_src>
import jax
import jax.numpy as jnp
import numpy as np
from jax.experimental import pallas as pl
from jax.experimental.pallas import tpu as pltpu

GRID_SIZE = 5 + 5                                   # 10
SPLINE_ORDER = 3 + 5                                # 8
N_COEF = GRID_SIZE + SPLINE_ORDER                   # 18
N_GRID_PTS = GRID_SIZE + 2 * SPLINE_ORDER + 1       # 27
N_INTERVALS = N_GRID_PTS - 1                        # 26
N_LHS_BLOCKS = N_COEF + 1                           # 19 (bases + SiLU block)
LANE = 128


def _round_up(n, m):
    return ((n + m - 1) // m) * m


# --------------------------------------------------------------------------
# Pallas kernel
# --------------------------------------------------------------------------
def _kan_kernel(x_ref, consts_ref, w_ref, o_ref, slab_a, slab_b, xt_ref):
    """One batch tile of the KANLinear forward.

    x_ref      : (TM, INP)  f32                      input tile
    consts_ref : (2+4*SPLINE_ORDER, 26*INP) f32      rows 0/1 = grid[j], grid[j+1]
                                                     rows 2+4(k-1).. = A,B,C,D / level
    w_ref      : ((N_COEF+1)*INP, OUTP) bf16         [scaled spline wt ; base_weight.T]
    o_ref      : (TM, OUTP) f32
    slab_a     : (TM, 26*INP) f32 scratch (ping)
    slab_b     : (TM, 25*INP) f32 scratch (pong)
    xt_ref     : (TM, 25*INP) f32 scratch (x replicated per interval block)
    """
    tm, inp = x_ref.shape
    x = x_ref[...]                                            # (TM, INP) f32

    # ---- level-0 bases: indicator of the knot interval (per 128-lane block) --
    for j in range(N_INTERVALS):
        lo = consts_ref[0:1, j * inp:(j + 1) * inp]           # grid[j]   (1, INP)
        hi = consts_ref[1:2, j * inp:(j + 1) * inp]           # grid[j+1] (1, INP)
        slab_a[:, j * inp:(j + 1) * inp] = jnp.logical_and(
            x >= lo, x < hi).astype(jnp.float32)
        if j < N_INTERVALS - 1:
            xt_ref[:, j * inp:(j + 1) * inp] = x              # fill replicated x

    # ---- Cox-de Boor recurrence: scratch ping-pong, narrowed per level ------
    # left  term = x*A + B = (x - g[j])     / (g[j+k]   - g[j])
    # right term = x*C + D = (g[j+k+1] - x) / (g[j+k+1] - g[j+1])
    for k in range(1, SPLINE_ORDER + 1):
        w_new = (N_INTERVALS - k) * inp                       # live blocks this level
        src, dst = (slab_a, slab_b) if (k % 2 == 1) else (slab_b, slab_a)
        r = 2 + 4 * (k - 1)
        a = consts_ref[r + 0:r + 1, :w_new]                   # (1, w_new)
        b = consts_ref[r + 1:r + 2, :w_new]
        c = consts_ref[r + 2:r + 3, :w_new]
        d = consts_ref[r + 3:r + 4, :w_new]
        xk = xt_ref[:, :w_new]
        cur = src[:, :w_new]                                  # basis j   (view)
        nbr = src[:, inp:inp + w_new]                         # basis j+1 (offset view)
        dst[:, :w_new] = (xk * a + b) * cur + (xk * c + d) * nbr

    final = slab_a if SPLINE_ORDER % 2 == 0 else slab_b       # bases in blocks [0, N_COEF)

    # ---- fused base + spline matmul -----------------------------------------
    # Block N_COEF of `final` is stale after the last level: reuse it for the
    # SiLU activations so both paths share a single MXU contraction.
    silu = x * jax.nn.sigmoid(x)
    final[:, N_COEF * inp:(N_COEF + 1) * inp] = silu

    lhs = final[:, :N_LHS_BLOCKS * inp].astype(jnp.bfloat16)  # (TM, 19*INP)
    acc = jnp.dot(lhs, w_ref[...], preferred_element_type=jnp.float32)
    o_ref[...] = acc.astype(o_ref.dtype)


# --------------------------------------------------------------------------
# Parameter pre-arrangement (plain JAX, done once)
# --------------------------------------------------------------------------
def _make_spline_constants(grid_p):
    """grid_p: (INP, N_GRID_PTS) -> consts (2 + 4*SPLINE_ORDER, 26*INP) f32."""
    inp = grid_p.shape[0]
    gT = grid_p.T                                             # (N_GRID_PTS, INP)
    rows = [gT[:N_INTERVALS, :].reshape(-1),                  # g0: lane j*INP+i
            gT[1:N_INTERVALS + 1, :].reshape(-1)]             # g1
    zero = jnp.zeros((inp,), jnp.float32)
    for k in range(1, SPLINE_ORDER + 1):
        a_b, b_b, c_b, d_b = [], [], [], []
        for j in range(N_INTERVALS):
            if j <= N_INTERVALS - 1 - k:                      # block read at this level
                gj, gj1 = gT[j], gT[j + 1]
                gjk, gjk1 = gT[j + k], gT[j + k + 1]
                rl = 1.0 / (gjk - gj)
                rr = 1.0 / (gjk1 - gj1)
                a_b.append(rl); b_b.append(-gj * rl)
                c_b.append(-rr); d_b.append(gjk1 * rr)
            else:                                             # never read (narrowing)
                a_b.append(zero); b_b.append(zero)
                c_b.append(zero); d_b.append(zero)
        rows += [jnp.concatenate(a_b), jnp.concatenate(b_b),
                 jnp.concatenate(c_b), jnp.concatenate(d_b)]
    return jnp.stack(rows).astype(jnp.float32)                # (34, 26*INP)


def prepare_kan_params(grid, base_weight, spline_weight, spline_scaler):
    """Pack / pad module parameters for the kernel (lane-dense layouts)."""
    in_features = grid.shape[0]
    out_features = base_weight.shape[0]
    inp = _round_up(in_features, LANE)
    outp = _round_up(out_features, LANE)

    # Edge-replicate grid rows for padded features (keeps knots strictly
    # increasing -> finite constants; padded weights are zero anyway).
    grid_p = jnp.pad(grid.astype(jnp.float32),
                     ((0, inp - in_features), (0, 0)), mode="edge")
    consts = _make_spline_constants(grid_p)

    # Fused weight: rows [0, 18*inp) = flattened scaled spline weight laid out
    # to match the bases slab (lane = coef_block*inp + feature); rows
    # [18*inp, 19*inp) = base_weight.T (the SiLU block).
    scaled = spline_weight * spline_scaler[..., None]         # (out, in, coef)
    w_coef = jnp.transpose(scaled, (2, 1, 0))                 # (coef, in, out)
    w = jnp.zeros((N_LHS_BLOCKS, inp, outp), jnp.float32)
    w = w.at[:N_COEF, :in_features, :out_features].set(w_coef)
    w = w.at[N_COEF, :in_features, :out_features].set(base_weight.T)
    w2d = w.reshape(N_LHS_BLOCKS * inp, outp).astype(jnp.bfloat16)

    return dict(consts=consts, w=w2d,
                in_features=in_features, out_features=out_features,
                inp=inp, outp=outp)


# --------------------------------------------------------------------------
# Wrapper
# --------------------------------------------------------------------------
def _vmem_bytes_estimate(tile_m, inp, outp):
    w26 = N_INTERVALS * inp
    scratch = 4 * tile_m * (w26 + 2 * (N_INTERVALS - 1) * inp)   # slab_a + slab_b + xt
    io = 2 * 4 * tile_m * inp + 2 * 4 * tile_m * outp            # double-buffered x / out
    consts = 2 * 4 * (2 + 4 * SPLINE_ORDER) * w26
    weights = 2 * 2 * N_LHS_BLOCKS * inp * outp                  # bf16, double-buffered
    return scratch + io + consts + weights


def kan_linear_forward(x, params, *, tile_m=None):
    """x: (..., in_features) -> (..., out_features)."""
    in_features = params["in_features"]
    out_features = params["out_features"]
    inp, outp = params["inp"], params["outp"]

    orig_shape = x.shape
    x2 = x.reshape(-1, in_features).astype(jnp.float32)
    batch = x2.shape[0]

    if tile_m is None:
        # VALU-bound recurrence -> cap rows at 128 (also matches v5e MXU and
        # keeps the 3 slab scratches small on v7x's 64 MiB VMEM); pick a tile
        # that gives >= 2 grid steps when the batch allows (v7x: 2 TCs).
        bp8 = _round_up(max(batch, 1), 8)
        tile_m = min(128, max(8, _round_up(bp8 // 2, 8)))
    tile_m = max(8, _round_up(tile_m, 8))
    padded_batch = _round_up(batch, tile_m)

    xp = jnp.zeros((padded_batch, inp), jnp.float32)
    xp = xp.at[:batch, :in_features].set(x2)

    w26 = N_INTERVALS * inp
    vmem_limit = int(min(100 * 2**20,
                         max(32 * 2**20,
                             1.4 * _vmem_bytes_estimate(tile_m, inp, outp))))

    out = pl.pallas_call(
        _kan_kernel,
        out_shape=jax.ShapeDtypeStruct((padded_batch, outp), jnp.float32),
        grid_spec=pltpu.PrefetchScalarGridSpec(
            num_scalar_prefetch=0,
            grid=(padded_batch // tile_m,),
            in_specs=[
                pl.BlockSpec((tile_m, inp), lambda i: (i, 0)),
                pl.BlockSpec((2 + 4 * SPLINE_ORDER, w26), lambda i: (0, 0)),
                pl.BlockSpec((N_LHS_BLOCKS * inp, outp), lambda i: (0, 0)),
            ],
            out_specs=pl.BlockSpec((tile_m, outp), lambda i: (i, 0)),
            scratch_shapes=[
                pltpu.VMEM((tile_m, N_INTERVALS * inp), jnp.float32),        # slab A
                pltpu.VMEM((tile_m, (N_INTERVALS - 1) * inp), jnp.float32),  # slab B
                pltpu.VMEM((tile_m, (N_INTERVALS - 1) * inp), jnp.float32),  # x tiled
            ],
        ),
        compiler_params=pltpu.CompilerParams(
            dimension_semantics=("parallel",),
            vmem_limit_bytes=vmem_limit),
    )(xp, params["consts"], params["w"])

    out = out[:batch, :out_features]
    return out.reshape(*orig_shape[:-1], out_features)


# --------------------------------------------------------------------------
# Deterministic parameter initialization (shapes as in KANLinear.__init__)
# --------------------------------------------------------------------------
def init_kan_params(key, in_features, out_features,
                    scale_noise=0.1, scale_base=1.0, scale_spline=1.0,
                    grid_range=(-1.0, 1.0)):
    h = (grid_range[1] - grid_range[0]) / GRID_SIZE
    grid_1d = (jnp.arange(-SPLINE_ORDER, GRID_SIZE + SPLINE_ORDER + 1,
                          dtype=jnp.float32) * h + grid_range[0])
    grid = jnp.tile(grid_1d[None, :], (in_features, 1))        # (in, 27)

    k1, k2, k3 = jax.random.split(key, 3)
    a = np.sqrt(5.0) * scale_base
    bound = np.sqrt(6.0 / ((1.0 + a * a) * in_features))
    base_weight = jax.random.uniform(k1, (out_features, in_features),
                                     jnp.float32, -bound, bound)
    # TODO(synk): PyTorch init fits spline_weight to random noise via lstsq
    # (curve2coeff); here we use small uniform noise of comparable scale
    # instead (init only — forward semantics unchanged).
    spline_weight = ((jax.random.uniform(k2, (out_features, in_features, N_COEF),
                                         jnp.float32) - 0.5)
                     * (scale_noise / GRID_SIZE))
    a_s = np.sqrt(5.0) * scale_spline
    bound_s = np.sqrt(6.0 / ((1.0 + a_s * a_s) * in_features))
    spline_scaler = jax.random.uniform(k3, (out_features, in_features),
                                       jnp.float32, -bound_s, bound_s)
    return grid, base_weight, spline_weight, spline_scaler


# --------------------------------------------------------------------------
# Pure-JAX reference (mirrors the PyTorch forward exactly, all-f32)
# --------------------------------------------------------------------------
def kan_reference(x, grid, base_weight, spline_weight, spline_scaler):
    in_features = grid.shape[0]
    out_features = base_weight.shape[0]
    orig = x.shape
    x2 = x.reshape(-1, in_features).astype(jnp.float32)

    xe = x2[:, :, None]
    g = grid[None, :, :]
    bases = ((xe >= g[:, :, :-1]) & (xe < g[:, :, 1:])).astype(jnp.float32)
    for k in range(1, SPLINE_ORDER + 1):
        bases = ((xe - g[:, :, :-(k + 1)])
                 / (g[:, :, k:-1] - g[:, :, :-(k + 1)]) * bases[:, :, :-1]
                 + (g[:, :, k + 1:] - xe)
                 / (g[:, :, k + 1:] - g[:, :, 1:-k]) * bases[:, :, 1:])

    base_out = (x2 * jax.nn.sigmoid(x2)) @ base_weight.T
    scaled = spline_weight * spline_scaler[..., None]
    spline_out = bases.reshape(x2.shape[0], -1) @ scaled.reshape(out_features, -1).T
    return (base_out + spline_out).reshape(*orig[:-1], out_features)


# --------------------------------------------------------------------------
if __name__ == "__main__":
    in_features, out_features = 32, 32
    key = jax.random.PRNGKey(0)
    kp, kx = jax.random.split(key)

    grid, base_weight, spline_weight, spline_scaler = init_kan_params(
        kp, in_features, out_features)

    params = prepare_kan_params(grid, base_weight, spline_weight, spline_scaler)

    # Example input: (batch=2, seq=8, hidden=in_features=32)
    x = jax.random.normal(kx, (2, 8, in_features), dtype=jnp.float32) * 0.5

    out = kan_linear_forward(x, params)
    out = jax.block_until_ready(out)

    ref = jax.block_until_ready(
        kan_reference(x, grid, base_weight, spline_weight, spline_scaler))

    # bf16 at the MXU boundary -> slightly looser tolerance than pure f32.
    np.testing.assert_allclose(np.asarray(out), np.asarray(ref),
                               rtol=2e-2, atol=2e-2)
    assert out.shape == (2, 8, out_features)
    print("KERNEL_OK")
</pallas_src>

<mosaic_0001>
module attributes {stable_mosaic.version = 11 : i64} {
  func.func @_kan_kernel(%arg0: i32, %arg1: memref<8x128xf32, #tpu.memory_space<vmem>>, %arg2: memref<34x3328xf32, #tpu.memory_space<vmem>>, %arg3: memref<2432x128xbf16, #tpu.memory_space<vmem>>, %arg4: memref<8x128xf32, #tpu.memory_space<vmem>>, %arg5: memref<8x3328xf32, #tpu.memory_space<vmem>>, %arg6: memref<8x3200xf32, #tpu.memory_space<vmem>>, %arg7: memref<8x3200xf32, #tpu.memory_space<vmem>>) attributes {dimension_semantics = [#tpu.dimension_semantics<parallel>], iteration_bounds = array<i64: 2>, scalar_prefetch = 0 : i64, scratch_operands = 3 : i64, tpu.core_type = #tpu.core_type<tc>, window_params = [{transform_indices = @transform_0, window_bounds = array<i64: 8, 128>}, {pipeline_mode = #tpu.pipeline_mode<synchronous>, transform_indices = @transform_1, window_bounds = array<i64: 34, 3328>}, {pipeline_mode = #tpu.pipeline_mode<synchronous>, transform_indices = @transform_2, window_bounds = array<i64: 2432, 128>}, {transform_indices = @transform_3, window_bounds = array<i64: 8, 128>}]} {
    %c0 = arith.constant 0 : index
    %c0_0 = arith.constant 0 : index
    %0 = vector.load %arg1[%c0, %c0_0] : memref<8x128xf32, #tpu.memory_space<vmem>>, vector<8x128xf32>
    %c0_1 = arith.constant 0 : index
    %c0_2 = arith.constant 0 : index
    %1 = vector.load %arg2[%c0_1, %c0_2] : memref<34x3328xf32, #tpu.memory_space<vmem>>, vector<1x128xf32>
    %c1 = arith.constant 1 : index
    %c0_3 = arith.constant 0 : index
    %2 = vector.load %arg2[%c1, %c0_3] : memref<34x3328xf32, #tpu.memory_space<vmem>>, vector<1x128xf32>
    %3 = vector.broadcast %1 : vector<1x128xf32> to vector<8x128xf32>
    %4 = arith.cmpf oge, %0, %3 : vector<8x128xf32>
    %5 = vector.broadcast %2 : vector<1x128xf32> to vector<8x128xf32>
    %6 = arith.cmpf olt, %0, %5 : vector<8x128xf32>
    %7 = arith.andi %4, %6 : vector<8x128xi1>
    %8 = arith.extui %7 : vector<8x128xi1> to vector<8x128xi32>
    %9 = arith.sitofp %8 : vector<8x128xi32> to vector<8x128xf32>
    %c0_4 = arith.constant 0 : index
    %c0_5 = arith.constant 0 : index
    %10 = vector.load %arg5[%c0_4, %c0_5] : memref<8x3328xf32, #tpu.memory_space<vmem>>, vector<8x128xf32>
    tpu.vector_store %arg5[%c0_4, %c0_5], %9 {strides = array<i32>} : memref<8x3328xf32, #tpu.memory_space<vmem>>, vector<8x128xf32>,
    %c0_6 = arith.constant 0 : index
    %c0_7 = arith.constant 0 : index
    %11 = vector.load %arg7[%c0_6, %c0_7] : memref<8x3200xf32, #tpu.memory_space<vmem>>, vector<8x128xf32>
    tpu.vector_store %arg7[%c0_6, %c0_7], %0 {strides = array<i32>} : memref<8x3200xf32, #tpu.memory_space<vmem>>, vector<8x128xf32>,
    %c0_8 = arith.constant 0 : index
    %c128 = arith.constant 128 : index
    %12 = vector.load %arg2[%c0_8, %c128] : memref<34x3328xf32, #tpu.memory_space<vmem>>, vector<1x128xf32>
    %c1_9 = arith.constant 1 : index
    %c128_10 = arith.constant 128 : index
    %13 = vector.load %arg2[%c1_9, %c128_10] : memref<34x3328xf32, #tpu.memory_space<vmem>>, vector<1x128xf32>
    %14 = vector.broadcast %12 : vector<1x128xf32> to vector<8x128xf32>
    %15 = arith.cmpf oge, %0, %14 : vector<8x128xf32>
    %16 = vector.broadcast %13 : vector<1x128xf32> to vector<8x128xf32>
    %17 = arith.cmpf olt, %0, %16 : vector<8x128xf32>
    %18 = arith.andi %15, %17 : vector<8x128xi1>
    %19 = arith.extui %18 : vector<8x128xi1> to vector<8x128xi32>
    %20 = arith.sitofp %19 : vector<8x128xi32> to vector<8x128xf32>
    %c0_11 = arith.constant 0 : index
    %c128_12 = arith.constant 128 : index
    %21 = vector.load %arg5[%c0_11, %c128_12] : memref<8x3328xf32, #tpu.memory_space<vmem>>, vector<8x128xf32>
    tpu.vector_store %arg5[%c0_11, %c128_12], %20 {strides = array<i32>} : memref<8x3328xf32, #tpu.memory_space<vmem>>, vector<8x128xf32>,
    %c0_13 = arith.constant 0 : index
    %c128_14 = arith.constant 128 : index
    %22 = vector.load %arg7[%c0_13, %c128_14] : memref<8x3200xf32, #tpu.memory_space<vmem>>, vector<8x128xf32>
    tpu.vector_store %arg7[%c0_13, %c128_14], %0 {strides = array<i32>} : memref<8x3200xf32, #tpu.memory_space<vmem>>, vector<8x128xf32>,
    %c0_15 = arith.constant 0 : index
    %c256 = arith.constant 256 : index
    %23 = vector.load %arg2[%c0_15, %c256] : memref<34x3328xf32, #tpu.memory_space<vmem>>, vector<1x128xf32>
    %c1_16 = arith.constant 1 : index
    %c256_17 = arith.constant 256 : index
    %24 = vector.load %arg2[%c1_16, %c256_17] : memref<34x3328xf32, #tpu.memory_space<vmem>>, vector<1x128xf32>
    %25 = vector.broadcast %23 : vector<1x128xf32> to vector<8x128xf32>
    %26 = arith.cmpf oge, %0, %25 : vector<8x128xf32>
    %27 = vector.broadcast %24 : vector<1x128xf32> to vector<8x128xf32>
    %28 = arith.cmpf olt, %0, %27 : vector<8x128xf32>
    %29 = arith.andi %26, %28 : vector<8x128xi1>
    %30 = arith.extui %29 : vector<8x128xi1> to vector<8x128xi32>
    %31 = arith.sitofp %30 : vector<8x128xi32> to vector<8x128xf32>
    %c0_18 = arith.constant 0 : index
    %c256_19 = arith.constant 256 : index
    %32 = vector.load %arg5[%c0_18, %c256_19] : memref<8x3328xf32, #tpu.memory_space<vmem>>, vector<8x128xf32>
    tpu.vector_store %arg5[%c0_18, %c256_19], %31 {strides = array<i32>} : memref<8x3328xf32, #tpu.memory_space<vmem>>, vector<8x128xf32>,
    %c0_20 = arith.constant 0 : index
    %c256_21 = arith.constant 256 : index
    %33 = vector.load %arg7[%c0_20, %c256_21] : memref<8x3200xf32, #tpu.memory_space<vmem>>, vector<8x128xf32>
    tpu.vector_store %arg7[%c0_20, %c256_21], %0 {strides = array<i32>} : memref<8x3200xf32, #tpu.memory_space<vmem>>, vector<8x128xf32>,
    %c0_22 = arith.constant 0 : index
    %c384 = arith.constant 384 : index
    %34 = vector.load %arg2[%c0_22, %c384] : memref<34x3328xf32, #tpu.memory_space<vmem>>, vector<1x128xf32>
    %c1_23 = arith.constant 1 : index
    %c384_24 = arith.constant 384 : index
    %35 = vector.load %arg2[%c1_23, %c384_24] : memref<34x3328xf32, #tpu.memory_space<vmem>>, vector<1x128xf32>
    %36 = vector.broadcast %34 : vector<1x128xf32> to vector<8x128xf32>
    %37 = arith.cmpf oge, %0, %36 : vector<8x128xf32>
    %38 = vector.broadcast %35 : vector<1x128xf32> to vector<8x128xf32>
    %39 = arith.cmpf olt, %0, %38 : vector<8x128xf32>
    %40 = arith.andi %37, %39 : vector<8x128xi1>
    %41 = arith.extui %40 : vector<8x128xi1> to vector<8x128xi32>
    %42 = arith.sitofp %41 : vector<8x128xi32> to vector<8x128xf32>
    %c0_25 = arith.constant 0 : index
    %c384_26 = arith.constant 384 : index
    %43 = vector.load %arg5[%c0_25, %c384_26] : memref<8x3328xf32, #tpu.memory_space<vmem>>, vector<8x128xf32>
    tpu.vector_store %arg5[%c0_25, %c384_26], %42 {strides = array<i32>} : memref<8x3328xf32, #tpu.memory_space<vmem>>, vector<8x128xf32>,
    %c0_27 = arith.constant 0 : index
    %c384_28 = arith.constant 384 : index
    %44 = vector.load %arg7[%c0_27, %c384_28] : memref<8x3200xf32, #tpu.memory_space<vmem>>, vector<8x128xf32>
    tpu.vector_store %arg7[%c0_27, %c384_28], %0 {strides = array<i32>} : memref<8x3200xf32, #tpu.memory_space<vmem>>, vector<8x128xf32>,
    %c0_29 = arith.constant 0 : index
    %c512 = arith.constant 512 : index
    %45 = vector.load %arg2[%c0_29, %c512] : memref<34x3328xf32, #tpu.memory_space<vmem>>, vector<1x128xf32>
    %c1_30 = arith.constant 1 : index
    %c512_31 = arith.constant 512 : index
    %46 = vector.load %arg2[%c1_30, %c512_31] : memref<34x3328xf32, #tpu.memory_space<vmem>>, vector<1x128xf32>
    %47 = vector.broadcast %45 : vector<1x128xf32> to vector<8x128xf32>
    %48 = arith.cmpf oge, %0, %47 : vector<8x128xf32>
    %49 = vector.broadcast %46 : vector<1x128xf32> to vector<8x128xf32>
    %50 = arith.cmpf olt, %0, %49 : vector<8x128xf32>
    %51 = arith.andi %48, %50 : vector<8x128xi1>
    %52 = arith.extui %51 : vector<8x128xi1> to vector<8x128xi32>
    %53 = arith.sitofp %52 : vector<8x128xi32> to vector<8x128xf32>
    %c0_32 = arith.constant 0 : index
    %c512_33 = arith.constant 512 : index
    %54 = vector.load %arg5[%c0_32, %c512_33] : memref<8x3328xf32, #tpu.memory_space<vmem>>, vector<8x128xf32>
    tpu.vector_store %arg5[%c0_32, %c512_33], %53 {strides = array<i32>} : memref<8x3328xf32, #tpu.memory_space<vmem>>, vector<8x128xf32>,
    %c0_34 = arith.constant 0 : index
    %c512_35 = arith.constant 512 : index
    %55 = vector.load %arg7[%c0_34, %c512_35] : memref<8x3200xf32, #tpu.memory_space<vmem>>, vector<8x128xf32>
    tpu.vector_store %arg7[%c0_34, %c512_35], %0 {strides = array<i32>} : memref<8x3200xf32, #tpu.memory_space<vmem>>, vector<8x128xf32>,
    %c0_36 = arith.constant 0 : index
    %c640 = arith.constant 640 : index
    %56 = vector.load %arg2[%c0_36, %c640] : memref<34x3328xf32, #tpu.memory_space<vmem>>, vector<1x128xf32>
    %c1_37 = arith.constant 1 : index
    %c640_38 = arith.constant 640 : index
    %57 = vector.load %arg2[%c1_37, %c640_38] : memref<34x3328xf32, #tpu.memory_space<vmem>>, vector<1x128xf32>
    %58 = vector.broadcast %56 : vector<1x128xf32> to vector<8x128xf32>
    %59 = arith.cmpf oge, %0, %58 : vector<8x128xf32>
    %60 = vector.broadcast %57 : vector<1x128xf32> to vector<8x128xf32>
    %61 = arith.cmpf olt, %0, %60 : vector<8x128xf32>
    %62 = arith.andi %59, %61 : vector<8x128xi1>
    %63 = arith.extui %62 : vector<8x128xi1> to vector<8x128xi32>
    %64 = arith.sitofp %63 : vector<8x128xi32> to vector<8x128xf32>
    %c0_39 = arith.constant 0 : index
    %c640_40 = arith.constant 640 : index
    %65 = vector.load %arg5[%c0_39, %c640_40] : memref<8x3328xf32, #tpu.memory_space<vmem>>, vector<8x128xf32>
    tpu.vector_store %arg5[%c0_39, %c640_40], %64 {strides = array<i32>} : memref<8x3328xf32, #tpu.memory_space<vmem>>, vector<8x128xf32>,
    %c0_41 = arith.constant 0 : index
    %c640_42 = arith.constant 640 : index
    %66 = vector.load %arg7[%c0_41, %c640_42] : memref<8x3200xf32, #tpu.memory_space<vmem>>, vector<8x128xf32>
    tpu.vector_store %arg7[%c0_41, %c640_42], %0 {strides = array<i32>} : memref<8x3200xf32, #tpu.memory_space<vmem>>, vector<8x128xf32>,
    %c0_43 = arith.constant 0 : index
    %c768 = arith.constant 768 : index
    %67 = vector.load %arg2[%c0_43, %c768] : memref<34x3328xf32, #tpu.memory_space<vmem>>, vector<1x128xf32>
    %c1_44 = arith.constant 1 : index
    %c768_45 = arith.constant 768 : index
    %68 = vector.load %arg2[%c1_44, %c768_45] : memref<34x3328xf32, #tpu.memory_space<vmem>>, vector<1x128xf32>
    %69 = vector.broadcast %67 : vector<1x128xf32> to vector<8x128xf32>
    %70 = arith.cmpf oge, %0, %69 : vector<8x128xf32>
    %71 = vector.broadcast %68 : vector<1x128xf32> to vector<8x128xf32>
    %72 = arith.cmpf olt, %0, %71 : vector<8x128xf32>
    %73 = arith.andi %70, %72 : vector<8x128xi1>
    %74 = arith.extui %73 : vector<8x128xi1> to vector<8x128xi32>
    %75 = arith.sitofp %74 : vector<8x128xi32> to vector<8x128xf32>
    %c0_46 = arith.constant 0 : index
    %c768_47 = arith.constant 768 : index
    %76 = vector.load %arg5[%c0_46, %c768_47] : memref<8x3328xf32, #tpu.memory_space<vmem>>, vector<8x128xf32>
    tpu.vector_store %arg5[%c0_46, %c768_47], %75 {strides = array<i32>} : memref<8x3328xf32, #tpu.memory_space<vmem>>, vector<8x128xf32>,
    %c0_48 = arith.constant 0 : index
    %c768_49 = arith.constant 768 : index
    %77 = vector.load %arg7[%c0_48, %c768_49] : memref<8x3200xf32, #tpu.memory_space<vmem>>, vector<8x128xf32>
    tpu.vector_store %arg7[%c0_48, %c768_49], %0 {strides = array<i32>} : memref<8x3200xf32, #tpu.memory_space<vmem>>, vector<8x128xf32>,
    %c0_50 = arith.constant 0 : index
    %c896 = arith.constant 896 : index
    %78 = vector.load %arg2[%c0_50, %c896] : memref<34x3328xf32, #tpu.memory_space<vmem>>, vector<1x128xf32>
    %c1_51 = arith.constant 1 : index
    %c896_52 = arith.constant 896 : index
    %79 = vector.load %arg2[%c1_51, %c896_52] : memref<34x3328xf32, #tpu.memory_space<vmem>>, vector<1x128xf32>
    %80 = vector.broadcast %78 : vector<1x128xf32> to vector<8x128xf32>
    %81 = arith.cmpf oge, %0, %80 : vector<8x128xf32>
    %82 = vector.broadcast %79 : vector<1x128xf32> to vector<8x128xf32>
    %83 = arith.cmpf olt, %0, %82 : vector<8x128xf32>
    %84 = arith.andi %81, %83 : vector<8x128xi1>
    %85 = arith.extui %84 : vector<8x128xi1> to vector<8x128xi32>
    %86 = arith.sitofp %85 : vector<8x128xi32> to vector<8x128xf32>
    %c0_53 = arith.constant 0 : index
    %c896_54 = arith.constant 896 : index
    %87 = vector.load %arg5[%c0_53, %c896_54] : memref<8x3328xf32, #tpu.memory_space<vmem>>, vector<8x128xf32>
    tpu.vector_store %arg5[%c0_53, %c896_54], %86 {strides = array<i32>} : memref<8x3328xf32, #tpu.memory_space<vmem>>, vector<8x128xf32>,
    %c0_55 = arith.constant 0 : index
    %c896_56 = arith.constant 896 : index
    %88 = vector.load %arg7[%c0_55, %c896_56] : memref<8x3200xf32, #tpu.memory_space<vmem>>, vector<8x128xf32>
    tpu.vector_store %arg7[%c0_55, %c896_56], %0 {strides = array<i32>} : memref<8x3200xf32, #tpu.memory_space<vmem>>, vector<8x128xf32>,
    %c0_57 = arith.constant 0 : index
    %c1024 = arith.constant 1024 : index
    %89 = vector.load %arg2[%c0_57, %c1024] : memref<34x3328xf32, #tpu.memory_space<vmem>>, vector<1x128xf32>
    %c1_58 = arith.constant 1 : index
    %c1024_59 = arith.constant 1024 : index
    %90 = vector.load %arg2[%c1_58, %c1024_59] : memref<34x3328xf32, #tpu.memory_space<vmem>>, vector<1x128xf32>
    %91 = vector.broadcast %89 : vector<1x128xf32> to vector<8x128xf32>
    %92 = arith.cmpf oge, %0, %91 : vector<8x128xf32>
    %93 = vector.broadcast %90 : vector<1x128xf32> to vector<8x128xf32>
    %94 = arith.cmpf olt, %0, %93 : vector<8x128xf32>
    %95 = arith.andi %92, %94 : vector<8x128xi1>
    %96 = arith.extui %95 : vector<8x128xi1> to vector<8x128xi32>
    %97 = arith.sitofp %96 : vector<8x128xi32> to vector<8x128xf32>
    %c0_60 = arith.constant 0 : index
    %c1024_61 = arith.constant 1024 : index
    %98 = vector.load %arg5[%c0_60, %c1024_61] : memref<8x3328xf32, #tpu.memory_space<vmem>>, vector<8x128xf32>
    tpu.vector_store %arg5[%c0_60, %c1024_61], %97 {strides = array<i32>} : memref<8x3328xf32, #tpu.memory_space<vmem>>, vector<8x128xf32>,
    %c0_62 = arith.constant 0 : index
    %c1024_63 = arith.constant 1024 : index
    %99 = vector.load %arg7[%c0_62, %c1024_63] : memref<8x3200xf32, #tpu.memory_space<vmem>>, vector<8x128xf32>
    tpu.vector_store %arg7[%c0_62, %c1024_63], %0 {strides = array<i32>} : memref<8x3200xf32, #tpu.memory_space<vmem>>, vector<8x128xf32>,
    %c0_64 = arith.constant 0 : index
    %c1152 = arith.constant 1152 : index
    %100 = vector.load %arg2[%c0_64, %c1152] : memref<34x3328xf32, #tpu.memory_space<vmem>>, vector<1x128xf32>
    %c1_65 = arith.constant 1 : index
    %c1152_66 = arith.constant 1152 : index
    %101 = vector.load %arg2[%c1_65, %c1152_66] : memref<34x3328xf32, #tpu.memory_space<vmem>>, vector<1x128xf32>
    %102 = vector.broadcast %100 : vector<1x128xf32> to vector<8x128xf32>
    %103 = arith.cmpf oge, %0, %102 : vector<8x128xf32>
    %104 = vector.broadcast %101 : vector<1x128xf32> to vector<8x128xf32>
    %105 = arith.cmpf olt, %0, %104 : vector<8x128xf32>
    %106 = arith.andi %103, %105 : vector<8x128xi1>
    %107 = arith.extui %106 : vector<8x128xi1> to vector<8x128xi32>
    %108 = arith.sitofp %107 : vector<8x128xi32> to vector<8x128xf32>
    %c0_67 = arith.constant 0 : index
    %c1152_68 = arith.constant 1152 : index
    %109 = vector.load %arg5[%c0_67, %c1152_68] : memref<8x3328xf32, #tpu.memory_space<vmem>>, vector<8x128xf32>
    tpu.vector_store %arg5[%c0_67, %c1152_68], %108 {strides = array<i32>} : memref<8x3328xf32, #tpu.memory_space<vmem>>, vector<8x128xf32>,
    %c0_69 = arith.constant 0 : index
    %c1152_70 = arith.constant 1152 : index
    %110 = vector.load %arg7[%c0_69, %c1152_70] : memref<8x3200xf32, #tpu.memory_space<vmem>>, vector<8x128xf32>
    tpu.vector_store %arg7[%c0_69, %c1152_70], %0 {strides = array<i32>} : memref<8x3200xf32, #tpu.memory_space<vmem>>, vector<8x128xf32>,
    %c0_71 = arith.constant 0 : index
    %c1280 = arith.constant 1280 : index
    %111 = vector.load %arg2[%c0_71, %c1280] : memref<34x3328xf32, #tpu.memory_space<vmem>>, vector<1x128xf32>
    %c1_72 = arith.constant 1 : index
    %c1280_73 = arith.constant 1280 : index
    %112 = vector.load %arg2[%c1_72, %c1280_73] : memref<34x3328xf32, #tpu.memory_space<vmem>>, vector<1x128xf32>
    %113 = vector.broadcast %111 : vector<1x128xf32> to vector<8x128xf32>
    %114 = arith.cmpf oge, %0, %113 : vector<8x128xf32>
    %115 = vector.broadcast %112 : vector<1x128xf32> to vector<8x128xf32>
    %116 = arith.cmpf olt, %0, %115 : vector<8x128xf32>
    %117 = arith.andi %114, %116 : vector<8x128xi1>
    %118 = arith.extui %117 : vector<8x128xi1> to vector<8x128xi32>
    %119 = arith.sitofp %118 : vector<8x128xi32> to vector<8x128xf32>
    %c0_74 = arith.constant 0 : index
    %c1280_75 = arith.constant 1280 : index
    %120 = vector.load %arg5[%c0_74, %c1280_75] : memref<8x3328xf32, #tpu.memory_space<vmem>>, vector<8x128xf32>
    tpu.vector_store %arg5[%c0_74, %c1280_75], %119 {strides = array<i32>} : memref<8x3328xf32, #tpu.memory_space<vmem>>, vector<8x128xf32>,
    %c0_76 = arith.constant 0 : index
    %c1280_77 = arith.constant 1280 : index
    %121 = vector.load %arg7[%c0_76, %c1280_77] : memref<8x3200xf32, #tpu.memory_space<vmem>>, vector<8x128xf32>
    tpu.vector_store %arg7[%c0_76, %c1280_77], %0 {strides = array<i32>} : memref<8x3200xf32, #tpu.memory_space<vmem>>, vector<8x128xf32>,
    %c0_78 = arith.constant 0 : index
    %c1408 = arith.constant 1408 : index
    %122 = vector.load %arg2[%c0_78, %c1408] : memref<34x3328xf32, #tpu.memory_space<vmem>>, vector<1x128xf32>
    %c1_79 = arith.constant 1 : index
    %c1408_80 = arith.constant 1408 : index
    %123 = vector.load %arg2[%c1_79, %c1408_80] : memref<34x3328xf32, #tpu.memory_space<vmem>>, vector<1x128xf32>
    %124 = vector.broadcast %122 : vector<1x128xf32> to vector<8x128xf32>
    %125 = arith.cmpf oge, %0, %124 : vector<8x128xf32>
    %126 = vector.broadcast %123 : vector<1x128xf32> to vector<8x128xf32>
    %127 = arith.cmpf olt, %0, %126 : vector<8x128xf32>
    %128 = arith.andi %125, %127 : vector<8x128xi1>
    %129 = arith.extui %128 : vector<8x128xi1> to vector<8x128xi32>
    %130 = arith.sitofp %129 : vector<8x128xi32> to vector<8x128xf32>
    %c0_81 = arith.constant 0 : index
    %c1408_82 = arith.constant 1408 : index
    %131 = vector.load %arg5[%c0_81, %c1408_82] : memref<8x3328xf32, #tpu.memory_space<vmem>>, vector<8x128xf32>
    tpu.vector_store %arg5[%c0_81, %c1408_82], %130 {strides = array<i32>} : memref<8x3328xf32, #tpu.memory_space<vmem>>, vector<8x128xf32>,
    %c0_83 = arith.constant 0 : index
    %c1408_84 = arith.constant 1408 : index
    %132 = vector.load %arg7[%c0_83, %c1408_84] : memref<8x3200xf32, #tpu.memory_space<vmem>>, vector<8x128xf32>
    tpu.vector_store %arg7[%c0_83, %c1408_84], %0 {strides = array<i32>} : memref<8x3200xf32, #tpu.memory_space<vmem>>, vector<8x128xf32>,
    %c0_85 = arith.constant 0 : index
    %c1536 = arith.constant 1536 : index
    %133 = vector.load %arg2[%c0_85, %c1536] : memref<34x3328xf32, #tpu.memory_space<vmem>>, vector<1x128xf32>
    %c1_86 = arith.constant 1 : index
    %c1536_87 = arith.constant 1536 : index
    %134 = vector.load %arg2[%c1_86, %c1536_87] : memref<34x3328xf32, #tpu.memory_space<vmem>>, vector<1x128xf32>
    %135 = vector.broadcast %133 : vector<1x128xf32> to vector<8x128xf32>
    %136 = arith.cmpf oge, %0, %135 : vector<8x128xf32>
    %137 = vector.broadcast %134 : vector<1x128xf32> to vector<8x128xf32>
    %138 = arith.cmpf olt, %0, %137 : vector<8x128xf32>
    %139 = arith.andi %136, %138 : vector<8x128xi1>
    %140 = arith.extui %139 : vector<8x128xi1> to vector<8x128xi32>
    %141 = arith.sitofp %140 : vector<8x128xi32> to vector<8x128xf32>
    %c0_88 = arith.constant 0 : index
    %c1536_89 = arith.constant 1536 : index
    %142 = vector.load %arg5[%c0_88, %c1536_89] : memref<8x3328xf32, #tpu.memory_space<vmem>>, vector<8x128xf32>
    tpu.vector_store %arg5[%c0_88, %c1536_89], %141 {strides = array<i32>} : memref<8x3328xf32, #tpu.memory_space<vmem>>, vector<8x128xf32>,
    %c0_90 = arith.constant 0 : index
    %c1536_91 = arith.constant 1536 : index
    %143 = vector.load %arg7[%c0_90, %c1536_91] : memref<8x3200xf32, #tpu.memory_space<vmem>>, vector<8x128xf32>
    tpu.vector_store %arg7[%c0_90, %c1536_91], %0 {strides = array<i32>} : memref<8x3200xf32, #tpu.memory_space<vmem>>, vector<8x128xf32>,
    %c0_92 = arith.constant 0 : index
    %c1664 = arith.constant 1664 : index
    %144 = vector.load %arg2[%c0_92, %c1664] : memref<34x3328xf32, #tpu.memory_space<vmem>>, vector<1x128xf32>
    %c1_93 = arith.constant 1 : index
    %c1664_94 = arith.constant 1664 : index
    %145 = vector.load %arg2[%c1_93, %c1664_94] : memref<34x3328xf32, #tpu.memory_space<vmem>>, vector<1x128xf32>
    %146 = vector.broadcast %144 : vector<1x128xf32> to vector<8x128xf32>
    %147 = arith.cmpf oge, %0, %146 : vector<8x128xf32>
    %148 = vector.broadcast %145 : vector<1x128xf32> to vector<8x128xf32>
    %149 = arith.cmpf olt, %0, %148 : vector<8x128xf32>
    %150 = arith.andi %147, %149 : vector<8x128xi1>
    %151 = arith.extui %150 : vector<8x128xi1> to vector<8x128xi32>
    %152 = arith.sitofp %151 : vector<8x128xi32> to vector<8x128xf32>
    %c0_95 = arith.constant 0 : index
    %c1664_96 = arith.constant 1664 : index
    %153 = vector.load %arg5[%c0_95, %c1664_96] : memref<8x3328xf32, #tpu.memory_space<vmem>>, vector<8x128xf32>
    tpu.vector_store %arg5[%c0_95, %c1664_96], %152 {strides = array<i32>} : memref<8x3328xf32, #tpu.memory_space<vmem>>, vector<8x128xf32>,
    %c0_97 = arith.constant 0 : index
    %c1664_98 = arith.constant 1664 : index
    %154 = vector.load %arg7[%c0_97, %c1664_98] : memref<8x3200xf32, #tpu.memory_space<vmem>>, vector<8x128xf32>
    tpu.vector_store %arg7[%c0_97, %c1664_98], %0 {strides = array<i32>} : memref<8x3200xf32, #tpu.memory_space<vmem>>, vector<8x128xf32>,
    %c0_99 = arith.constant 0 : index
    %c1792 = arith.constant 1792 : index
    %155 = vector.load %arg2[%c0_99, %c1792] : memref<34x3328xf32, #tpu.memory_space<vmem>>, vector<1x128xf32>
    %c1_100 = arith.constant 1 : index
    %c1792_101 = arith.constant 1792 : index
    %156 = vector.load %arg2[%c1_100, %c1792_101] : memref<34x3328xf32, #tpu.memory_space<vmem>>, vector<1x128xf32>
    %157 = vector.broadcast %155 : vector<1x128xf32> to vector<8x128xf32>
    %158 = arith.cmpf oge, %0, %157 : vector<8x128xf32>
    %159 = vector.broadcast %156 : vector<1x128xf32> to vector<8x128xf32>
    %160 = arith.cmpf olt, %0, %159 : vector<8x128xf32>
    %161 = arith.andi %158, %160 : vector<8x128xi1>
    %162 = arith.extui %161 : vector<8x128xi1> to vector<8x128xi32>
    %163 = arith.sitofp %162 : vector<8x128xi32> to vector<8x128xf32>
    %c0_102 = arith.constant 0 : index
    %c1792_103 = arith.constant 1792 : index
    %164 = vector.load %arg5[%c0_102, %c1792_103] : memref<8x3328xf32, #tpu.memory_space<vmem>>, vector<8x128xf32>
    tpu.vector_store %arg5[%c0_102, %c1792_103], %163 {strides = array<i32>} : memref<8x3328xf32, #tpu.memory_space<vmem>>, vector<8x128xf32>,
    %c0_104 = arith.constant 0 : index
    %c1792_105 = arith.constant 1792 : index
    %165 = vector.load %arg7[%c0_104, %c1792_105] : memref<8x3200xf32, #tpu.memory_space<vmem>>, vector<8x128xf32>
    tpu.vector_store %arg7[%c0_104, %c1792_105], %0 {strides = array<i32>} : memref<8x3200xf32, #tpu.memory_space<vmem>>, vector<8x128xf32>,
    %c0_106 = arith.constant 0 : index
    %c1920 = arith.constant 1920 : index
    %166 = vector.load %arg2[%c0_106, %c1920] : memref<34x3328xf32, #tpu.memory_space<vmem>>, vector<1x128xf32>
    %c1_107 = arith.constant 1 : index
    %c1920_108 = arith.constant 1920 : index
    %167 = vector.load %arg2[%c1_107, %c1920_108] : memref<34x3328xf32, #tpu.memory_space<vmem>>, vector<1x128xf32>
    %168 = vector.broadcast %166 : vector<1x128xf32> to vector<8x128xf32>
    %169 = arith.cmpf oge, %0, %168 : vector<8x128xf32>
    %170 = vector.broadcast %167 : vector<1x128xf32> to vector<8x128xf32>
    %171 = arith.cmpf olt, %0, %170 : vector<8x128xf32>
    %172 = arith.andi %169, %171 : vector<8x128xi1>
    %173 = arith.extui %172 : vector<8x128xi1> to vector<8x128xi32>
    %174 = arith.sitofp %173 : vector<8x128xi32> to vector<8x128xf32>
    %c0_109 = arith.constant 0 : index
    %c1920_110 = arith.constant 1920 : index
    %175 = vector.load %arg5[%c0_109, %c1920_110] : memref<8x3328xf32, #tpu.memory_space<vmem>>, vector<8x128xf32>
    tpu.vector_store %arg5[%c0_109, %c1920_110], %174 {strides = array<i32>} : memref<8x3328xf32, #tpu.memory_space<vmem>>, vector<8x128xf32>,
    %c0_111 = arith.constant 0 : index
    %c1920_112 = arith.constant 1920 : index
    %176 = vector.load %arg7[%c0_111, %c1920_112] : memref<8x3200xf32, #tpu.memory_space<vmem>>, vector<8x128xf32>
    tpu.vector_store %arg7[%c0_111, %c1920_112], %0 {strides = array<i32>} : memref<8x3200xf32, #tpu.memory_space<vmem>>, vector<8x128xf32>,
    %c0_113 = arith.constant 0 : index
    %c2048 = arith.constant 2048 : index
    %177 = vector.load %arg2[%c0_113, %c2048] : memref<34x3328xf32, #tpu.memory_space<vmem>>, vector<1x128xf32>
    %c1_114 = arith.constant 1 : index
    %c2048_115 = arith.constant 2048 : index
    %178 = vector.load %arg2[%c1_114, %c2048_115] : memref<34x3328xf32, #tpu.memory_space<vmem>>, vector<1x128xf32>
    %179 = vector.broadcast %177 : vector<1x128xf32> to vector<8x128xf32>
    %180 = arith.cmpf oge, %0, %179 : vector<8x128xf32>
    %181 = vector.broadcast %178 : vector<1x128xf32> to vector<8x128xf32>
    %182 = arith.cmpf olt, %0, %181 : vector<8x128xf32>
    %183 = arith.andi %180, %182 : vector<8x128xi1>
    %184 = arith.extui %183 : vector<8x128xi1> to vector<8x128xi32>
    %185 = arith.sitofp %184 : vector<8x128xi32> to vector<8x128xf32>
    %c0_116 = arith.constant 0 : index
    %c2048_117 = arith.constant 2048 : index
    %186 = vector.load %arg5[%c0_116, %c2048_117] : memref<8x3328xf32, #tpu.memory_space<vmem>>, vector<8x128xf32>
    tpu.vector_store %arg5[%c0_116, %c2048_117], %185 {strides = array<i32>} : memref<8x3328xf32, #tpu.memory_space<vmem>>, vector<8x128xf32>,
    %c0_118 = arith.constant 0 : index
    %c2048_119 = arith.constant 2048 : index
    %187 = vector.load %arg7[%c0_118, %c2048_119] : memref<8x3200xf32, #tpu.memory_space<vmem>>, vector<8x128xf32>
    tpu.vector_store %arg7[%c0_118, %c2048_119], %0 {strides = array<i32>} : memref<8x3200xf32, #tpu.memory_space<vmem>>, vector<8x128xf32>,
    %c0_120 = arith.constant 0 : index
    %c2176 = arith.constant 2176 : index
    %188 = vector.load %arg2[%c0_120, %c2176] : memref<34x3328xf32, #tpu.memory_space<vmem>>, vector<1x128xf32>
    %c1_121 = arith.constant 1 : index
    %c2176_122 = arith.constant 2176 : index
    %189 = vector.load %arg2[%c1_121, %c2176_122] : memref<34x3328xf32, #tpu.memory_space<vmem>>, vector<1x128xf32>
    %190 = vector.broadcast %188 : vector<1x128xf32> to vector<8x128xf32>
    %191 = arith.cmpf oge, %0, %190 : vector<8x128xf32>
    %192 = vector.broadcast %189 : vector<1x128xf32> to vector<8x128xf32>
    %193 = arith.cmpf olt, %0, %192 : vector<8x128xf32>
    %194 = arith.andi %191, %193 : vector<8x128xi1>
    %195 = arith.extui %194 : vector<8x128xi1> to vector<8x128xi32>
    %196 = arith.sitofp %195 : vector<8x128xi32> to vector<8x128xf32>
    %c0_123 = arith.constant 0 : index
    %c2176_124 = arith.constant 2176 : index
    %197 = vector.load %arg5[%c0_123, %c2176_124] : memref<8x3328xf32, #tpu.memory_space<vmem>>, vector<8x128xf32>
    tpu.vector_store %arg5[%c0_123, %c2176_124], %196 {strides = array<i32>} : memref<8x3328xf32, #tpu.memory_space<vmem>>, vector<8x128xf32>,
    %c0_125 = arith.constant 0 : index
    %c2176_126 = arith.constant 2176 : index
    %198 = vector.load %arg7[%c0_125, %c2176_126] : memref<8x3200xf32, #tpu.memory_space<vmem>>, vector<8x128xf32>
    tpu.vector_store %arg7[%c0_125, %c2176_126], %0 {strides = array<i32>} : memref<8x3200xf32, #tpu.memory_space<vmem>>, vector<8x128xf32>,
    %c0_127 = arith.constant 0 : index
    %c2304 = arith.constant 2304 : index
    %199 = vector.load %arg2[%c0_127, %c2304] : memref<34x3328xf32, #tpu.memory_space<vmem>>, vector<1x128xf32>
    %c1_128 = arith.constant 1 : index
    %c2304_129 = arith.constant 2304 : index
    %200 = vector.load %arg2[%c1_128, %c2304_129] : memref<34x3328xf32, #tpu.memory_space<vmem>>, vector<1x128xf32>
    %201 = vector.broadcast %199 : vector<1x128xf32> to vector<8x128xf32>
    %202 = arith.cmpf oge, %0, %201 : vector<8x128xf32>
    %203 = vector.broadcast %200 : vector<1x128xf32> to vector<8x128xf32>
    %204 = arith.cmpf olt, %0, %203 : vector<8x128xf32>
    %205 = arith.andi %202, %204 : vector<8x128xi1>
    %206 = arith.extui %205 : vector<8x128xi1> to vector<8x128xi32>
    %207 = arith.sitofp %206 : vector<8x128xi32> to vector<8x128xf32>
    %c0_130 = arith.constant 0 : index
    %c2304_131 = arith.constant 2304 : index
    %208 = vector.load %arg5[%c0_130, %c2304_131] : memref<8x3328xf32, #tpu.memory_space<vmem>>, vector<8x128xf32>
    tpu.vector_store %arg5[%c0_130, %c2304_131], %207 {strides = array<i32>} : memref<8x3328xf32, #tpu.memory_space<vmem>>, vector<8x128xf32>,
    %c0_132 = arith.constant 0 : index
    %c2304_133 = arith.constant 2304 : index
    %209 = vector.load %arg7[%c0_132, %c2304_133] : memref<8x3200xf32, #tpu.memory_space<vmem>>, vector<8x128xf32>
    tpu.vector_store %arg7[%c0_132, %c2304_133], %0 {strides = array<i32>} : memref<8x3200xf32, #tpu.memory_space<vmem>>, vector<8x128xf32>,
    %c0_134 = arith.constant 0 : index
    %c2432 = arith.constant 2432 : index
    %210 = vector.load %arg2[%c0_134, %c2432] : memref<34x3328xf32, #tpu.memory_space<vmem>>, vector<1x128xf32>
    %c1_135 = arith.constant 1 : index
    %c2432_136 = arith.constant 2432 : index
    %211 = vector.load %arg2[%c1_135, %c2432_136] : memref<34x3328xf32, #tpu.memory_space<vmem>>, vector<1x128xf32>
    %212 = vector.broadcast %210 : vector<1x128xf32> to vector<8x128xf32>
    %213 = arith.cmpf oge, %0, %212 : vector<8x128xf32>
    %214 = vector.broadcast %211 : vector<1x128xf32> to vector<8x128xf32>
    %215 = arith.cmpf olt, %0, %214 : vector<8x128xf32>
    %216 = arith.andi %213, %215 : vector<8x128xi1>
    %217 = arith.extui %216 : vector<8x128xi1> to vector<8x128xi32>
    %218 = arith.sitofp %217 : vector<8x128xi32> to vector<8x128xf32>
    %c0_137 = arith.constant 0 : index
    %c2432_138 = arith.constant 2432 : index
    %219 = vector.load %arg5[%c0_137, %c2432_138] : memref<8x3328xf32, #tpu.memory_space<vmem>>, vector<8x128xf32>
    tpu.vector_store %arg5[%c0_137, %c2432_138], %218 {strides = array<i32>} : memref<8x3328xf32, #tpu.memory_space<vmem>>, vector<8x128xf32>,
    %c0_139 = arith.constant 0 : index
    %c2432_140 = arith.constant 2432 : index
    %220 = vector.load %arg7[%c0_139, %c2432_140] : memref<8x3200xf32, #tpu.memory_space<vmem>>, vector<8x128xf32>
    tpu.vector_store %arg7[%c0_139, %c2432_140], %0 {strides = array<i32>} : memref<8x3200xf32, #tpu.memory_space<vmem>>, vector<8x128xf32>,
    %c0_141 = arith.constant 0 : index
    %c2560 = arith.constant 2560 : index
    %221 = vector.load %arg2[%c0_141, %c2560] : memref<34x3328xf32, #tpu.memory_space<vmem>>, vector<1x128xf32>
    %c1_142 = arith.constant 1 : index
    %c2560_143 = arith.constant 2560 : index
    %222 = vector.load %arg2[%c1_142, %c2560_143] : memref<34x3328xf32, #tpu.memory_space<vmem>>, vector<1x128xf32>
    %223 = vector.broadcast %221 : vector<1x128xf32> to vector<8x128xf32>
    %224 = arith.cmpf oge, %0, %223 : vector<8x128xf32>
    %225 = vector.broadcast %222 : vector<1x128xf32> to vector<8x128xf32>
    %226 = arith.cmpf olt, %0, %225 : vector<8x128xf32>
    %227 = arith.andi %224, %226 : vector<8x128xi1>
    %228 = arith.extui %227 : vector<8x128xi1> to vector<8x128xi32>
    %229 = arith.sitofp %228 : vector<8x128xi32> to vector<8x128xf32>
    %c0_144 = arith.constant 0 : index
    %c2560_145 = arith.constant 2560 : index
    %230 = vector.load %arg5[%c0_144, %c2560_145] : memref<8x3328xf32, #tpu.memory_space<vmem>>, vector<8x128xf32>
    tpu.vector_store %arg5[%c0_144, %c2560_145], %229 {strides = array<i32>} : memref<8x3328xf32, #tpu.memory_space<vmem>>, vector<8x128xf32>,
    %c0_146 = arith.constant 0 : index
    %c2560_147 = arith.constant 2560 : index
    %231 = vector.load %arg7[%c0_146, %c2560_147] : memref<8x3200xf32, #tpu.memory_space<vmem>>, vector<8x128xf32>
    tpu.vector_store %arg7[%c0_146, %c2560_147], %0 {strides = array<i32>} : memref<8x3200xf32, #tpu.memory_space<vmem>>, vector<8x128xf32>,
    %c0_148 = arith.constant 0 : index
    %c2688 = arith.constant 2688 : index
    %232 = vector.load %arg2[%c0_148, %c2688] : memref<34x3328xf32, #tpu.memory_space<vmem>>, vector<1x128xf32>
    %c1_149 = arith.constant 1 : index
    %c2688_150 = arith.constant 2688 : index
    %233 = vector.load %arg2[%c1_149, %c2688_150] : memref<34x3328xf32, #tpu.memory_space<vmem>>, vector<1x128xf32>
    %234 = vector.broadcast %232 : vector<1x128xf32> to vector<8x128xf32>
    %235 = arith.cmpf oge, %0, %234 : vector<8x128xf32>
    %236 = vector.broadcast %233 : vector<1x128xf32> to vector<8x128xf32>
    %237 = arith.cmpf olt, %0, %236 : vector<8x128xf32>
    %238 = arith.andi %235, %237 : vector<8x128xi1>
    %239 = arith.extui %238 : vector<8x128xi1> to vector<8x128xi32>
    %240 = arith.sitofp %239 : vector<8x128xi32> to vector<8x128xf32>
    %c0_151 = arith.constant 0 : index
    %c2688_152 = arith.constant 2688 : index
    %241 = vector.load %arg5[%c0_151, %c2688_152] : memref<8x3328xf32, #tpu.memory_space<vmem>>, vector<8x128xf32>
    tpu.vector_store %arg5[%c0_151, %c2688_152], %240 {strides = array<i32>} : memref<8x3328xf32, #tpu.memory_space<vmem>>, vector<8x128xf32>,
    %c0_153 = arith.constant 0 : index
    %c2688_154 = arith.constant 2688 : index
    %242 = vector.load %arg7[%c0_153, %c2688_154] : memref<8x3200xf32, #tpu.memory_space<vmem>>, vector<8x128xf32>
    tpu.vector_store %arg7[%c0_153, %c2688_154], %0 {strides = array<i32>} : memref<8x3200xf32, #tpu.memory_space<vmem>>, vector<8x128xf32>,
    %c0_155 = arith.constant 0 : index
    %c2816 = arith.constant 2816 : index
    %243 = vector.load %arg2[%c0_155, %c2816] : memref<34x3328xf32, #tpu.memory_space<vmem>>, vector<1x128xf32>
    %c1_156 = arith.constant 1 : index
    %c2816_157 = arith.constant 2816 : index
    %244 = vector.load %arg2[%c1_156, %c2816_157] : memref<34x3328xf32, #tpu.memory_space<vmem>>, vector<1x128xf32>
    %245 = vector.broadcast %243 : vector<1x128xf32> to vector<8x128xf32>
    %246 = arith.cmpf oge, %0, %245 : vector<8x128xf32>
    %247 = vector.broadcast %244 : vector<1x128xf32> to vector<8x128xf32>
    %248 = arith.cmpf olt, %0, %247 : vector<8x128xf32>
    %249 = arith.andi %246, %248 : vector<8x128xi1>
    %250 = arith.extui %249 : vector<8x128xi1> to vector<8x128xi32>
    %251 = arith.sitofp %250 : vector<8x128xi32> to vector<8x128xf32>
    %c0_158 = arith.constant 0 : index
    %c2816_159 = arith.constant 2816 : index
    %252 = vector.load %arg5[%c0_158, %c2816_159] : memref<8x3328xf32, #tpu.memory_space<vmem>>, vector<8x128xf32>
    tpu.vector_store %arg5[%c0_158, %c2816_159], %251 {strides = array<i32>} : memref<8x3328xf32, #tpu.memory_space<vmem>>, vector<8x128xf32>,
    %c0_160 = arith.constant 0 : index
    %c2816_161 = arith.constant 2816 : index
    %253 = vector.load %arg7[%c0_160, %c2816_161] : memref<8x3200xf32, #tpu.memory_space<vmem>>, vector<8x128xf32>
    tpu.vector_store %arg7[%c0_160, %c2816_161], %0 {strides = array<i32>} : memref<8x3200xf32, #tpu.memory_space<vmem>>, vector<8x128xf32>,
    %c0_162 = arith.constant 0 : index
    %c2944 = arith.constant 2944 : index
    %254 = vector.load %arg2[%c0_162, %c2944] : memref<34x3328xf32, #tpu.memory_space<vmem>>, vector<1x128xf32>
    %c1_163 = arith.constant 1 : index
    %c2944_164 = arith.constant 2944 : index
    %255 = vector.load %arg2[%c1_163, %c2944_164] : memref<34x3328xf32, #tpu.memory_space<vmem>>, vector<1x128xf32>
    %256 = vector.broadcast %254 : vector<1x128xf32> to vector<8x128xf32>
    %257 = arith.cmpf oge, %0, %256 : vector<8x128xf32>
    %258 = vector.broadcast %255 : vector<1x128xf32> to vector<8x128xf32>
    %259 = arith.cmpf olt, %0, %258 : vector<8x128xf32>
    %260 = arith.andi %257, %259 : vector<8x128xi1>
    %261 = arith.extui %260 : vector<8x128xi1> to vector<8x128xi32>
    %262 = arith.sitofp %261 : vector<8x128xi32> to vector<8x128xf32>
    %c0_165 = arith.constant 0 : index
    %c2944_166 = arith.constant 2944 : index
    %263 = vector.load %arg5[%c0_165, %c2944_166] : memref<8x3328xf32, #tpu.memory_space<vmem>>, vector<8x128xf32>
    tpu.vector_store %arg5[%c0_165, %c2944_166], %262 {strides = array<i32>} : memref<8x3328xf32, #tpu.memory_space<vmem>>, vector<8x128xf32>,
    %c0_167 = arith.constant 0 : index
    %c2944_168 = arith.constant 2944 : index
    %264 = vector.load %arg7[%c0_167, %c2944_168] : memref<8x3200xf32, #tpu.memory_space<vmem>>, vector<8x128xf32>
    tpu.vector_store %arg7[%c0_167, %c2944_168], %0 {strides = array<i32>} : memref<8x3200xf32, #tpu.memory_space<vmem>>, vector<8x128xf32>,
    %c0_169 = arith.constant 0 : index
    %c3072 = arith.constant 3072 : index
    %265 = vector.load %arg2[%c0_169, %c3072] : memref<34x3328xf32, #tpu.memory_space<vmem>>, vector<1x128xf32>
    %c1_170 = arith.constant 1 : index
    %c3072_171 = arith.constant 3072 : index
    %266 = vector.load %arg2[%c1_170, %c3072_171] : memref<34x3328xf32, #tpu.memory_space<vmem>>, vector<1x128xf32>
    %267 = vector.broadcast %265 : vector<1x128xf32> to vector<8x128xf32>
    %268 = arith.cmpf oge, %0, %267 : vector<8x128xf32>
    %269 = vector.broadcast %266 : vector<1x128xf32> to vector<8x128xf32>
    %270 = arith.cmpf olt, %0, %269 : vector<8x128xf32>
    %271 = arith.andi %268, %270 : vector<8x128xi1>
    %272 = arith.extui %271 : vector<8x128xi1> to vector<8x128xi32>
    %273 = arith.sitofp %272 : vector<8x128xi32> to vector<8x128xf32>
    %c0_172 = arith.constant 0 : index
    %c3072_173 = arith.constant 3072 : index
    %274 = vector.load %arg5[%c0_172, %c3072_173] : memref<8x3328xf32, #tpu.memory_space<vmem>>, vector<8x128xf32>
    tpu.vector_store %arg5[%c0_172, %c3072_173], %273 {strides = array<i32>} : memref<8x3328xf32, #tpu.memory_space<vmem>>, vector<8x128xf32>,
    %c0_174 = arith.constant 0 : index
    %c3072_175 = arith.constant 3072 : index
    %275 = vector.load %arg7[%c0_174, %c3072_175] : memref<8x3200xf32, #tpu.memory_space<vmem>>, vector<8x128xf32>
    tpu.vector_store %arg7[%c0_174, %c3072_175], %0 {strides = array<i32>} : memref<8x3200xf32, #tpu.memory_space<vmem>>, vector<8x128xf32>,
    %c0_176 = arith.constant 0 : index
    %c3200 = arith.constant 3200 : index
    %276 = vector.load %arg2[%c0_176, %c3200] : memref<34x3328xf32, #tpu.memory_space<vmem>>, vector<1x128xf32>
    %c1_177 = arith.constant 1 : index
    %c3200_178 = arith.constant 3200 : index
    %277 = vector.load %arg2[%c1_177, %c3200_178] : memref<34x3328xf32, #tpu.memory_space<vmem>>, vector<1x128xf32>
    %278 = vector.broadcast %276 : vector<1x128xf32> to vector<8x128xf32>
    %279 = arith.cmpf oge, %0, %278 : vector<8x128xf32>
    %280 = vector.broadcast %277 : vector<1x128xf32> to vector<8x128xf32>
    %281 = arith.cmpf olt, %0, %280 : vector<8x128xf32>
    %282 = arith.andi %279, %281 : vector<8x128xi1>
    %283 = arith.extui %282 : vector<8x128xi1> to vector<8x128xi32>
    %284 = arith.sitofp %283 : vector<8x128xi32> to vector<8x128xf32>
    %c0_179 = arith.constant 0 : index
    %c3200_180 = arith.constant 3200 : index
    %285 = vector.load %arg5[%c0_179, %c3200_180] : memref<8x3328xf32, #tpu.memory_space<vmem>>, vector<8x128xf32>
    tpu.vector_store %arg5[%c0_179, %c3200_180], %284 {strides = array<i32>} : memref<8x3328xf32, #tpu.memory_space<vmem>>, vector<8x128xf32>,
    %c2 = arith.constant 2 : index
    %c0_181 = arith.constant 0 : index
    %286 = vector.load %arg2[%c2, %c0_181] : memref<34x3328xf32, #tpu.memory_space<vmem>>, vector<1x3200xf32>
    %c3 = arith.constant 3 : index
    %c0_182 = arith.constant 0 : index
    %287 = vector.load %arg2[%c3, %c0_182] : memref<34x3328xf32, #tpu.memory_space<vmem>>, vector<1x3200xf32>
    %c4 = arith.constant 4 : index
    %c0_183 = arith.constant 0 : index
    %288 = vector.load %arg2[%c4, %c0_183] : memref<34x3328xf32, #tpu.memory_space<vmem>>, vector<1x3200xf32>
    %c5 = arith.constant 5 : index
    %c0_184 = arith.constant 0 : index
    %289 = vector.load %arg2[%c5, %c0_184] : memref<34x3328xf32, #tpu.memory_space<vmem>>, vector<1x3200xf32>
    %c0_185 = arith.constant 0 : index
    %c0_186 = arith.constant 0 : index
    %290 = vector.load %arg7[%c0_185, %c0_186] : memref<8x3200xf32, #tpu.memory_space<vmem>>, vector<8x3200xf32>
    %c0_187 = arith.constant 0 : index
    %c0_188 = arith.constant 0 : index
    %291 = vector.load %arg5[%c0_187, %c0_188] : memref<8x3328xf32, #tpu.memory_space<vmem>>, vector<8x3200xf32>
    %c0_189 = arith.constant 0 : index
    %c128_190 = arith.constant 128 : index
    %292 = vector.load %arg5[%c0_189, %c128_190] : memref<8x3328xf32, #tpu.memory_space<vmem>>, vector<8x3200xf32>
    %293 = vector.broadcast %286 : vector<1x3200xf32> to vector<8x3200xf32>
    %294 = arith.mulf %290, %293 : vector<8x3200xf32>
    %295 = vector.broadcast %287 : vector<1x3200xf32> to vector<8x3200xf32>
    %296 = arith.addf %294, %295 : vector<8x3200xf32>
    %297 = arith.mulf %296, %291 : vector<8x3200xf32>
    %298 = vector.broadcast %288 : vector<1x3200xf32> to vector<8x3200xf32>
    %299 = arith.mulf %290, %298 : vector<8x3200xf32>
    %300 = vector.broadcast %289 : vector<1x3200xf32> to vector<8x3200xf32>
    %301 = arith.addf %299, %300 : vector<8x3200xf32>
    %302 = arith.mulf %301, %292 : vector<8x3200xf32>
    %303 = arith.addf %297, %302 : vector<8x3200xf32>
    %c0_191 = arith.constant 0 : index
    %c0_192 = arith.constant 0 : index
    %304 = vector.load %arg6[%c0_191, %c0_192] : memref<8x3200xf32, #tpu.memory_space<vmem>>, vector<8x3200xf32>
    tpu.vector_store %arg6[%c0_191, %c0_192], %303 {strides = array<i32>} : memref<8x3200xf32, #tpu.memory_space<vmem>>, vector<8x3200xf32>,
    %c6 = arith.constant 6 : index
    %c0_193 = arith.constant 0 : index
    %305 = vector.load %arg2[%c6, %c0_193] : memref<34x3328xf32, #tpu.memory_space<vmem>>, vector<1x3072xf32>
    %c7 = arith.constant 7 : index
    %c0_194 = arith.constant 0 : index
    %306 = vector.load %arg2[%c7, %c0_194] : memref<34x3328xf32, #tpu.memory_space<vmem>>, vector<1x3072xf32>
    %c8 = arith.constant 8 : index
    %c0_195 = arith.constant 0 : index
    %307 = vector.load %arg2[%c8, %c0_195] : memref<34x3328xf32, #tpu.memory_space<vmem>>, vector<1x3072xf32>
    %c9 = arith.constant 9 : index
    %c0_196 = arith.constant 0 : index
    %308 = vector.load %arg2[%c9, %c0_196] : memref<34x3328xf32, #tpu.memory_space<vmem>>, vector<1x3072xf32>
    %c0_197 = arith.constant 0 : index
    %c0_198 = arith.constant 0 : index
    %309 = vector.load %arg7[%c0_197, %c0_198] : memref<8x3200xf32, #tpu.memory_space<vmem>>, vector<8x3072xf32>
    %c0_199 = arith.constant 0 : index
    %c0_200 = arith.constant 0 : index
    %310 = vector.load %arg6[%c0_199, %c0_200] : memref<8x3200xf32, #tpu.memory_space<vmem>>, vector<8x3072xf32>
    %c0_201 = arith.constant 0 : index
    %c128_202 = arith.constant 128 : index
    %311 = vector.load %arg6[%c0_201, %c128_202] : memref<8x3200xf32, #tpu.memory_space<vmem>>, vector<8x3072xf32>
    %312 = vector.broadcast %305 : vector<1x3072xf32> to vector<8x3072xf32>
    %313 = arith.mulf %309, %312 : vector<8x3072xf32>
    %314 = vector.broadcast %306 : vector<1x3072xf32> to vector<8x3072xf32>
    %315 = arith.addf %313, %314 : vector<8x3072xf32>
    %316 = arith.mulf %315, %310 : vector<8x3072xf32>
    %317 = vector.broadcast %307 : vector<1x3072xf32> to vector<8x3072xf32>
    %318 = arith.mulf %309, %317 : vector<8x3072xf32>
    %319 = vector.broadcast %308 : vector<1x3072xf32> to vector<8x3072xf32>
    %320 = arith.addf %318, %319 : vector<8x3072xf32>
    %321 = arith.mulf %320, %311 : vector<8x3072xf32>
    %322 = arith.addf %316, %321 : vector<8x3072xf32>
    %c0_203 = arith.constant 0 : index
    %c0_204 = arith.constant 0 : index
    %323 = vector.load %arg5[%c0_203, %c0_204] : memref<8x3328xf32, #tpu.memory_space<vmem>>, vector<8x3072xf32>
    tpu.vector_store %arg5[%c0_203, %c0_204], %322 {strides = array<i32>} : memref<8x3328xf32, #tpu.memory_space<vmem>>, vector<8x3072xf32>,
    %c10 = arith.constant 10 : index
    %c0_205 = arith.constant 0 : index
    %324 = vector.load %arg2[%c10, %c0_205] : memref<34x3328xf32, #tpu.memory_space<vmem>>, vector<1x2944xf32>
    %c11 = arith.constant 11 : index
    %c0_206 = arith.constant 0 : index
    %325 = vector.load %arg2[%c11, %c0_206] : memref<34x3328xf32, #tpu.memory_space<vmem>>, vector<1x2944xf32>
    %c12 = arith.constant 12 : index
    %c0_207 = arith.constant 0 : index
    %326 = vector.load %arg2[%c12, %c0_207] : memref<34x3328xf32, #tpu.memory_space<vmem>>, vector<1x2944xf32>
    %c13 = arith.constant 13 : index
    %c0_208 = arith.constant 0 : index
    %327 = vector.load %arg2[%c13, %c0_208] : memref<34x3328xf32, #tpu.memory_space<vmem>>, vector<1x2944xf32>
    %c0_209 = arith.constant 0 : index
    %c0_210 = arith.constant 0 : index
    %328 = vector.load %arg7[%c0_209, %c0_210] : memref<8x3200xf32, #tpu.memory_space<vmem>>, vector<8x2944xf32>
    %c0_211 = arith.constant 0 : index
    %c0_212 = arith.constant 0 : index
    %329 = vector.load %arg5[%c0_211, %c0_212] : memref<8x3328xf32, #tpu.memory_space<vmem>>, vector<8x2944xf32>
    %c0_213 = arith.constant 0 : index
    %c128_214 = arith.constant 128 : index
    %330 = vector.load %arg5[%c0_213, %c128_214] : memref<8x3328xf32, #tpu.memory_space<vmem>>, vector<8x2944xf32>
    %331 = vector.broadcast %324 : vector<1x2944xf32> to vector<8x2944xf32>
    %332 = arith.mulf %328, %331 : vector<8x2944xf32>
    %333 = vector.broadcast %325 : vector<1x2944xf32> to vector<8x2944xf32>
    %334 = arith.addf %332, %333 : vector<8x2944xf32>
    %335 = arith.mulf %334, %329 : vector<8x2944xf32>
    %336 = vector.broadcast %326 : vector<1x2944xf32> to vector<8x2944xf32>
    %337 = arith.mulf %328, %336 : vector<8x2944xf32>
    %338 = vector.broadcast %327 : vector<1x2944xf32> to vector<8x2944xf32>
    %339 = arith.addf %337, %338 : vector<8x2944xf32>
    %340 = arith.mulf %339, %330 : vector<8x2944xf32>
    %341 = arith.addf %335, %340 : vector<8x2944xf32>
    %c0_215 = arith.constant 0 : index
    %c0_216 = arith.constant 0 : index
    %342 = vector.load %arg6[%c0_215, %c0_216] : memref<8x3200xf32, #tpu.memory_space<vmem>>, vector<8x2944xf32>
    tpu.vector_store %arg6[%c0_215, %c0_216], %341 {strides = array<i32>} : memref<8x3200xf32, #tpu.memory_space<vmem>>, vector<8x2944xf32>,
    %c14 = arith.constant 14 : index
    %c0_217 = arith.constant 0 : index
    %343 = vector.load %arg2[%c14, %c0_217] : memref<34x3328xf32, #tpu.memory_space<vmem>>, vector<1x2816xf32>
    %c15 = arith.constant 15 : index
    %c0_218 = arith.constant 0 : index
    %344 = vector.load %arg2[%c15, %c0_218] : memref<34x3328xf32, #tpu.memory_space<vmem>>, vector<1x2816xf32>
    %c16 = arith.constant 16 : index
    %c0_219 = arith.constant 0 : index
    %345 = vector.load %arg2[%c16, %c0_219] : memref<34x3328xf32, #tpu.memory_space<vmem>>, vector<1x2816xf32>
    %c17 = arith.constant 17 : index
    %c0_220 = arith.constant 0 : index
    %346 = vector.load %arg2[%c17, %c0_220] : memref<34x3328xf32, #tpu.memory_space<vmem>>, vector<1x2816xf32>
    %c0_221 = arith.constant 0 : index
    %c0_222 = arith.constant 0 : index
    %347 = vector.load %arg7[%c0_221, %c0_222] : memref<8x3200xf32, #tpu.memory_space<vmem>>, vector<8x2816xf32>
    %c0_223 = arith.constant 0 : index
    %c0_224 = arith.constant 0 : index
    %348 = vector.load %arg6[%c0_223, %c0_224] : memref<8x3200xf32, #tpu.memory_space<vmem>>, vector<8x2816xf32>
    %c0_225 = arith.constant 0 : index
    %c128_226 = arith.constant 128 : index
    %349 = vector.load %arg6[%c0_225, %c128_226] : memref<8x3200xf32, #tpu.memory_space<vmem>>, vector<8x2816xf32>
    %350 = vector.broadcast %343 : vector<1x2816xf32> to vector<8x2816xf32>
    %351 = arith.mulf %347, %350 : vector<8x2816xf32>
    %352 = vector.broadcast %344 : vector<1x2816xf32> to vector<8x2816xf32>
    %353 = arith.addf %351, %352 : vector<8x2816xf32>
    %354 = arith.mulf %353, %348 : vector<8x2816xf32>
    %355 = vector.broadcast %345 : vector<1x2816xf32> to vector<8x2816xf32>
    %356 = arith.mulf %347, %355 : vector<8x2816xf32>
    %357 = vector.broadcast %346 : vector<1x2816xf32> to vector<8x2816xf32>
    %358 = arith.addf %356, %357 : vector<8x2816xf32>
    %359 = arith.mulf %358, %349 : vector<8x2816xf32>
    %360 = arith.addf %354, %359 : vector<8x2816xf32>
    %c0_227 = arith.constant 0 : index
    %c0_228 = arith.constant 0 : index
    %361 = vector.load %arg5[%c0_227, %c0_228] : memref<8x3328xf32, #tpu.memory_space<vmem>>, vector<8x2816xf32>
    tpu.vector_store %arg5[%c0_227, %c0_228], %360 {strides = array<i32>} : memref<8x3328xf32, #tpu.memory_space<vmem>>, vector<8x2816xf32>,
    %c18 = arith.constant 18 : index
    %c0_229 = arith.constant 0 : index
    %362 = vector.load %arg2[%c18, %c0_229] : memref<34x3328xf32, #tpu.memory_space<vmem>>, vector<1x2688xf32>
    %c19 = arith.constant 19 : index
    %c0_230 = arith.constant 0 : index
    %363 = vector.load %arg2[%c19, %c0_230] : memref<34x3328xf32, #tpu.memory_space<vmem>>, vector<1x2688xf32>
    %c20 = arith.constant 20 : index
    %c0_231 = arith.constant 0 : index
    %364 = vector.load %arg2[%c20, %c0_231] : memref<34x3328xf32, #tpu.memory_space<vmem>>, vector<1x2688xf32>
    %c21 = arith.constant 21 : index
    %c0_232 = arith.constant 0 : index
    %365 = vector.load %arg2[%c21, %c0_232] : memref<34x3328xf32, #tpu.memory_space<vmem>>, vector<1x2688xf32>
    %c0_233 = arith.constant 0 : index
    %c0_234 = arith.constant 0 : index
    %366 = vector.load %arg7[%c0_233, %c0_234] : memref<8x3200xf32, #tpu.memory_space<vmem>>, vector<8x2688xf32>
    %c0_235 = arith.constant 0 : index
    %c0_236 = arith.constant 0 : index
    %367 = vector.load %arg5[%c0_235, %c0_236] : memref<8x3328xf32, #tpu.memory_space<vmem>>, vector<8x2688xf32>
    %c0_237 = arith.constant 0 : index
    %c128_238 = arith.constant 128 : index
    %368 = vector.load %arg5[%c0_237, %c128_238] : memref<8x3328xf32, #tpu.memory_space<vmem>>, vector<8x2688xf32>
    %369 = vector.broadcast %362 : vector<1x2688xf32> to vector<8x2688xf32>
    %370 = arith.mulf %366, %369 : vector<8x2688xf32>
    %371 = vector.broadcast %363 : vector<1x2688xf32> to vector<8x2688xf32>
    %372 = arith.addf %370, %371 : vector<8x2688xf32>
    %373 = arith.mulf %372, %367 : vector<8x2688xf32>
    %374 = vector.broadcast %364 : vector<1x2688xf32> to vector<8x2688xf32>
    %375 = arith.mulf %366, %374 : vector<8x2688xf32>
    %376 = vector.broadcast %365 : vector<1x2688xf32> to vector<8x2688xf32>
    %377 = arith.addf %375, %376 : vector<8x2688xf32>
    %378 = arith.mulf %377, %368 : vector<8x2688xf32>
    %379 = arith.addf %373, %378 : vector<8x2688xf32>
    %c0_239 = arith.constant 0 : index
    %c0_240 = arith.constant 0 : index
    %380 = vector.load %arg6[%c0_239, %c0_240] : memref<8x3200xf32, #tpu.memory_space<vmem>>, vector<8x2688xf32>
    tpu.vector_store %arg6[%c0_239, %c0_240], %379 {strides = array<i32>} : memref<8x3200xf32, #tpu.memory_space<vmem>>, vector<8x2688xf32>,
    %c22 = arith.constant 22 : index
    %c0_241 = arith.constant 0 : index
    %381 = vector.load %arg2[%c22, %c0_241] : memref<34x3328xf32, #tpu.memory_space<vmem>>, vector<1x2560xf32>
    %c23 = arith.constant 23 : index
    %c0_242 = arith.constant 0 : index
    %382 = vector.load %arg2[%c23, %c0_242] : memref<34x3328xf32, #tpu.memory_space<vmem>>, vector<1x2560xf32>
    %c24 = arith.constant 24 : index
    %c0_243 = arith.constant 0 : index
    %383 = vector.load %arg2[%c24, %c0_243] : memref<34x3328xf32, #tpu.memory_space<vmem>>, vector<1x2560xf32>
    %c25 = arith.constant 25 : index
    %c0_244 = arith.constant 0 : index
    %384 = vector.load %arg2[%c25, %c0_244] : memref<34x3328xf32, #tpu.memory_space<vmem>>, vector<1x2560xf32>
    %c0_245 = arith.constant 0 : index
    %c0_246 = arith.constant 0 : index
    %385 = vector.load %arg7[%c0_245, %c0_246] : memref<8x3200xf32, #tpu.memory_space<vmem>>, vector<8x2560xf32>
    %c0_247 = arith.constant 0 : index
    %c0_248 = arith.constant 0 : index
    %386 = vector.load %arg6[%c0_247, %c0_248] : memref<8x3200xf32, #tpu.memory_space<vmem>>, vector<8x2560xf32>
    %c0_249 = arith.constant 0 : index
    %c128_250 = arith.constant 128 : index
    %387 = vector.load %arg6[%c0_249, %c128_250] : memref<8x3200xf32, #tpu.memory_space<vmem>>, vector<8x2560xf32>
    %388 = vector.broadcast %381 : vector<1x2560xf32> to vector<8x2560xf32>
    %389 = arith.mulf %385, %388 : vector<8x2560xf32>
    %390 = vector.broadcast %382 : vector<1x2560xf32> to vector<8x2560xf32>
    %391 = arith.addf %389, %390 : vector<8x2560xf32>
    %392 = arith.mulf %391, %386 : vector<8x2560xf32>
    %393 = vector.broadcast %383 : vector<1x2560xf32> to vector<8x2560xf32>
    %394 = arith.mulf %385, %393 : vector<8x2560xf32>
    %395 = vector.broadcast %384 : vector<1x2560xf32> to vector<8x2560xf32>
    %396 = arith.addf %394, %395 : vector<8x2560xf32>
    %397 = arith.mulf %396, %387 : vector<8x2560xf32>
    %398 = arith.addf %392, %397 : vector<8x2560xf32>
    %c0_251 = arith.constant 0 : index
    %c0_252 = arith.constant 0 : index
    %399 = vector.load %arg5[%c0_251, %c0_252] : memref<8x3328xf32, #tpu.memory_space<vmem>>, vector<8x2560xf32>
    tpu.vector_store %arg5[%c0_251, %c0_252], %398 {strides = array<i32>} : memref<8x3328xf32, #tpu.memory_space<vmem>>, vector<8x2560xf32>,
    %c26 = arith.constant 26 : index
    %c0_253 = arith.constant 0 : index
    %400 = vector.load %arg2[%c26, %c0_253] : memref<34x3328xf32, #tpu.memory_space<vmem>>, vector<1x2432xf32>
    %c27 = arith.constant 27 : index
    %c0_254 = arith.constant 0 : index
    %401 = vector.load %arg2[%c27, %c0_254] : memref<34x3328xf32, #tpu.memory_space<vmem>>, vector<1x2432xf32>
    %c28 = arith.constant 28 : index
    %c0_255 = arith.constant 0 : index
    %402 = vector.load %arg2[%c28, %c0_255] : memref<34x3328xf32, #tpu.memory_space<vmem>>, vector<1x2432xf32>
    %c29 = arith.constant 29 : index
    %c0_256 = arith.constant 0 : index
    %403 = vector.load %arg2[%c29, %c0_256] : memref<34x3328xf32, #tpu.memory_space<vmem>>, vector<1x2432xf32>
    %c0_257 = arith.constant 0 : index
    %c0_258 = arith.constant 0 : index
    %404 = vector.load %arg7[%c0_257, %c0_258] : memref<8x3200xf32, #tpu.memory_space<vmem>>, vector<8x2432xf32>
    %c0_259 = arith.constant 0 : index
    %c0_260 = arith.constant 0 : index
    %405 = vector.load %arg5[%c0_259, %c0_260] : memref<8x3328xf32, #tpu.memory_space<vmem>>, vector<8x2432xf32>
    %c0_261 = arith.constant 0 : index
    %c128_262 = arith.constant 128 : index
    %406 = vector.load %arg5[%c0_261, %c128_262] : memref<8x3328xf32, #tpu.memory_space<vmem>>, vector<8x2432xf32>
    %407 = vector.broadcast %400 : vector<1x2432xf32> to vector<8x2432xf32>
    %408 = arith.mulf %404, %407 : vector<8x2432xf32>
    %409 = vector.broadcast %401 : vector<1x2432xf32> to vector<8x2432xf32>
    %410 = arith.addf %408, %409 : vector<8x2432xf32>
    %411 = arith.mulf %410, %405 : vector<8x2432xf32>
    %412 = vector.broadcast %402 : vector<1x2432xf32> to vector<8x2432xf32>
    %413 = arith.mulf %404, %412 : vector<8x2432xf32>
    %414 = vector.broadcast %403 : vector<1x2432xf32> to vector<8x2432xf32>
    %415 = arith.addf %413, %414 : vector<8x2432xf32>
    %416 = arith.mulf %415, %406 : vector<8x2432xf32>
    %417 = arith.addf %411, %416 : vector<8x2432xf32>
    %c0_263 = arith.constant 0 : index
    %c0_264 = arith.constant 0 : index
    %418 = vector.load %arg6[%c0_263, %c0_264] : memref<8x3200xf32, #tpu.memory_space<vmem>>, vector<8x2432xf32>
    tpu.vector_store %arg6[%c0_263, %c0_264], %417 {strides = array<i32>} : memref<8x3200xf32, #tpu.memory_space<vmem>>, vector<8x2432xf32>,
    %c30 = arith.constant 30 : index
    %c0_265 = arith.constant 0 : index
    %419 = vector.load %arg2[%c30, %c0_265] : memref<34x3328xf32, #tpu.memory_space<vmem>>, vector<1x2304xf32>
    %c31 = arith.constant 31 : index
    %c0_266 = arith.constant 0 : index
    %420 = vector.load %arg2[%c31, %c0_266] : memref<34x3328xf32, #tpu.memory_space<vmem>>, vector<1x2304xf32>
    %c32 = arith.constant 32 : index
    %c0_267 = arith.constant 0 : index
    %421 = vector.load %arg2[%c32, %c0_267] : memref<34x3328xf32, #tpu.memory_space<vmem>>, vector<1x2304xf32>
    %c33 = arith.constant 33 : index
    %c0_268 = arith.constant 0 : index
    %422 = vector.load %arg2[%c33, %c0_268] : memref<34x3328xf32, #tpu.memory_space<vmem>>, vector<1x2304xf32>
    %c0_269 = arith.constant 0 : index
    %c0_270 = arith.constant 0 : index
    %423 = vector.load %arg7[%c0_269, %c0_270] : memref<8x3200xf32, #tpu.memory_space<vmem>>, vector<8x2304xf32>
    %c0_271 = arith.constant 0 : index
    %c0_272 = arith.constant 0 : index
    %424 = vector.load %arg6[%c0_271, %c0_272] : memref<8x3200xf32, #tpu.memory_space<vmem>>, vector<8x2304xf32>
    %c0_273 = arith.constant 0 : index
    %c128_274 = arith.constant 128 : index
    %425 = vector.load %arg6[%c0_273, %c128_274] : memref<8x3200xf32, #tpu.memory_space<vmem>>, vector<8x2304xf32>
    %426 = vector.broadcast %419 : vector<1x2304xf32> to vector<8x2304xf32>
    %427 = arith.mulf %423, %426 : vector<8x2304xf32>
    %428 = vector.broadcast %420 : vector<1x2304xf32> to vector<8x2304xf32>
    %429 = arith.addf %427, %428 : vector<8x2304xf32>
    %430 = arith.mulf %429, %424 : vector<8x2304xf32>
    %431 = vector.broadcast %421 : vector<1x2304xf32> to vector<8x2304xf32>
    %432 = arith.mulf %423, %431 : vector<8x2304xf32>
    %433 = vector.broadcast %422 : vector<1x2304xf32> to vector<8x2304xf32>
    %434 = arith.addf %432, %433 : vector<8x2304xf32>
    %435 = arith.mulf %434, %425 : vector<8x2304xf32>
    %436 = arith.addf %430, %435 : vector<8x2304xf32>
    %c0_275 = arith.constant 0 : index
    %c0_276 = arith.constant 0 : index
    %437 = vector.load %arg5[%c0_275, %c0_276] : memref<8x3328xf32, #tpu.memory_space<vmem>>, vector<8x2304xf32>
    tpu.vector_store %arg5[%c0_275, %c0_276], %436 {strides = array<i32>} : memref<8x3328xf32, #tpu.memory_space<vmem>>, vector<8x2304xf32>,
    %438 = arith.negf %0 : vector<8x128xf32>
    %439 = math.exp %438 : vector<8x128xf32>
    %cst = arith.constant 1.000000e+00 : f32
    %440 = vector.broadcast %cst : f32 to vector<8x128xf32>
    %441 = arith.addf %440, %439 : vector<8x128xf32>
    %442 = arith.divf %440, %441 : vector<8x128xf32>
    %443 = arith.mulf %0, %442 : vector<8x128xf32>
    %c0_277 = arith.constant 0 : index
    %c2304_278 = arith.constant 2304 : index
    %444 = vector.load %arg5[%c0_277, %c2304_278] : memref<8x3328xf32, #tpu.memory_space<vmem>>, vector<8x128xf32>
    tpu.vector_store %arg5[%c0_277, %c2304_278], %443 {strides = array<i32>} : memref<8x3328xf32, #tpu.memory_space<vmem>>, vector<8x128xf32>,
    %c0_279 = arith.constant 0 : index
    %c0_280 = arith.constant 0 : index
    %445 = vector.load %arg5[%c0_279, %c0_280] : memref<8x3328xf32, #tpu.memory_space<vmem>>, vector<8x2432xf32>
    %446 = arith.truncf %445 : vector<8x2432xf32> to vector<8x2432xbf16>
    %c0_281 = arith.constant 0 : index
    %c0_282 = arith.constant 0 : index
    %447 = vector.load %arg3[%c0_281, %c0_282] : memref<2432x128xbf16, #tpu.memory_space<vmem>>, vector<2432x128xbf16>
    %cst_283 = arith.constant dense<0.000000e+00> : vector<8x128xf32>
    %448 = tpu.matmul %446, %447, %cst_283 {dimension_numbers = #tpu.dot_dimension_numbers<[1], [0], [0], [1], [0, 0, 1, 1], [], []>} : vector<8x2432xbf16>, vector<2432x128xbf16>, vector<8x128xf32> -> vector<8x128xf32>
    %c0_284 = arith.constant 0 : index
    %c0_285 = arith.constant 0 : index
    %449 = vector.load %arg4[%c0_284, %c0_285] : memref<8x128xf32, #tpu.memory_space<vmem>>, vector<8x128xf32>
    tpu.vector_store %arg4[%c0_284, %c0_285], %448 {strides = array<i32>} : memref<8x128xf32, #tpu.memory_space<vmem>>, vector<8x128xf32>,
    return
  }
  func.func @transform_0(%arg0: i32) -> (i32, i32) {
    %c0_i32 = arith.constant 0 : i32
    %c0_i32_0 = arith.constant 0 : i32
    return %arg0, %c0_i32 : i32, i32
  }
  func.func @transform_1(%arg0: i32) -> (i32, i32) {
    %c0_i32 = arith.constant 0 : i32
    %c0_i32_0 = arith.constant 0 : i32
    %c0_i32_1 = arith.constant 0 : i32
    return %c0_i32, %c0_i32_0 : i32, i32
  }
  func.func @transform_2(%arg0: i32) -> (i32, i32) {
    %c0_i32 = arith.constant 0 : i32
    %c0_i32_0 = arith.constant 0 : i32
    %c0_i32_1 = arith.constant 0 : i32
    return %c0_i32, %c0_i32_0 : i32, i32
  }
  func.func @transform_3(%arg0: i32) -> (i32, i32) {
    %c0_i32 = arith.constant 0 : i32
    %c0_i32_0 = arith.constant 0 : i32
    return %arg0, %c0_i32 : i32, i32
  }
}

</mosaic_0001>

<llo_original>
// kernel: tpu_custom_call.1
$region0: #{tpu_custom_call.1}
  #allocation0 [shape = 'u32[]', space=smem, size = 0x4, offset = 0x4, fixed_abs, tag = 'smem constant byte address 0x4 - core index']
  #allocation1 [shape = 'u32[72,128]{1,0:T(1,128)}', space=vmem, size = 0x9000, scoped, tag = 'internal scratch']
  #allocation2 [shape = 'f32[8,3328]{1,0:T(8,128)}', space=vmem, size = 0x1a000, scoped, tag = 'scratch operand']
  #allocation3 [shape = 'f32[8,3200]{1,0:T(8,128)}', space=vmem, size = 0x19000, scoped, tag = 'scratch operand']
  #allocation4 [shape = 'f32[8,3200]{1,0:T(8,128)}', space=vmem, size = 0x19000, scoped, tag = 'scratch operand']
  %s0 = inlined_call_operand.hbm [shape: f32[16,128], index: 0, kind: input, shape index: {}]
  %s1 = inlined_call_operand.hbm [shape: f32[34,3328], index: 1, kind: input, shape index: {}]
  %s2 = inlined_call_operand.hbm [shape: bf16[2432,128], index: 2, kind: input, shape index: {}]
  %s3 = inlined_call_operand.hbm [shape: f32[16,128], index: 3, kind: output, shape index: {}]
  %s4 = sld [smem:[#allocation0]]
  $region57: #{tpu_custom_call.1} parent=0
    _
  %s6 = ssub.s32 1, %s4
  %s7 = scalar_select 0, %s6, %s4
  $region1: #{tpu_custom_call.1} parent=0
    #allocation5 [shape = 'u8[8192]{0}', space=vmem, size = 0x2000, scoped, tag = 'input window, operand 0']
    #allocation6 [shape = 's32[2]{0}', space=sflag, size = 0x8, scoped, tag = 'scoped memory for tpu_custom_call.1']
    #allocation7 [shape = 's32[2]{0}', space=sflag, size = 0x8, scoped, tag = 'scoped memory for tpu_custom_call.1']
    #allocation8 [shape = 'u8[532480]{0}', space=vmem, size = 0x82000, scoped, tag = 'input window, operand 1, single buffered']
    #allocation9 [shape = 's32[1]{0}', space=sflag, size = 0x4, scoped, tag = 'scoped memory for tpu_custom_call.1']
    #allocation10 [shape = 'u8[622592]{0}', space=vmem, size = 0x98000, scoped, tag = 'input window, operand 2, single buffered']
    #allocation11 [shape = 'u8[8192]{0}', space=vmem, size = 0x2000, scoped, tag = 'output window, operand 0']
    %8 = vsyncpa [#allocation6], 0
    %s9 = scalar_lea.sflag [#allocation6], 1
    %10 = vsyncpa %s9, 0
    %11 = vsyncpa [#allocation9], 0
    %12 = vsyncpa [#allocation7], 0
    %s13 = scalar_lea.sflag [#allocation7], 1
    %14 = vsyncpa %s13, 0
    loop: start=0, step=1, limit=4
    $region2: #{tpu_custom_call.1} parent=1 // loop_pre_header
      _
    $region3: #{tpu_custom_call.1} parent=1 // loop_header
      %s16 = sphi 0, %s20
      %p17 = scmp.ge.s32.totalorder %s16, 4
      %s26 = sphi 0, %s28
      %s29 = sphi 0, %s26
      %s30 = sphi 0, %s29
      %s46 = sphi 0, %s30
      %s50 = sphi 0, %s50
      %s52 = sphi 0, %s50
      %s53 = sphi 0, %s52
      %s67 = sphi 0, %s53
      %s71 = sphi 0, %s71
      %s73 = sphi 0, %s71
      %s74 = sphi 0, %s73
      %s88 = sphi 0, %s74
      %s94 = sphi 0, %s96
      %s97 = sphi 0, %s94
      %s98 = sphi 0, %s97
      %s114 = sphi 0, %s98
    $region4: #{tpu_custom_call.1} parent=1 // loop_header_branch
      %19 = sbr.rel (%p17) target = $region8
    $region5: #{tpu_custom_call.1} parent=1 // loop_body
      %s21 = ssub.s32 %s16, 1
      %s22 = ssub.s32 %s16, 2
      %s23 = sadd.s32 %s16, 1
      %s24 = ssub.s32 %s16, %s23
      %p25 = scmp.eq.s32.totalorder %s24, 0
      %s27 = sadd.s32 %s26, 1
      %s28 = scalar_select %p25, %s26, %s27
      %p31 = pneg %p25
      %p32 = scmp.eq.s32.totalorder %s16, 1
      %p33 = por %p31, %p32
      %p34 = scmp.ne.s32.totalorder %s26, %s29
      %p35 = scmp.eq.s32.totalorder %s16, 0
      %p36 = por %p34, %p35
      %p37 = scmp.ne.s32.totalorder %s26, %s29
      %p38 = scmp.eq.s32.totalorder %s21, 1
      %p39 = por %p37, %p38
      %p40 = scmp.ne.s32.totalorder %s29, %s30
      %p41 = scmp.eq.s32.totalorder %s21, 0
      %p42 = por %p40, %p41
      %p43 = scmp.ne.s32.totalorder %s29, %s30
      %p44 = scmp.eq.s32.totalorder %s22, 1
      %p45 = por %p43, %p44
      %p47 = scmp.ne.s32.totalorder %s30, %s46
      %p48 = scmp.eq.s32.totalorder %s22, 0
      %p49 = por %p47, %p48
      %s51 = sadd.s32 %s50, 1
      %p54 = scmp.eq.s32.totalorder %s16, 1
      %p55 = scmp.ne.s32.totalorder %s50, %s52
      %p56 = scmp.eq.s32.totalorder %s16, 0
      %p57 = por %p55, %p56
      %p58 = scmp.ne.s32.totalorder %s50, %s52
      %p59 = scmp.eq.s32.totalorder %s21, 1
      %p60 = por %p58, %p59
      %p61 = scmp.ne.s32.totalorder %s52, %s53
      %p62 = scmp.eq.s32.totalorder %s21, 0
      %p63 = por %p61, %p62
      %p64 = scmp.ne.s32.totalorder %s52, %s53
      %p65 = scmp.eq.s32.totalorder %s22, 1
      %p66 = por %p64, %p65
      %p68 = scmp.ne.s32.totalorder %s53, %s67
      %p69 = scmp.eq.s32.totalorder %s22, 0
      %p70 = por %p68, %p69
      %s72 = sadd.s32 %s71, 1
      %p75 = scmp.eq.s32.totalorder %s16, 1
      %p76 = scmp.ne.s32.totalorder %s71, %s73
      %p77 = scmp.eq.s32.totalorder %s16, 0
      %p78 = por %p76, %p77
      %p79 = scmp.ne.s32.totalorder %s71, %s73
      %p80 = scmp.eq.s32.totalorder %s21, 1
      %p81 = por %p79, %p80
      %p82 = scmp.ne.s32.totalorder %s73, %s74
      %p83 = scmp.eq.s32.totalorder %s21, 0
      %p84 = por %p82, %p83
      %p85 = scmp.ne.s32.totalorder %s73, %s74
      %p86 = scmp.eq.s32.totalorder %s22, 1
      %p87 = por %p85, %p86
      %p89 = scmp.ne.s32.totalorder %s74, %s88
      %p90 = scmp.eq.s32.totalorder %s22, 0
      %p91 = por %p89, %p90
      %s92 = ssub.s32 %s16, %s23
      %p93 = scmp.eq.s32.totalorder %s92, 0
      %s95 = sadd.s32 %s94, 1
      %s96 = scalar_select %p93, %s94, %s95
      %p99 = pneg %p93
      %p100 = scmp.eq.s32.totalorder %s16, 1
      %p101 = por %p99, %p100
      %p102 = scmp.ne.s32.totalorder %s94, %s97
      %p103 = scmp.eq.s32.totalorder %s16, 0
      %p104 = por %p102, %p103
      %p105 = scmp.ne.s32.totalorder %s94, %s97
      %p106 = scmp.eq.s32.totalorder %s21, 1
      %p107 = por %p105, %p106
      %p108 = scmp.ne.s32.totalorder %s97, %s98
      %p109 = scmp.eq.s32.totalorder %s21, 0
      %p110 = por %p108, %p109
      %p111 = scmp.ne.s32.totalorder %s97, %s98
      %p112 = scmp.eq.s32.totalorder %s22, 1
      %p113 = por %p111, %p112
      %p115 = scmp.ne.s32.totalorder %s98, %s114
      %p116 = scmp.eq.s32.totalorder %s22, 0
      %p117 = por %p115, %p116
      %p118 = scmp.le.s32.totalorder 1, %s16
      %p119 = scmp.lt.s32.totalorder %s16, 3
      %p120 = pnand %p118, %p119
      %p121 = pneg %p120
      // Predicated region
      $region9: #{tpu_custom_call.1} parent=5 // pred_check
        _
      $region10: #{tpu_custom_call.1} parent=5 // pred_check_branch
        %123 = sbr.rel (%p120) target = $region12
      $region11: #{tpu_custom_call.1} parent=5 // pred_region
        %s124 = ssub.s32 %s16, 1
        // Predicated region
        $region13: #{tpu_custom_call.1} parent=11 // pred_check
          %p125 = pneg %p63
        $region14: #{tpu_custom_call.1} parent=11 // pred_check_branch
          %127 = sbr.rel (%p125) target = $region16
        $region15: #{tpu_custom_call.1} parent=11 // pred_region
          %129 = vsyncadd [#allocation9], 0
          %s130 = sshll.u32 %s1, 4
          %s131 = int_to_ptr.hbm [resolvable:$true] %s130
          %s132 = sshll.u32 [#allocation8], 4
          %s133 = int_to_ptr.vmem [resolvable:$true] %s132
          %138 = dma.hbm_to_vmem [thread:$0]  %s131, 16640, %s133, [#allocation9], 3328, 3328, 208
        $region16: #{tpu_custom_call.1} parent=11 // pred_fallthru
          _
        // Predicated region
        $region17: #{tpu_custom_call.1} parent=11 // pred_check
          %p139 = pneg %p84
        $region18: #{tpu_custom_call.1} parent=11 // pred_check_branch
          %141 = sbr.rel (%p139) target = $region20
        $region19: #{tpu_custom_call.1} parent=11 // pred_region
          %143 = vsyncadd [#allocation9], 0
          %s144 = sshll.u32 %s2, 4
          %s145 = int_to_ptr.hbm [resolvable:$true] %s144
          %s146 = sshll.u32 [#allocation10], 4
          %s147 = int_to_ptr.vmem [resolvable:$true] %s146
          %152 = dma.hbm_to_vmem [thread:$0]  %s145, 19456, %s147, [#allocation9], 64, 64, 4
        $region20: #{tpu_custom_call.1} parent=11 // pred_fallthru
          _
      $region12: #{tpu_custom_call.1} parent=5 // pred_fallthru
        _
      %p153 = scmp.lt.s32.totalorder %s16, 2
      // Predicated region
      $region21: #{tpu_custom_call.1} parent=5 // pred_check
        %p154 = pneg %p153
      $region22: #{tpu_custom_call.1} parent=5 // pred_check_branch
        %156 = sbr.rel (%p154) target = $region24
      $region23: #{tpu_custom_call.1} parent=5 // pred_region
        // Predicated region
        $region25: #{tpu_custom_call.1} parent=23 // pred_check
          %p157 = pneg %p36
        $region26: #{tpu_custom_call.1} parent=23 // pred_check_branch
          %159 = sbr.rel (%p157) target = $region28
        $region27: #{tpu_custom_call.1} parent=23 // pred_region
          %s160 = sand.u32 %s26, 1
          %s161 = scalar_lea.sflag [#allocation6], %s160
          %s162 = sand.u32 %s26, 1
          %s163 = smul.addr %s162, 8
          %s164 = scalar_lea.vmem [#allocation5], %s163
          %166 = vsyncadd %s161, 0
          %s167 = smul.addr %s16, 8
          %s168 = scalar_lea.hbm %s0, %s167
          %s170 = sshll.u32 %s168, 4
          %s171 = int_to_ptr.hbm [resolvable:$true] %s170
          %s172 = sshll.u32 %s164, 4
          %s173 = int_to_ptr.vmem [resolvable:$true] %s172
          %175 = dma.hbm_to_vmem [thread:$0]  %s171, 128, %s173, %s161
        $region28: #{tpu_custom_call.1} parent=23 // pred_fallthru
          _
      $region24: #{tpu_custom_call.1} parent=5 // pred_fallthru
        _
      %p176 = scmp.le.s32.totalorder 1, %s16
      %p177 = scmp.lt.s32.totalorder %s16, 3
      %p178 = pnand %p176, %p177
      %p179 = pneg %p178
      // Predicated region
      $region29: #{tpu_custom_call.1} parent=5 // pred_check
        _
      $region30: #{tpu_custom_call.1} parent=5 // pred_check_branch
        %181 = sbr.rel (%p178) target = $region32
      $region31: #{tpu_custom_call.1} parent=5 // pred_region
        %s182 = ssub.s32 %s16, 1
        %s183 = sand.u32 %s29, 1
        %s184 = scalar_lea.sflag [#allocation6], %s183
        %s185 = sand.u32 %s29, 1
        %s186 = smul.addr %s185, 8
        %s187 = scalar_lea.vmem [#allocation5], %s186
        // Predicated region
        $region33: #{tpu_custom_call.1} parent=31 // pred_check
          %p188 = pneg %p42
        $region34: #{tpu_custom_call.1} parent=31 // pred_check_branch
          %190 = sbr.rel (%p188) target = $region36
        $region35: #{tpu_custom_call.1} parent=31 // pred_region
          %192 = dma.done %s184, 128
        $region36: #{tpu_custom_call.1} parent=31 // pred_fallthru
          _
        // Predicated region
        $region37: #{tpu_custom_call.1} parent=31 // pred_check
          %p193 = pneg %p63
        $region38: #{tpu_custom_call.1} parent=31 // pred_check_branch
          %195 = sbr.rel (%p193) target = $region40
        $region39: #{tpu_custom_call.1} parent=31 // pred_region
          %197 = dma.done [#allocation9], 16640
        $region40: #{tpu_custom_call.1} parent=31 // pred_fallthru
          _
        // Predicated region
        $region41: #{tpu_custom_call.1} parent=31 // pred_check
          %p198 = pneg %p84
        $region42: #{tpu_custom_call.1} parent=31 // pred_check_branch
          %200 = sbr.rel (%p198) target = $region44
        $region43: #{tpu_custom_call.1} parent=31 // pred_region
          %202 = dma.done [#allocation9], 19456
        $region44: #{tpu_custom_call.1} parent=31 // pred_fallthru
          _
        %s203 = sand.u32 %s29, 1
        %s204 = scalar_lea.sflag [#allocation6], %s203
        %s205 = sand.u32 %s29, 1
        %s206 = smul.addr %s205, 8
        %s207 = scalar_lea.vmem [#allocation5], %s206
        %p208 = pneg %p42
        %p209 = pneg %p39
        %p210 = pneg %p63
        %p211 = pneg %p60
        %p212 = pneg %p84
        %p213 = pneg %p81
        %p214 = pneg %p110
        %p215 = pneg %p107
        %s216 = sand.u32 %s97, 1
        %s217 = scalar_lea.sflag [#allocation7], %s216
        %s218 = sand.u32 %s97, 1
        %s219 = smul.addr %s218, 8
        %s220 = scalar_lea.vmem [#allocation11], %s219
        %v221 = vld [vmem:[%s187] sm:$0xff]
        %v222 = vld [vmem:[#allocation8] ss:$0 sm:$0xff]
        %v223 = vld [vmem:[#allocation8 + $0x1] ss:$0 sm:$0xff]
        %vm224 = vcmp.ge.f32.partialorder %v221, %v222
        %vm225 = vcmp.lt.f32.partialorder %v221, %v223
        %vm226 = vmand %vm224, %vm225
        %v227 = vsel %vm226, 1, 0
        %v228 = vcvt.s32.f32 %v227
        %229 = vst [vmem:[#allocation2] sm:$0xff] %v228
        %230 = vst [vmem:[#allocation4] sm:$0xff] %v221
        %v231 = vld [vmem:[#allocation8 + $0x8] ss:$0 sm:$0xff]
        %v232 = vld [vmem:[#allocation8 + $0x9] ss:$0 sm:$0xff]
        %vm233 = vcmp.ge.f32.partialorder %v221, %v231
        %vm234 = vcmp.lt.f32.partialorder %v221, %v232
        %vm235 = vmand %vm233, %vm234
        %v236 = vsel %vm235, 1, 0
        %v237 = vcvt.s32.f32 %v236
        %238 = vst [vmem:[#allocation2 + $0x8] sm:$0xff] %v237
        %239 = vst [vmem:[#allocation4 + $0x8] sm:$0xff] %v221
        %v240 = vld [vmem:[#allocation8 + $0x10] ss:$0 sm:$0xff]
        %v241 = vld [vmem:[#allocation8 + $0x11] ss:$0 sm:$0xff]
        %vm242 = vcmp.ge.f32.partialorder %v221, %v240
        %vm243 = vcmp.lt.f32.partialorder %v221, %v241
        %vm244 = vmand %vm242, %vm243
        %v245 = vsel %vm244, 1, 0
        %v246 = vcvt.s32.f32 %v245
        %247 = vst [vmem:[#allocation2 + $0x10] sm:$0xff] %v246
        %248 = vst [vmem:[#allocation4 + $0x10] sm:$0xff] %v221
        %v249 = vld [vmem:[#allocation8 + $0x18] ss:$0 sm:$0xff]
        %v250 = vld [vmem:[#allocation8 + $0x19] ss:$0 sm:$0xff]
        %vm251 = vcmp.ge.f32.partialorder %v221, %v249
        %vm252 = vcmp.lt.f32.partialorder %v221, %v250
        %vm253 = vmand %vm251, %vm252
        %v254 = vsel %vm253, 1, 0
        %v255 = vcvt.s32.f32 %v254
        %256 = vst [vmem:[#allocation2 + $0x18] sm:$0xff] %v255
        %257 = vst [vmem:[#allocation4 + $0x18] sm:$0xff] %v221
        %v258 = vld [vmem:[#allocation8 + $0x20] ss:$0 sm:$0xff]
        %v259 = vld [vmem:[#allocation8 + $0x21] ss:$0 sm:$0xff]
        %vm260 = vcmp.ge.f32.partialorder %v221, %v258
        %vm261 = vcmp.lt.f32.partialorder %v221, %v259
        %vm262 = vmand %vm260, %vm261
        %v263 = vsel %vm262, 1, 0
        %v264 = vcvt.s32.f32 %v263
        %265 = vst [vmem:[#allocation2 + $0x20] sm:$0xff] %v264
        %266 = vst [vmem:[#allocation4 + $0x20] sm:$0xff] %v221
        %v267 = vld [vmem:[#allocation8 + $0x28] ss:$0 sm:$0xff]
        %v268 = vld [vmem:[#allocation8 + $0x29] ss:$0 sm:$0xff]
        %vm269 = vcmp.ge.f32.partialorder %v221, %v267
        %vm270 = vcmp.lt.f32.partialorder %v221, %v268
        %vm271 = vmand %vm269, %vm270
        %v272 = vsel %vm271, 1, 0
        %v273 = vcvt.s32.f32 %v272
        %274 = vst [vmem:[#allocation2 + $0x28] sm:$0xff] %v273
        %275 = vst [vmem:[#allocation4 + $0x28] sm:$0xff] %v221
        %v276 = vld [vmem:[#allocation8 + $0x30] ss:$0 sm:$0xff]
        %v277 = vld [vmem:[#allocation8 + $0x31] ss:$0 sm:$0xff]
        %vm278 = vcmp.ge.f32.partialorder %v221, %v276
        %vm279 = vcmp.lt.f32.partialorder %v221, %v277
        %vm280 = vmand %vm278, %vm279
        %v281 = vsel %vm280, 1, 0
        %v282 = vcvt.s32.f32 %v281
        %283 = vst [vmem:[#allocation2 + $0x30] sm:$0xff] %v282
        %284 = vst [vmem:[#allocation4 + $0x30] sm:$0xff] %v221
        %v285 = vld [vmem:[#allocation8 + $0x38] ss:$0 sm:$0xff]
        %v286 = vld [vmem:[#allocation8 + $0x39] ss:$0 sm:$0xff]
        %vm287 = vcmp.ge.f32.partialorder %v221, %v285
        %vm288 = vcmp.lt.f32.partialorder %v221, %v286
        %vm289 = vmand %vm287, %vm288
        %v290 = vsel %vm289, 1, 0
        %v291 = vcvt.s32.f32 %v290
        %292 = vst [vmem:[#allocation2 + $0x38] sm:$0xff] %v291
        %293 = vst [vmem:[#allocation4 + $0x38] sm:$0xff] %v221
        %v294 = vld [vmem:[#allocation8 + $0x40] ss:$0 sm:$0xff]
        %v295 = vld [vmem:[#allocation8 + $0x41] ss:$0 sm:$0xff]
        %vm296 = vcmp.ge.f32.partialorder %v221, %v294
        %vm297 = vcmp.lt.f32.partialorder %v221, %v295
        %vm298 = vmand %vm296, %vm297
        %v299 = vsel %vm298, 1, 0
        %v300 = vcvt.s32.f32 %v299
        %301 = vst [vmem:[#allocation2 + $0x40] sm:$0xff] %v300
        %302 = vst [vmem:[#allocation4 + $0x40] sm:$0xff] %v221
        %v303 = vld [vmem:[#allocation8 + $0x48] ss:$0 sm:$0xff]
        %v304 = vld [vmem:[#allocation8 + $0x49] ss:$0 sm:$0xff]
        %vm305 = vcmp.ge.f32.partialorder %v221, %v303
        %vm306 = vcmp.lt.f32.partialorder %v221, %v304
        %vm307 = vmand %vm305, %vm306
        %v308 = vsel %vm307, 1, 0
        %v309 = vcvt.s32.f32 %v308
        %310 = vst [vmem:[#allocation2 + $0x48] sm:$0xff] %v309
        %311 = vst [vmem:[#allocation4 + $0x48] sm:$0xff] %v221
        %v312 = vld [vmem:[#allocation8 + $0x50] ss:$0 sm:$0xff]
        %v313 = vld [vmem:[#allocation8 + $0x51] ss:$0 sm:$0xff]
        %vm314 = vcmp.ge.f32.partialorder %v221, %v312
        %vm315 = vcmp.lt.f32.partialorder %v221, %v313
        %vm316 = vmand %vm314, %vm315
        %v317 = vsel %vm316, 1, 0
        %v318 = vcvt.s32.f32 %v317
        %319 = vst [vmem:[#allocation2 + $0x50] sm:$0xff] %v318
        %320 = vst [vmem:[#allocation4 + $0x50] sm:$0xff] %v221
        %v321 = vld [vmem:[#allocation8 + $0x58] ss:$0 sm:$0xff]
        %v322 = vld [vmem:[#allocation8 + $0x59] ss:$0 sm:$0xff]
        %vm323 = vcmp.ge.f32.partialorder %v221, %v321
        %vm324 = vcmp.lt.f32.partialorder %v221, %v322
        %vm325 = vmand %vm323, %vm324
        %v326 = vsel %vm325, 1, 0
        %v327 = vcvt.s32.f32 %v326
        %328 = vst [vmem:[#allocation2 + $0x58] sm:$0xff] %v327
        %329 = vst [vmem:[#allocation4 + $0x58] sm:$0xff] %v221
        %v330 = vld [vmem:[#allocation8 + $0x60] ss:$0 sm:$0xff]
        %v331 = vld [vmem:[#allocation8 + $0x61] ss:$0 sm:$0xff]
        %vm332 = vcmp.ge.f32.partialorder %v221, %v330
        %vm333 = vcmp.lt.f32.partialorder %v221, %v331
        %vm334 = vmand %vm332, %vm333
        %v335 = vsel %vm334, 1, 0
        %v336 = vcvt.s32.f32 %v335
        %337 = vst [vmem:[#allocation2 + $0x60] sm:$0xff] %v336
        %338 = vst [vmem:[#allocation4 + $0x60] sm:$0xff] %v221
        %v339 = vld [vmem:[#allocation8 + $0x68] ss:$0 sm:$0xff]
        %v340 = vld [vmem:[#allocation8 + $0x69] ss:$0 sm:$0xff]
        %vm341 = vcmp.ge.f32.partialorder %v221, %v339
        %vm342 = vcmp.lt.f32.partialorder %v221, %v340
        %vm343 = vmand %vm341, %vm342
        %v344 = vsel %vm343, 1, 0
        %v345 = vcvt.s32.f32 %v344
        %346 = vst [vmem:[#allocation2 + $0x68] sm:$0xff] %v345
        %347 = vst [vmem:[#allocation4 + $0x68] sm:$0xff] %v221
        %v348 = vld [vmem:[#allocation8 + $0x70] ss:$0 sm:$0xff]
        %v349 = vld [vmem:[#allocation8 + $0x71] ss:$0 sm:$0xff]
        %vm350 = vcmp.ge.f32.partialorder %v221, %v348
        %vm351 = vcmp.lt.f32.partialorder %v221, %v349
        %vm352 = vmand %vm350, %vm351
        %v353 = vsel %vm352, 1, 0
        %v354 = vcvt.s32.f32 %v353
        %355 = vst [vmem:[#allocation2 + $0x70] sm:$0xff] %v354
        %356 = vst [vmem:[#allocation4 + $0x70] sm:$0xff] %v221
        %v357 = vld [vmem:[#allocation8 + $0x78] ss:$0 sm:$0xff]
        %v358 = vld [vmem:[#allocation8 + $0x79] ss:$0 sm:$0xff]
        %vm359 = vcmp.ge.f32.partialorder %v221, %v357
        %vm360 = vcmp.lt.f32.partialorder %v221, %v358
        %vm361 = vmand %vm359, %vm360
        %v362 = vsel %vm361, 1, 0
        %v363 = vcvt.s32.f32 %v362
        %364 = vst [vmem:[#allocation2 + $0x78] sm:$0xff] %v363
        %365 = vst [vmem:[#allocation4 + $0x78] sm:$0xff] %v221
        %v366 = vld [vmem:[#allocation8 + $0x80] ss:$0 sm:$0xff]
        %v367 = vld [vmem:[#allocation8 + $0x81] ss:$0 sm:$0xff]
        %vm368 = vcmp.ge.f32.partialorder %v221, %v366
        %vm369 = vcmp.lt.f32.partialorder %v221, %v367
        %vm370 = vmand %vm368, %vm369
        %v371 = vsel %vm370, 1, 0
        %v372 = vcvt.s32.f32 %v371
        %373 = vst [vmem:[#allocation2 + $0x80] sm:$0xff] %v372
        %374 = vst [vmem:[#allocation4 + $0x80] sm:$0xff] %v221
        %v375 = vld [vmem:[#allocation8 + $0x88] ss:$0 sm:$0xff]
        %v376 = vld [vmem:[#allocation8 + $0x89] ss:$0 sm:$0xff]
        %vm377 = vcmp.ge.f32.partialorder %v221, %v375
        %vm378 = vcmp.lt.f32.partialorder %v221, %v376
        %vm379 = vmand %vm377, %vm378
        %v380 = vsel %vm379, 1, 0
        %v381 = vcvt.s32.f32 %v380
        %382 = vst [vmem:[#allocation2 + $0x88] sm:$0xff] %v381
        %383 = vst [vmem:[#allocation4 + $0x88] sm:$0xff] %v221
        %v384 = vld [vmem:[#allocation8 + $0x90] ss:$0 sm:$0xff]
        %v385 = vld [vmem:[#allocation8 + $0x91] ss:$0 sm:$0xff]
        %vm386 = vcmp.ge.f32.partialorder %v221, %v384
        %vm387 = vcmp.lt.f32.partialorder %v221, %v385
        %vm388 = vmand %vm386, %vm387
        %v389 = vsel %vm388, 1, 0
        %v390 = vcvt.s32.f32 %v389
        %391 = vst [vmem:[#allocation2 + $0x90] sm:$0xff] %v390
        %392 = vst [vmem:[#allocation4 + $0x90] sm:$0xff] %v221
        %v393 = vld [vmem:[#allocation8 + $0x98] ss:$0 sm:$0xff]
        %v394 = vld [vmem:[#allocation8 + $0x99] ss:$0 sm:$0xff]
        %vm395 = vcmp.ge.f32.partialorder %v221, %v393
        %vm396 = vcmp.lt.f32.partialorder %v221, %v394
        %vm397 = vmand %vm395, %vm396
        %v398 = vsel %vm397, 1, 0
        %v399 = vcvt.s32.f32 %v398
        %400 = vst [vmem:[#allocation2 + $0x98] sm:$0xff] %v399
        %401 = vst [vmem:[#allocation4 + $0x98] sm:$0xff] %v221
        %v402 = vld [vmem:[#allocation8 + $0xa0] ss:$0 sm:$0xff]
        %v403 = vld [vmem:[#allocation8 + $0xa1] ss:$0 sm:$0xff]
        %vm404 = vcmp.ge.f32.partialorder %v221, %v402
        %vm405 = vcmp.lt.f32.partialorder %v221, %v403
        %vm406 = vmand %vm404, %vm405
        %v407 = vsel %vm406, 1, 0
        %v408 = vcvt.s32.f32 %v407
        %409 = vst [vmem:[#allocation2 + $0xa0] sm:$0xff] %v408
        %410 = vst [vmem:[#allocation4 + $0xa0] sm:$0xff] %v221
        %v411 = vld [vmem:[#allocation8 + $0xa8] ss:$0 sm:$0xff]
        %v412 = vld [vmem:[#allocation8 + $0xa9] ss:$0 sm:$0xff]
        %vm413 = vcmp.ge.f32.partialorder %v221, %v411
        %vm414 = vcmp.lt.f32.partialorder %v221, %v412
        %vm415 = vmand %vm413, %vm414
        %v416 = vsel %vm415, 1, 0
        %v417 = vcvt.s32.f32 %v416
        %418 = vst [vmem:[#allocation2 + $0xa8] sm:$0xff] %v417
        %419 = vst [vmem:[#allocation4 + $0xa8] sm:$0xff] %v221
        %v420 = vld [vmem:[#allocation8 + $0xb0] ss:$0 sm:$0xff]
        %v421 = vld [vmem:[#allocation8 + $0xb1] ss:$0 sm:$0xff]
        %vm422 = vcmp.ge.f32.partialorder %v221, %v420
        %vm423 = vcmp.lt.f32.partialorder %v221, %v421
        %vm424 = vmand %vm422, %vm423
        %v425 = vsel %vm424, 1, 0
        %v426 = vcvt.s32.f32 %v425
        %427 = vst [vmem:[#allocation2 + $0xb0] sm:$0xff] %v426
        %428 = vst [vmem:[#allocation4 + $0xb0] sm:$0xff] %v221
        %v429 = vld [vmem:[#allocation8 + $0xb8] ss:$0 sm:$0xff]
        %v430 = vld [vmem:[#allocation8 + $0xb9] ss:$0 sm:$0xff]
        %vm431 = vcmp.ge.f32.partialorder %v221, %v429
        %vm432 = vcmp.lt.f32.partialorder %v221, %v430
        %vm433 = vmand %vm431, %vm432
        %v434 = vsel %vm433, 1, 0
        %v435 = vcvt.s32.f32 %v434
        %436 = vst [vmem:[#allocation2 + $0xb8] sm:$0xff] %v435
        %437 = vst [vmem:[#allocation4 + $0xb8] sm:$0xff] %v221
        %v438 = vld [vmem:[#allocation8 + $0xc0] ss:$0 sm:$0xff]
        %v439 = vld [vmem:[#allocation8 + $0xc1] ss:$0 sm:$0xff]
        %vm440 = vcmp.ge.f32.partialorder %v221, %v438
        %vm441 = vcmp.lt.f32.partialorder %v221, %v439
        %vm442 = vmand %vm440, %vm441
        %v443 = vsel %vm442, 1, 0
        %v444 = vcvt.s32.f32 %v443
        %445 = vst [vmem:[#allocation2 + $0xc0] sm:$0xff] %v444
        %446 = vst [vmem:[#allocation4 + $0xc0] sm:$0xff] %v221
        %v447 = vld [vmem:[#allocation8 + $0xc8] ss:$0 sm:$0xff]
        %v448 = vld [vmem:[#allocation8 + $0xc9] ss:$0 sm:$0xff]
        %vm449 = vcmp.ge.f32.partialorder %v221, %v447
        %vm450 = vcmp.lt.f32.partialorder %v221, %v448
        %vm451 = vmand %vm449, %vm450
        %v452 = vsel %vm451, 1, 0
        %v453 = vcvt.s32.f32 %v452
        %454 = vst [vmem:[#allocation2 + $0xc8] sm:$0xff] %v453
        %s455 = scalar_lea.vmem [#allocation8], 2
        %v456 = vld [vmem:[%s455] ss:$8 sm:$0xf]
        %v457 = vld [vmem:[%s455] ss:$8 sm:$0xf0]
        %v458 = vor.u32 %v456, %v457
        %s459 = scalar_lea.vmem [#allocation8], 66
        %v460 = vld [vmem:[%s459] ss:$8 sm:$0xf]
        %v461 = vld [vmem:[%s459] ss:$8 sm:$0xf0]
        %v462 = vor.u32 %v460, %v461
        %s463 = scalar_lea.vmem [#allocation8], 130
        %v464 = vld [vmem:[%s463] ss:$8 sm:$0xf]
        %v465 = vld [vmem:[%s463] ss:$8 sm:$0xf0]
        %v466 = vor.u32 %v464, %v465
        %s467 = scalar_lea.vmem [#allocation8], 194
        %v468 = vld [vmem:[%s467] ss:$8 sm:$0x1]
        %s469 = scalar_lea.vmem [#allocation8], 3
        %v470 = vld [vmem:[%s469] ss:$8 sm:$0xf]
        %v471 = vld [vmem:[%s469] ss:$8 sm:$0xf0]
        %v472 = vor.u32 %v470, %v471
        %s473 = scalar_lea.vmem [#allocation8], 67
        %v474 = vld [vmem:[%s473] ss:$8 sm:$0xf]
        %v475 = vld [vmem:[%s473] ss:$8 sm:$0xf0]
        %v476 = vor.u32 %v474, %v475
        %s477 = scalar_lea.vmem [#allocation8], 131
        %v478 = vld [vmem:[%s477] ss:$8 sm:$0xf]
        %v479 = vld [vmem:[%s477] ss:$8 sm:$0xf0]
        %v480 = vor.u32 %v478, %v479
        %s481 = scalar_lea.vmem [#allocation8], 195
        %v482 = vld [vmem:[%s481] ss:$8 sm:$0x1]
        %s483 = scalar_lea.vmem [#allocation8], 4
        %v484 = vld [vmem:[%s483] ss:$8 sm:$0xf]
        %v485 = vld [vmem:[%s483] ss:$8 sm:$0xf0]
        %v486 = vor.u32 %v484, %v485
        %s487 = scalar_lea.vmem [#allocation8], 68
        %v488 = vld [vmem:[%s487] ss:$8 sm:$0xf]
        %v489 = vld [vmem:[%s487] ss:$8 sm:$0xf0]
        %v490 = vor.u32 %v488, %v489
        %s491 = scalar_lea.vmem [#allocation8], 132
        %v492 = vld [vmem:[%s491] ss:$8 sm:$0xf]
        %v493 = vld [vmem:[%s491] ss:$8 sm:$0xf0]
        %v494 = vor.u32 %v492, %v493
        %s495 = scalar_lea.vmem [#allocation8], 196
        %v496 = vld [vmem:[%s495] ss:$8 sm:$0x1]
        %s497 = scalar_lea.vmem [#allocation8], 5
        %v498 = vld [vmem:[%s497] ss:$8 sm:$0xf]
        %v499 = vld [vmem:[%s497] ss:$8 sm:$0xf0]
        %v500 = vor.u32 %v498, %v499
        %s501 = scalar_lea.vmem [#allocation8], 69
        %v502 = vld [vmem:[%s501] ss:$8 sm:$0xf]
        %v503 = vld [vmem:[%s501] ss:$8 sm:$0xf0]
        %v504 = vor.u32 %v502, %v503
        %s505 = scalar_lea.vmem [#allocation8], 133
        %v506 = vld [vmem:[%s505] ss:$8 sm:$0xf]
        %v507 = vld [vmem:[%s505] ss:$8 sm:$0xf0]
        %v508 = vor.u32 %v506, %v507
        %s509 = scalar_lea.vmem [#allocation8], 197
        %v510 = vld [vmem:[%s509] ss:$8 sm:$0x1]
        %v511 = vld [vmem:[#allocation4] sm:$0xff]
        %v512 = vld [vmem:[#allocation4 + $0x8] sm:$0xff]
        %v513 = vld [vmem:[#allocation4 + $0x10] sm:$0xff]
        %v514 = vld [vmem:[#allocation4 + $0x18] sm:$0xff]
        %v515 = vld [vmem:[#allocation4 + $0x20] sm:$0xff]
        %v516 = vld [vmem:[#allocation4 + $0x28] sm:$0xff]
        %v517 = vld [vmem:[#allocation4 + $0x30] sm:$0xff]
        %v518 = vld [vmem:[#allocation4 + $0x38] sm:$0xff]
        %v519 = vld [vmem:[#allocation4 + $0x40] sm:$0xff]
        %v520 = vld [vmem:[#allocation4 + $0x48] sm:$0xff]
        %v521 = vld [vmem:[#allocation4 + $0x50] sm:$0xff]
        %v522 = vld [vmem:[#allocation4 + $0x58] sm:$0xff]
        %v523 = vld [vmem:[#allocation4 + $0x60] sm:$0xff]
        %v524 = vld [vmem:[#allocation4 + $0x68] sm:$0xff]
        %v525 = vld [vmem:[#allocation4 + $0x70] sm:$0xff]
        %v526 = vld [vmem:[#allocation4 + $0x78] sm:$0xff]
        %v527 = vld [vmem:[#allocation4 + $0x80] sm:$0xff]
        %v528 = vld [vmem:[#allocation4 + $0x88] sm:$0xff]
        %v529 = vld [vmem:[#allocation4 + $0x90] sm:$0xff]
        %v530 = vld [vmem:[#allocation4 + $0x98] sm:$0xff]
        %v531 = vld [vmem:[#allocation4 + $0xa0] sm:$0xff]
        %v532 = vld [vmem:[#allocation4 + $0xa8] sm:$0xff]
        %v533 = vld [vmem:[#allocation4 + $0xb0] sm:$0xff]
        %v534 = vld [vmem:[#allocation4 + $0xb8] sm:$0xff]
        %v535 = vld [vmem:[#allocation4 + $0xc0] sm:$0xff]
        %v536 = vld [vmem:[#allocation2] sm:$0xff]
        %v537 = vld [vmem:[#allocation2 + $0x8] sm:$0xff]
        %v538 = vld [vmem:[#allocation2 + $0x10] sm:$0xff]
        %v539 = vld [vmem:[#allocation2 + $0x18] sm:$0xff]
        %v540 = vld [vmem:[#allocation2 + $0x20] sm:$0xff]
        %v541 = vld [vmem:[#allocation2 + $0x28] sm:$0xff]
        %v542 = vld [vmem:[#allocation2 + $0x30] sm:$0xff]
        %v543 = vld [vmem:[#allocation2 + $0x38] sm:$0xff]
        %v544 = vld [vmem:[#allocation2 + $0x40] sm:$0xff]
        %v545 = vld [vmem:[#allocation2 + $0x48] sm:$0xff]
        %v546 = vld [vmem:[#allocation2 + $0x50] sm:$0xff]
        %v547 = vld [vmem:[#allocation2 + $0x58] sm:$0xff]
        %v548 = vld [vmem:[#allocation2 + $0x60] sm:$0xff]
        %v549 = vld [vmem:[#allocation2 + $0x68] sm:$0xff]
        %v550 = vld [vmem:[#allocation2 + $0x70] sm:$0xff]
        %v551 = vld [vmem:[#allocation2 + $0x78] sm:$0xff]
        %v552 = vld [vmem:[#allocation2 + $0x80] sm:$0xff]
        %v553 = vld [vmem:[#allocation2 + $0x88] sm:$0xff]
        %v554 = vld [vmem:[#allocation2 + $0x90] sm:$0xff]
        %v555 = vld [vmem:[#allocation2 + $0x98] sm:$0xff]
        %v556 = vld [vmem:[#allocation2 + $0xa0] sm:$0xff]
        %v557 = vld [vmem:[#allocation2 + $0xa8] sm:$0xff]
        %v558 = vld [vmem:[#allocation2 + $0xb0] sm:$0xff]
        %v559 = vld [vmem:[#allocation2 + $0xb8] sm:$0xff]
        %v560 = vld [vmem:[#allocation2 + $0xc0] sm:$0xff]
        %v561 = vld [vmem:[#allocation2 + $0x8] sm:$0xff]
        %v562 = vld [vmem:[#allocation2 + $0x10] sm:$0xff]
        %v563 = vld [vmem:[#allocation2 + $0x18] sm:$0xff]
        %v564 = vld [vmem:[#allocation2 + $0x20] sm:$0xff]
        %v565 = vld [vmem:[#allocation2 + $0x28] sm:$0xff]
        %v566 = vld [vmem:[#allocation2 + $0x30] sm:$0xff]
        %v567 = vld [vmem:[#allocation2 + $0x38] sm:$0xff]
        %v568 = vld [vmem:[#allocation2 + $0x40] sm:$0xff]
        %v569 = vld [vmem:[#allocation2 + $0x48] sm:$0xff]
        %v570 = vld [vmem:[#allocation2 + $0x50] sm:$0xff]
        %v571 = vld [vmem:[#allocation2 + $0x58] sm:$0xff]
        %v572 = vld [vmem:[#allocation2 + $0x60] sm:$0xff]
        %v573 = vld [vmem:[#allocation2 + $0x68] sm:$0xff]
        %v574 = vld [vmem:[#allocation2 + $0x70] sm:$0xff]
        %v575 = vld [vmem:[#allocation2 + $0x78] sm:$0xff]
        %v576 = vld [vmem:[#allocation2 + $0x80] sm:$0xff]
        %v577 = vld [vmem:[#allocation2 + $0x88] sm:$0xff]
        %v578 = vld [vmem:[#allocation2 + $0x90] sm:$0xff]
        %v579 = vld [vmem:[#allocation2 + $0x98] sm:$0xff]
        %v580 = vld [vmem:[#allocation2 + $0xa0] sm:$0xff]
        %v581 = vld [vmem:[#allocation2 + $0xa8] sm:$0xff]
        %v582 = vld [vmem:[#allocation2 + $0xb0] sm:$0xff]
        %v583 = vld [vmem:[#allocation2 + $0xb8] sm:$0xff]
        %v584 = vld [vmem:[#allocation2 + $0xc0] sm:$0xff]
        %v585 = vld [vmem:[#allocation2 + $0xc8] sm:$0xff]
        %v590 = vperm.slane %v458, 0
        %v591 = vperm.slane %v458, 1
        %v592 = vperm.slane %v458, 2
        %v593 = vperm.slane %v458, 3
        %v594 = vperm.slane %v458, 4
        %v595 = vperm.slane %v458, 5
        %v596 = vperm.slane %v458, 6
        %v597 = vperm.slane %v458, 7
        %v598 = vperm.slane %v462, 0
        %v599 = vperm.slane %v462, 1
        %v600 = vperm.slane %v462, 2
        %v601 = vperm.slane %v462, 3
        %v602 = vperm.slane %v462, 4
        %v603 = vperm.slane %v462, 5
        %v604 = vperm.slane %v462, 6
        %v605 = vperm.slane %v462, 7
        %v606 = vperm.slane %v466, 0
        %v607 = vperm.slane %v466, 1
        %v608 = vperm.slane %v466, 2
        %v609 = vperm.slane %v466, 3
        %v610 = vperm.slane %v466, 4
        %v611 = vperm.slane %v466, 5
        %v612 = vperm.slane %v466, 6
        %v613 = vperm.slane %v466, 7
        %v614 = vperm.slane %v468, 0
        %v640 = vmul.f32 %v511, %v590
        %v641 = vmul.f32 %v512, %v591
        %v642 = vmul.f32 %v513, %v592
        %v643 = vmul.f32 %v514, %v593
        %v644 = vmul.f32 %v515, %v594
        %v645 = vmul.f32 %v516, %v595
        %v646 = vmul.f32 %v517, %v596
        %v647 = vmul.f32 %v518, %v597
        %v648 = vmul.f32 %v519, %v598
        %v649 = vmul.f32 %v520, %v599
        %v650 = vmul.f32 %v521, %v600
        %v651 = vmul.f32 %v522, %v601
        %v652 = vmul.f32 %v523, %v602
        %v653 = vmul.f32 %v524, %v603
        %v654 = vmul.f32 %v525, %v604
        %v655 = vmul.f32 %v526, %v605
        %v656 = vmul.f32 %v527, %v606
        %v657 = vmul.f32 %v528, %v607
        %v658 = vmul.f32 %v529, %v608
        %v659 = vmul.f32 %v530, %v609
        %v660 = vmul.f32 %v531, %v610
        %v661 = vmul.f32 %v532, %v611
        %v662 = vmul.f32 %v533, %v612
        %v663 = vmul.f32 %v534, %v613
        %v664 = vmul.f32 %v535, %v614
        %v669 = vperm.slane %v472, 0
        %v670 = vperm.slane %v472, 1
        %v671 = vperm.slane %v472, 2
        %v672 = vperm.slane %v472, 3
        %v673 = vperm.slane %v472, 4
        %v674 = vperm.slane %v472, 5
        %v675 = vperm.slane %v472, 6
        %v676 = vperm.slane %v472, 7
        %v677 = vperm.slane %v476, 0
        %v678 = vperm.slane %v476, 1
        %v679 = vperm.slane %v476, 2
        %v680 = vperm.slane %v476, 3
        %v681 = vperm.slane %v476, 4
        %v682 = vperm.slane %v476, 5
        %v683 = vperm.slane %v476, 6
        %v684 = vperm.slane %v476, 7
        %v685 = vperm.slane %v480, 0
        %v686 = vperm.slane %v480, 1
        %v687 = vperm.slane %v480, 2
        %v688 = vperm.slane %v480, 3
        %v689 = vperm.slane %v480, 4
        %v690 = vperm.slane %v480, 5
        %v691 = vperm.slane %v480, 6
        %v692 = vperm.slane %v480, 7
        %v693 = vperm.slane %v482, 0
        %v719 = vadd.f32 %v640, %v669
        %v720 = vadd.f32 %v641, %v670
        %v721 = vadd.f32 %v642, %v671
        %v722 = vadd.f32 %v643, %v672
        %v723 = vadd.f32 %v644, %v673
        %v724 = vadd.f32 %v645, %v674
        %v725 = vadd.f32 %v646, %v675
        %v726 = vadd.f32 %v647, %v676
        %v727 = vadd.f32 %v648, %v677
        %v728 = vadd.f32 %v649, %v678
        %v729 = vadd.f32 %v650, %v679
        %v730 = vadd.f32 %v651, %v680
        %v731 = vadd.f32 %v652, %v681
        %v732 = vadd.f32 %v653, %v682
        %v733 = vadd.f32 %v654, %v683
        %v734 = vadd.f32 %v655, %v684
        %v735 = vadd.f32 %v656, %v685
        %v736 = vadd.f32 %v657, %v686
        %v737 = vadd.f32 %v658, %v687
        %v738 = vadd.f32 %v659, %v688
        %v739 = vadd.f32 %v660, %v689
        %v740 = vadd.f32 %v661, %v690
        %v741 = vadd.f32 %v662, %v691
        %v742 = vadd.f32 %v663, %v692
        %v743 = vadd.f32 %v664, %v693
        %v744 = vmul.f32 %v719, %v536
        %v745 = vmul.f32 %v720, %v537
        %v746 = vmul.f32 %v721, %v538
        %v747 = vmul.f32 %v722, %v539
        %v748 = vmul.f32 %v723, %v540
        %v749 = vmul.f32 %v724, %v541
        %v750 = vmul.f32 %v725, %v542
        %v751 = vmul.f32 %v726, %v543
        %v752 = vmul.f32 %v727, %v544
        %v753 = vmul.f32 %v728, %v545
        %v754 = vmul.f32 %v729, %v546
        %v755 = vmul.f32 %v730, %v547
        %v756 = vmul.f32 %v731, %v548
        %v757 = vmul.f32 %v732, %v549
        %v758 = vmul.f32 %v733, %v550
        %v759 = vmul.f32 %v734, %v551
        %v760 = vmul.f32 %v735, %v552
        %v761 = vmul.f32 %v736, %v553
        %v762 = vmul.f32 %v737, %v554
        %v763 = vmul.f32 %v738, %v555
        %v764 = vmul.f32 %v739, %v556
        %v765 = vmul.f32 %v740, %v557
        %v766 = vmul.f32 %v741, %v558
        %v767 = vmul.f32 %v742, %v559
        %v768 = vmul.f32 %v743, %v560
        %v773 = vperm.slane %v486, 0
        %v774 = vperm.slane %v486, 1
        %v775 = vperm.slane %v486, 2
        %v776 = vperm.slane %v486, 3
        %v777 = vperm.slane %v486, 4
        %v778 = vperm.slane %v486, 5
        %v779 = vperm.slane %v486, 6
        %v780 = vperm.slane %v486, 7
        %v781 = vperm.slane %v490, 0
        %v782 = vperm.slane %v490, 1
        %v783 = vperm.slane %v490, 2
        %v784 = vperm.slane %v490, 3
        %v785 = vperm.slane %v490, 4
        %v786 = vperm.slane %v490, 5
        %v787 = vperm.slane %v490, 6
        %v788 = vperm.slane %v490, 7
        %v789 = vperm.slane %v494, 0
        %v790 = vperm.slane %v494, 1
        %v791 = vperm.slane %v494, 2
        %v792 = vperm.slane %v494, 3
        %v793 = vperm.slane %v494, 4
        %v794 = vperm.slane %v494, 5
        %v795 = vperm.slane %v494, 6
        %v796 = vperm.slane %v494, 7
        %v797 = vperm.slane %v496, 0
        %v823 = vmul.f32 %v511, %v773
        %v824 = vmul.f32 %v512, %v774
        %v825 = vmul.f32 %v513, %v775
        %v826 = vmul.f32 %v514, %v776
        %v827 = vmul.f32 %v515, %v777
        %v828 = vmul.f32 %v516, %v778
        %v829 = vmul.f32 %v517, %v779
        %v830 = vmul.f32 %v518, %v780
        %v831 = vmul.f32 %v519, %v781
        %v832 = vmul.f32 %v520, %v782
        %v833 = vmul.f32 %v521, %v783
        %v834 = vmul.f32 %v522, %v784
        %v835 = vmul.f32 %v523, %v785
        %v836 = vmul.f32 %v524, %v786
        %v837 = vmul.f32 %v525, %v787
        %v838 = vmul.f32 %v526, %v788
        %v839 = vmul.f32 %v527, %v789
        %v840 = vmul.f32 %v528, %v790
        %v841 = vmul.f32 %v529, %v791
        %v842 = vmul.f32 %v530, %v792
        %v843 = vmul.f32 %v531, %v793
        %v844 = vmul.f32 %v532, %v794
        %v845 = vmul.f32 %v533, %v795
        %v846 = vmul.f32 %v534, %v796
        %v847 = vmul.f32 %v535, %v797
        %v852 = vperm.slane %v500, 0
        %v853 = vperm.slane %v500, 1
        %v854 = vperm.slane %v500, 2
        %v855 = vperm.slane %v500, 3
        %v856 = vperm.slane %v500, 4
        %v857 = vperm.slane %v500, 5
        %v858 = vperm.slane %v500, 6
        %v859 = vperm.slane %v500, 7
        %v860 = vperm.slane %v504, 0
        %v861 = vperm.slane %v504, 1
        %v862 = vperm.slane %v504, 2
        %v863 = vperm.slane %v504, 3
        %v864 = vperm.slane %v504, 4
        %v865 = vperm.slane %v504, 5
        %v866 = vperm.slane %v504, 6
        %v867 = vperm.slane %v504, 7
        %v868 = vperm.slane %v508, 0
        %v869 = vperm.slane %v508, 1
        %v870 = vperm.slane %v508, 2
        %v871 = vperm.slane %v508, 3
        %v872 = vperm.slane %v508, 4
        %v873 = vperm.slane %v508, 5
        %v874 = vperm.slane %v508, 6
        %v875 = vperm.slane %v508, 7
        %v876 = vperm.slane %v510, 0
        %v902 = vadd.f32 %v823, %v852
        %v903 = vadd.f32 %v824, %v853
        %v904 = vadd.f32 %v825, %v854
        %v905 = vadd.f32 %v826, %v855
        %v906 = vadd.f32 %v827, %v856
        %v907 = vadd.f32 %v828, %v857
        %v908 = vadd.f32 %v829, %v858
        %v909 = vadd.f32 %v830, %v859
        %v910 = vadd.f32 %v831, %v860
        %v911 = vadd.f32 %v832, %v861
        %v912 = vadd.f32 %v833, %v862
        %v913 = vadd.f32 %v834, %v863
        %v914 = vadd.f32 %v835, %v864
        %v915 = vadd.f32 %v836, %v865
        %v916 = vadd.f32 %v837, %v866
        %v917 = vadd.f32 %v838, %v867
        %v918 = vadd.f32 %v839, %v868
        %v919 = vadd.f32 %v840, %v869
        %v920 = vadd.f32 %v841, %v870
        %v921 = vadd.f32 %v842, %v871
        %v922 = vadd.f32 %v843, %v872
        %v923 = vadd.f32 %v844, %v873
        %v924 = vadd.f32 %v845, %v874
        %v925 = vadd.f32 %v846, %v875
        %v926 = vadd.f32 %v847, %v876
        %v927 = vmul.f32 %v902, %v561
        %v928 = vmul.f32 %v903, %v562
        %v929 = vmul.f32 %v904, %v563
        %v930 = vmul.f32 %v905, %v564
        %v931 = vmul.f32 %v906, %v565
        %v932 = vmul.f32 %v907, %v566
        %v933 = vmul.f32 %v908, %v567
        %v934 = vmul.f32 %v909, %v568
        %v935 = vmul.f32 %v910, %v569
        %v936 = vmul.f32 %v911, %v570
        %v937 = vmul.f32 %v912, %v571
        %v938 = vmul.f32 %v913, %v572
        %v939 = vmul.f32 %v914, %v573
        %v940 = vmul.f32 %v915, %v574
        %v941 = vmul.f32 %v916, %v575
        %v942 = vmul.f32 %v917, %v576
        %v943 = vmul.f32 %v918, %v577
        %v944 = vmul.f32 %v919, %v578
        %v945 = vmul.f32 %v920, %v579
        %v946 = vmul.f32 %v921, %v580
        %v947 = vmul.f32 %v922, %v581
        %v948 = vmul.f32 %v923, %v582
        %v949 = vmul.f32 %v924, %v583
        %v950 = vmul.f32 %v925, %v584
        %v951 = vmul.f32 %v926, %v585
        %v952 = vadd.f32 %v744, %v927
        %v953 = vadd.f32 %v745, %v928
        %v954 = vadd.f32 %v746, %v929
        %v955 = vadd.f32 %v747, %v930
        %v956 = vadd.f32 %v748, %v931
        %v957 = vadd.f32 %v749, %v932
        %v958 = vadd.f32 %v750, %v933
        %v959 = vadd.f32 %v751, %v934
        %v960 = vadd.f32 %v752, %v935
        %v961 = vadd.f32 %v753, %v936
        %v962 = vadd.f32 %v754, %v937
        %v963 = vadd.f32 %v755, %v938
        %v964 = vadd.f32 %v756, %v939
        %v965 = vadd.f32 %v757, %v940
        %v966 = vadd.f32 %v758, %v941
        %v967 = vadd.f32 %v759, %v942
        %v968 = vadd.f32 %v760, %v943
        %v969 = vadd.f32 %v761, %v944
        %v970 = vadd.f32 %v762, %v945
        %v971 = vadd.f32 %v763, %v946
        %v972 = vadd.f32 %v764, %v947
        %v973 = vadd.f32 %v765, %v948
        %v974 = vadd.f32 %v766, %v949
        %v975 = vadd.f32 %v767, %v950
        %v976 = vadd.f32 %v768, %v951
        %977 = vst [vmem:[#allocation3] sm:$0xff] %v952
        %978 = vst [vmem:[#allocation3 + $0x8] sm:$0xff] %v953
        %979 = vst [vmem:[#allocation3 + $0x10] sm:$0xff] %v954
        %980 = vst [vmem:[#allocation3 + $0x18] sm:$0xff] %v955
        %981 = vst [vmem:[#allocation3 + $0x20] sm:$0xff] %v956
        %982 = vst [vmem:[#allocation3 + $0x28] sm:$0xff] %v957
        %983 = vst [vmem:[#allocation3 + $0x30] sm:$0xff] %v958
        %984 = vst [vmem:[#allocation3 + $0x38] sm:$0xff] %v959
        %985 = vst [vmem:[#allocation3 + $0x40] sm:$0xff] %v960
        %986 = vst [vmem:[#allocation3 + $0x48] sm:$0xff] %v961
        %987 = vst [vmem:[#allocation3 + $0x50] sm:$0xff] %v962
        %988 = vst [vmem:[#allocation3 + $0x58] sm:$0xff] %v963
        %989 = vst [vmem:[#allocation3 + $0x60] sm:$0xff] %v964
        %990 = vst [vmem:[#allocation3 + $0x68] sm:$0xff] %v965
        %991 = vst [vmem:[#allocation3 + $0x70] sm:$0xff] %v966
        %992 = vst [vmem:[#allocation3 + $0x78] sm:$0xff] %v967
        %993 = vst [vmem:[#allocation3 + $0x80] sm:$0xff] %v968
        %994 = vst [vmem:[#allocation3 + $0x88] sm:$0xff] %v969
        %995 = vst [vmem:[#allocation3 + $0x90] sm:$0xff] %v970
        %996 = vst [vmem:[#allocation3 + $0x98] sm:$0xff] %v971
        %997 = vst [vmem:[#allocation3 + $0xa0] sm:$0xff] %v972
        %998 = vst [vmem:[#allocation3 + $0xa8] sm:$0xff] %v973
        %999 = vst [vmem:[#allocation3 + $0xb0] sm:$0xff] %v974
        %1000 = vst [vmem:[#allocation3 + $0xb8] sm:$0xff] %v975
        %1001 = vst [vmem:[#allocation3 + $0xc0] sm:$0xff] %v976
        %s1002 = scalar_lea.vmem [#allocation8], 6
        %v1003 = vld [vmem:[%s1002] ss:$8 sm:$0xf]
        %v1004 = vld [vmem:[%s1002] ss:$8 sm:$0xf0]
        %v1005 = vor.u32 %v1003, %v1004
        %s1006 = scalar_lea.vmem [#allocation8], 70
        %v1007 = vld [vmem:[%s1006] ss:$8 sm:$0xf]
        %v1008 = vld [vmem:[%s1006] ss:$8 sm:$0xf0]
        %v1009 = vor.u32 %v1007, %v1008
        %s1010 = scalar_lea.vmem [#allocation8], 134
        %v1011 = vld [vmem:[%s1010] ss:$8 sm:$0xf]
        %v1012 = vld [vmem:[%s1010] ss:$8 sm:$0xf0]
        %v1013 = vor.u32 %v1011, %v1012
        %s1014 = scalar_lea.vmem [#allocation8], 7
        %v1015 = vld [vmem:[%s1014] ss:$8 sm:$0xf]
        %v1016 = vld [vmem:[%s1014] ss:$8 sm:$0xf0]
        %v1017 = vor.u32 %v1015, %v1016
        %s1018 = scalar_lea.vmem [#allocation8], 71
        %v1019 = vld [vmem:[%s1018] ss:$8 sm:$0xf]
        %v1020 = vld [vmem:[%s1018] ss:$8 sm:$0xf0]
        %v1021 = vor.u32 %v1019, %v1020
        %s1022 = scalar_lea.vmem [#allocation8], 135
        %v1023 = vld [vmem:[%s1022] ss:$8 sm:$0xf]
        %v1024 = vld [vmem:[%s1022] ss:$8 sm:$0xf0]
        %v1025 = vor.u32 %v1023, %v1024
        %s1026 = scalar_lea.vmem [#allocation8], 208
        %v1027 = vld [vmem:[%s1026] ss:$8 sm:$0xf]
        %v1028 = vld [vmem:[%s1026] ss:$8 sm:$0xf0]
        %v1029 = vor.u32 %v1027, %v1028
        %s1030 = scalar_lea.vmem [#allocation8], 272
        %v1031 = vld [vmem:[%s1030] ss:$8 sm:$0xf]
        %v1032 = vld [vmem:[%s1030] ss:$8 sm:$0xf0]
        %v1033 = vor.u32 %v1031, %v1032
        %s1034 = scalar_lea.vmem [#allocation8], 336
        %v1035 = vld [vmem:[%s1034] ss:$8 sm:$0xf]
        %v1036 = vld [vmem:[%s1034] ss:$8 sm:$0xf0]
        %v1037 = vor.u32 %v1035, %v1036
        %s1038 = scalar_lea.vmem [#allocation8], 209
        %v1039 = vld [vmem:[%s1038] ss:$8 sm:$0xf]
        %v1040 = vld [vmem:[%s1038] ss:$8 sm:$0xf0]
        %v1041 = vor.u32 %v1039, %v1040
        %s1042 = scalar_lea.vmem [#allocation8], 273
        %v1043 = vld [vmem:[%s1042] ss:$8 sm:$0xf]
        %v1044 = vld [vmem:[%s1042] ss:$8 sm:$0xf0]
        %v1045 = vor.u32 %v1043, %v1044
        %s1046 = scalar_lea.vmem [#allocation8], 337
        %v1047 = vld [vmem:[%s1046] ss:$8 sm:$0xf]
        %v1048 = vld [vmem:[%s1046] ss:$8 sm:$0xf0]
        %v1049 = vor.u32 %v1047, %v1048
        %v1050 = vld [vmem:[#allocation4] sm:$0xff]
        %v1051 = vld [vmem:[#allocation4 + $0x8] sm:$0xff]
        %v1052 = vld [vmem:[#allocation4 + $0x10] sm:$0xff]
        %v1053 = vld [vmem:[#allocation4 + $0x18] sm:$0xff]
        %v1054 = vld [vmem:[#allocation4 + $0x20] sm:$0xff]
        %v1055 = vld [vmem:[#allocation4 + $0x28] sm:$0xff]
        %v1056 = vld [vmem:[#allocation4 + $0x30] sm:$0xff]
        %v1057 = vld [vmem:[#allocation4 + $0x38] sm:$0xff]
        %v1058 = vld [vmem:[#allocation4 + $0x40] sm:$0xff]
        %v1059 = vld [vmem:[#allocation4 + $0x48] sm:$0xff]
        %v1060 = vld [vmem:[#allocation4 + $0x50] sm:$0xff]
        %v1061 = vld [vmem:[#allocation4 + $0x58] sm:$0xff]
        %v1062 = vld [vmem:[#allocation4 + $0x60] sm:$0xff]
        %v1063 = vld [vmem:[#allocation4 + $0x68] sm:$0xff]
        %v1064 = vld [vmem:[#allocation4 + $0x70] sm:$0xff]
        %v1065 = vld [vmem:[#allocation4 + $0x78] sm:$0xff]
        %v1066 = vld [vmem:[#allocation4 + $0x80] sm:$0xff]
        %v1067 = vld [vmem:[#allocation4 + $0x88] sm:$0xff]
        %v1068 = vld [vmem:[#allocation4 + $0x90] sm:$0xff]
        %v1069 = vld [vmem:[#allocation4 + $0x98] sm:$0xff]
        %v1070 = vld [vmem:[#allocation4 + $0xa0] sm:$0xff]
        %v1071 = vld [vmem:[#allocation4 + $0xa8] sm:$0xff]
        %v1072 = vld [vmem:[#allocation4 + $0xb0] sm:$0xff]
        %v1073 = vld [vmem:[#allocation4 + $0xb8] sm:$0xff]
        %v1074 = vld [vmem:[#allocation3] sm:$0xff]
        %v1075 = vld [vmem:[#allocation3 + $0x8] sm:$0xff]
        %v1076 = vld [vmem:[#allocation3 + $0x10] sm:$0xff]
        %v1077 = vld [vmem:[#allocation3 + $0x18] sm:$0xff]
        %v1078 = vld [vmem:[#allocation3 + $0x20] sm:$0xff]
        %v1079 = vld [vmem:[#allocation3 + $0x28] sm:$0xff]
        %v1080 = vld [vmem:[#allocation3 + $0x30] sm:$0xff]
        %v1081 = vld [vmem:[#allocation3 + $0x38] sm:$0xff]
        %v1082 = vld [vmem:[#allocation3 + $0x40] sm:$0xff]
        %v1083 = vld [vmem:[#allocation3 + $0x48] sm:$0xff]
        %v1084 = vld [vmem:[#allocation3 + $0x50] sm:$0xff]
        %v1085 = vld [vmem:[#allocation3 + $0x58] sm:$0xff]
        %v1086 = vld [vmem:[#allocation3 + $0x60] sm:$0xff]
        %v1087 = vld [vmem:[#allocation3 + $0x68] sm:$0xff]
        %v1088 = vld [vmem:[#allocation3 + $0x70] sm:$0xff]
        %v1089 = vld [vmem:[#allocation3 + $0x78] sm:$0xff]
        %v1090 = vld [vmem:[#allocation3 + $0x80] sm:$0xff]
        %v1091 = vld [vmem:[#allocation3 + $0x88] sm:$0xff]
        %v1092 = vld [vmem:[#allocation3 + $0x90] sm:$0xff]
        %v1093 = vld [vmem:[#allocation3 + $0x98] sm:$0xff]
        %v1094 = vld [vmem:[#allocation3 + $0xa0] sm:$0xff]
        %v1095 = vld [vmem:[#allocation3 + $0xa8] sm:$0xff]
        %v1096 = vld [vmem:[#allocation3 + $0xb0] sm:$0xff]
        %v1097 = vld [vmem:[#allocation3 + $0xb8] sm:$0xff]
        %v1098 = vld [vmem:[#allocation3 + $0x8] sm:$0xff]
        %v1099 = vld [vmem:[#allocation3 + $0x10] sm:$0xff]
        %v1100 = vld [vmem:[#allocation3 + $0x18] sm:$0xff]
        %v1101 = vld [vmem:[#allocation3 + $0x20] sm:$0xff]
        %v1102 = vld [vmem:[#allocation3 + $0x28] sm:$0xff]
        %v1103 = vld [vmem:[#allocation3 + $0x30] sm:$0xff]
        %v1104 = vld [vmem:[#allocation3 + $0x38] sm:$0xff]
        %v1105 = vld [vmem:[#allocation3 + $0x40] sm:$0xff]
        %v1106 = vld [vmem:[#allocation3 + $0x48] sm:$0xff]
        %v1107 = vld [vmem:[#allocation3 + $0x50] sm:$0xff]
        %v1108 = vld [vmem:[#allocation3 + $0x58] sm:$0xff]
        %v1109 = vld [vmem:[#allocation3 + $0x60] sm:$0xff]
        %v1110 = vld [vmem:[#allocation3 + $0x68] sm:$0xff]
        %v1111 = vld [vmem:[#allocation3 + $0x70] sm:$0xff]
        %v1112 = vld [vmem:[#allocation3 + $0x78] sm:$0xff]
        %v1113 = vld [vmem:[#allocation3 + $0x80] sm:$0xff]
        %v1114 = vld [vmem:[#allocation3 + $0x88] sm:$0xff]
        %v1115 = vld [vmem:[#allocation3 + $0x90] sm:$0xff]
        %v1116 = vld [vmem:[#allocation3 + $0x98] sm:$0xff]
        %v1117 = vld [vmem:[#allocation3 + $0xa0] sm:$0xff]
        %v1118 = vld [vmem:[#allocation3 + $0xa8] sm:$0xff]
        %v1119 = vld [vmem:[#allocation3 + $0xb0] sm:$0xff]
        %v1120 = vld [vmem:[#allocation3 + $0xb8] sm:$0xff]
        %v1121 = vld [vmem:[#allocation3 + $0xc0] sm:$0xff]
        %v1125 = vperm.slane %v1005, 0
        %v1126 = vperm.slane %v1005, 1
        %v1127 = vperm.slane %v1005, 2
        %v1128 = vperm.slane %v1005, 3
        %v1129 = vperm.slane %v1005, 4
        %v1130 = vperm.slane %v1005, 5
        %v1131 = vperm.slane %v1005, 6
        %v1132 = vperm.slane %v1005, 7
        %v1133 = vperm.slane %v1009, 0
        %v1134 = vperm.slane %v1009, 1
        %v1135 = vperm.slane %v1009, 2
        %v1136 = vperm.slane %v1009, 3
        %v1137 = vperm.slane %v1009, 4
        %v1138 = vperm.slane %v1009, 5
        %v1139 = vperm.slane %v1009, 6
        %v1140 = vperm.slane %v1009, 7
        %v1141 = vperm.slane %v1013, 0
        %v1142 = vperm.slane %v1013, 1
        %v1143 = vperm.slane %v1013, 2
        %v1144 = vperm.slane %v1013, 3
        %v1145 = vperm.slane %v1013, 4
        %v1146 = vperm.slane %v1013, 5
        %v1147 = vperm.slane %v1013, 6
        %v1148 = vperm.slane %v1013, 7
        %v1173 = vmul.f32 %v1050, %v1125
        %v1174 = vmul.f32 %v1051, %v1126
        %v1175 = vmul.f32 %v1052, %v1127
        %v1176 = vmul.f32 %v1053, %v1128
        %v1177 = vmul.f32 %v1054, %v1129
        %v1178 = vmul.f32 %v1055, %v1130
        %v1179 = vmul.f32 %v1056, %v1131
        %v1180 = vmul.f32 %v1057, %v1132
        %v1181 = vmul.f32 %v1058, %v1133
        %v1182 = vmul.f32 %v1059, %v1134
        %v1183 = vmul.f32 %v1060, %v1135
        %v1184 = vmul.f32 %v1061, %v1136
        %v1185 = vmul.f32 %v1062, %v1137
        %v1186 = vmul.f32 %v1063, %v1138
        %v1187 = vmul.f32 %v1064, %v1139
        %v1188 = vmul.f32 %v1065, %v1140
        %v1189 = vmul.f32 %v1066, %v1141
        %v1190 = vmul.f32 %v1067, %v1142
        %v1191 = vmul.f32 %v1068, %v1143
        %v1192 = vmul.f32 %v1069, %v1144
        %v1193 = vmul.f32 %v1070, %v1145
        %v1194 = vmul.f32 %v1071, %v1146
        %v1195 = vmul.f32 %v1072, %v1147
        %v1196 = vmul.f32 %v1073, %v1148
        %v1200 = vperm.slane %v1017, 0
        %v1201 = vperm.slane %v1017, 1
        %v1202 = vperm.slane %v1017, 2
        %v1203 = vperm.slane %v1017, 3
        %v1204 = vperm.slane %v1017, 4
        %v1205 = vperm.slane %v1017, 5
        %v1206 = vperm.slane %v1017, 6
        %v1207 = vperm.slane %v1017, 7
        %v1208 = vperm.slane %v1021, 0
        %v1209 = vperm.slane %v1021, 1
        %v1210 = vperm.slane %v1021, 2
        %v1211 = vperm.slane %v1021, 3
        %v1212 = vperm.slane %v1021, 4
        %v1213 = vperm.slane %v1021, 5
        %v1214 = vperm.slane %v1021, 6
        %v1215 = vperm.slane %v1021, 7
        %v1216 = vperm.slane %v1025, 0
        %v1217 = vperm.slane %v1025, 1
        %v1218 = vperm.slane %v1025, 2
        %v1219 = vperm.slane %v1025, 3
        %v1220 = vperm.slane %v1025, 4
        %v1221 = vperm.slane %v1025, 5
        %v1222 = vperm.slane %v1025, 6
        %v1223 = vperm.slane %v1025, 7
        %v1248 = vadd.f32 %v1173, %v1200
        %v1249 = vadd.f32 %v1174, %v1201
        %v1250 = vadd.f32 %v1175, %v1202
        %v1251 = vadd.f32 %v1176, %v1203
        %v1252 = vadd.f32 %v1177, %v1204
        %v1253 = vadd.f32 %v1178, %v1205
        %v1254 = vadd.f32 %v1179, %v1206
        %v1255 = vadd.f32 %v1180, %v1207
        %v1256 = vadd.f32 %v1181, %v1208
        %v1257 = vadd.f32 %v1182, %v1209
        %v1258 = vadd.f32 %v1183, %v1210
        %v1259 = vadd.f32 %v1184, %v1211
        %v1260 = vadd.f32 %v1185, %v1212
        %v1261 = vadd.f32 %v1186, %v1213
        %v1262 = vadd.f32 %v1187, %v1214
        %v1263 = vadd.f32 %v1188, %v1215
        %v1264 = vadd.f32 %v1189, %v1216
        %v1265 = vadd.f32 %v1190, %v1217
        %v1266 = vadd.f32 %v1191, %v1218
        %v1267 = vadd.f32 %v1192, %v1219
        %v1268 = vadd.f32 %v1193, %v1220
        %v1269 = vadd.f32 %v1194, %v1221
        %v1270 = vadd.f32 %v1195, %v1222
        %v1271 = vadd.f32 %v1196, %v1223
        %v1272 = vmul.f32 %v1248, %v1074
        %v1273 = vmul.f32 %v1249, %v1075
        %v1274 = vmul.f32 %v1250, %v1076
        %v1275 = vmul.f32 %v1251, %v1077
        %v1276 = vmul.f32 %v1252, %v1078
        %v1277 = vmul.f32 %v1253, %v1079
        %v1278 = vmul.f32 %v1254, %v1080
        %v1279 = vmul.f32 %v1255, %v1081
        %v1280 = vmul.f32 %v1256, %v1082
        %v1281 = vmul.f32 %v1257, %v1083
        %v1282 = vmul.f32 %v1258, %v1084
        %v1283 = vmul.f32 %v1259, %v1085
        %v1284 = vmul.f32 %v1260, %v1086
        %v1285 = vmul.f32 %v1261, %v1087
        %v1286 = vmul.f32 %v1262, %v1088
        %v1287 = vmul.f32 %v1263, %v1089
        %v1288 = vmul.f32 %v1264, %v1090
        %v1289 = vmul.f32 %v1265, %v1091
        %v1290 = vmul.f32 %v1266, %v1092
        %v1291 = vmul.f32 %v1267, %v1093
        %v1292 = vmul.f32 %v1268, %v1094
        %v1293 = vmul.f32 %v1269, %v1095
        %v1294 = vmul.f32 %v1270, %v1096
        %v1295 = vmul.f32 %v1271, %v1097
        %v1299 = vperm.slane %v1029, 0
        %v1300 = vperm.slane %v1029, 1
        %v1301 = vperm.slane %v1029, 2
        %v1302 = vperm.slane %v1029, 3
        %v1303 = vperm.slane %v1029, 4
        %v1304 = vperm.slane %v1029, 5
        %v1305 = vperm.slane %v1029, 6
        %v1306 = vperm.slane %v1029, 7
        %v1307 = vperm.slane %v1033, 0
        %v1308 = vperm.slane %v1033, 1
        %v1309 = vperm.slane %v1033, 2
        %v1310 = vperm.slane %v1033, 3
        %v1311 = vperm.slane %v1033, 4
        %v1312 = vperm.slane %v1033, 5
        %v1313 = vperm.slane %v1033, 6
        %v1314 = vperm.slane %v1033, 7
        %v1315 = vperm.slane %v1037, 0
        %v1316 = vperm.slane %v1037, 1
        %v1317 = vperm.slane %v1037, 2
        %v1318 = vperm.slane %v1037, 3
        %v1319 = vperm.slane %v1037, 4
        %v1320 = vperm.slane %v1037, 5
        %v1321 = vperm.slane %v1037, 6
        %v1322 = vperm.slane %v1037, 7
        %v1347 = vmul.f32 %v1050, %v1299
        %v1348 = vmul.f32 %v1051, %v1300
        %v1349 = vmul.f32 %v1052, %v1301
        %v1350 = vmul.f32 %v1053, %v1302
        %v1351 = vmul.f32 %v1054, %v1303
        %v1352 = vmul.f32 %v1055, %v1304
        %v1353 = vmul.f32 %v1056, %v1305
        %v1354 = vmul.f32 %v1057, %v1306
        %v1355 = vmul.f32 %v1058, %v1307
        %v1356 = vmul.f32 %v1059, %v1308
        %v1357 = vmul.f32 %v1060, %v1309
        %v1358 = vmul.f32 %v1061, %v1310
        %v1359 = vmul.f32 %v1062, %v1311
        %v1360 = vmul.f32 %v1063, %v1312
        %v1361 = vmul.f32 %v1064, %v1313
        %v1362 = vmul.f32 %v1065, %v1314
        %v1363 = vmul.f32 %v1066, %v1315
        %v1364 = vmul.f32 %v1067, %v1316
        %v1365 = vmul.f32 %v1068, %v1317
        %v1366 = vmul.f32 %v1069, %v1318
        %v1367 = vmul.f32 %v1070, %v1319
        %v1368 = vmul.f32 %v1071, %v1320
        %v1369 = vmul.f32 %v1072, %v1321
        %v1370 = vmul.f32 %v1073, %v1322
        %v1374 = vperm.slane %v1041, 0
        %v1375 = vperm.slane %v1041, 1
        %v1376 = vperm.slane %v1041, 2
        %v1377 = vperm.slane %v1041, 3
        %v1378 = vperm.slane %v1041, 4
        %v1379 = vperm.slane %v1041, 5
        %v1380 = vperm.slane %v1041, 6
        %v1381 = vperm.slane %v1041, 7
        %v1382 = vperm.slane %v1045, 0
        %v1383 = vperm.slane %v1045, 1
        %v1384 = vperm.slane %v1045, 2
        %v1385 = vperm.slane %v1045, 3
        %v1386 = vperm.slane %v1045, 4
        %v1387 = vperm.slane %v1045, 5
        %v1388 = vperm.slane %v1045, 6
        %v1389 = vperm.slane %v1045, 7
        %v1390 = vperm.slane %v1049, 0
        %v1391 = vperm.slane %v1049, 1
        %v1392 = vperm.slane %v1049, 2
        %v1393 = vperm.slane %v1049, 3
        %v1394 = vperm.slane %v1049, 4
        %v1395 = vperm.slane %v1049, 5
        %v1396 = vperm.slane %v1049, 6
        %v1397 = vperm.slane %v1049, 7
        %v1422 = vadd.f32 %v1347, %v1374
        %v1423 = vadd.f32 %v1348, %v1375
        %v1424 = vadd.f32 %v1349, %v1376
        %v1425 = vadd.f32 %v1350, %v1377
        %v1426 = vadd.f32 %v1351, %v1378
        %v1427 = vadd.f32 %v1352, %v1379
        %v1428 = vadd.f32 %v1353, %v1380
        %v1429 = vadd.f32 %v1354, %v1381
        %v1430 = vadd.f32 %v1355, %v1382
        %v1431 = vadd.f32 %v1356, %v1383
        %v1432 = vadd.f32 %v1357, %v1384
        %v1433 = vadd.f32 %v1358, %v1385
        %v1434 = vadd.f32 %v1359, %v1386
        %v1435 = vadd.f32 %v1360, %v1387
        %v1436 = vadd.f32 %v1361, %v1388
        %v1437 = vadd.f32 %v1362, %v1389
        %v1438 = vadd.f32 %v1363, %v1390
        %v1439 = vadd.f32 %v1364, %v1391
        %v1440 = vadd.f32 %v1365, %v1392
        %v1441 = vadd.f32 %v1366, %v1393
        %v1442 = vadd.f32 %v1367, %v1394
        %v1443 = vadd.f32 %v1368, %v1395
        %v1444 = vadd.f32 %v1369, %v1396
        %v1445 = vadd.f32 %v1370, %v1397
        %v1446 = vmul.f32 %v1422, %v1098
        %v1447 = vmul.f32 %v1423, %v1099
        %v1448 = vmul.f32 %v1424, %v1100
        %v1449 = vmul.f32 %v1425, %v1101
        %v1450 = vmul.f32 %v1426, %v1102
        %v1451 = vmul.f32 %v1427, %v1103
        %v1452 = vmul.f32 %v1428, %v1104
        %v1453 = vmul.f32 %v1429, %v1105
        %v1454 = vmul.f32 %v1430, %v1106
        %v1455 = vmul.f32 %v1431, %v1107
        %v1456 = vmul.f32 %v1432, %v1108
        %v1457 = vmul.f32 %v1433, %v1109
        %v1458 = vmul.f32 %v1434, %v1110
        %v1459 = vmul.f32 %v1435, %v1111
        %v1460 = vmul.f32 %v1436, %v1112
        %v1461 = vmul.f32 %v1437, %v1113
        %v1462 = vmul.f32 %v1438, %v1114
        %v1463 = vmul.f32 %v1439, %v1115
        %v1464 = vmul.f32 %v1440, %v1116
        %v1465 = vmul.f32 %v1441, %v1117
        %v1466 = vmul.f32 %v1442, %v1118
        %v1467 = vmul.f32 %v1443, %v1119
        %v1468 = vmul.f32 %v1444, %v1120
        %v1469 = vmul.f32 %v1445, %v1121
        %v1470 = vadd.f32 %v1272, %v1446
        %v1471 = vadd.f32 %v1273, %v1447
        %v1472 = vadd.f32 %v1274, %v1448
        %v1473 = vadd.f32 %v1275, %v1449
        %v1474 = vadd.f32 %v1276, %v1450
        %v1475 = vadd.f32 %v1277, %v1451
        %v1476 = vadd.f32 %v1278, %v1452
        %v1477 = vadd.f32 %v1279, %v1453
        %v1478 = vadd.f32 %v1280, %v1454
        %v1479 = vadd.f32 %v1281, %v1455
        %v1480 = vadd.f32 %v1282, %v1456
        %v1481 = vadd.f32 %v1283, %v1457
        %v1482 = vadd.f32 %v1284, %v1458
        %v1483 = vadd.f32 %v1285, %v1459
        %v1484 = vadd.f32 %v1286, %v1460
        %v1485 = vadd.f32 %v1287, %v1461
        %v1486 = vadd.f32 %v1288, %v1462
        %v1487 = vadd.f32 %v1289, %v1463
        %v1488 = vadd.f32 %v1290, %v1464
        %v1489 = vadd.f32 %v1291, %v1465
        %v1490 = vadd.f32 %v1292, %v1466
        %v1491 = vadd.f32 %v1293, %v1467
        %v1492 = vadd.f32 %v1294, %v1468
        %v1493 = vadd.f32 %v1295, %v1469
        %1494 = vst [vmem:[#allocation2] sm:$0xff] %v1470
        %1495 = vst [vmem:[#allocation2 + $0x8] sm:$0xff] %v1471
        %1496 = vst [vmem:[#allocation2 + $0x10] sm:$0xff] %v1472
        %1497 = vst [vmem:[#allocation2 + $0x18] sm:$0xff] %v1473
        %1498 = vst [vmem:[#allocation2 + $0x20] sm:$0xff] %v1474
        %1499 = vst [vmem:[#allocation2 + $0x28] sm:$0xff] %v1475
        %1500 = vst [vmem:[#allocation2 + $0x30] sm:$0xff] %v1476
        %1501 = vst [vmem:[#allocation2 + $0x38] sm:$0xff] %v1477
        %1502 = vst [vmem:[#allocation2 + $0x40] sm:$0xff] %v1478
        %1503 = vst [vmem:[#allocation2 + $0x48] sm:$0xff] %v1479
        %1504 = vst [vmem:[#allocation2 + $0x50] sm:$0xff] %v1480
        %1505 = vst [vmem:[#allocation2 + $0x58] sm:$0xff] %v1481
        %1506 = vst [vmem:[#allocation2 + $0x60] sm:$0xff] %v1482
        %1507 = vst [vmem:[#allocation2 + $0x68] sm:$0xff] %v1483
        %1508 = vst [vmem:[#allocation2 + $0x70] sm:$0xff] %v1484
        %1509 = vst [vmem:[#allocation2 + $0x78] sm:$0xff] %v1485
        %1510 = vst [vmem:[#allocation2 + $0x80] sm:$0xff] %v1486
        %1511 = vst [vmem:[#allocation2 + $0x88] sm:$0xff] %v1487
        %1512 = vst [vmem:[#allocation2 + $0x90] sm:$0xff] %v1488
        %1513 = vst [vmem:[#allocation2 + $0x98] sm:$0xff] %v1489
        %1514 = vst [vmem:[#allocation2 + $0xa0] sm:$0xff] %v1490
        %1515 = vst [vmem:[#allocation2 + $0xa8] sm:$0xff] %v1491
        %1516 = vst [vmem:[#allocation2 + $0xb0] sm:$0xff] %v1492
        %1517 = vst [vmem:[#allocation2 + $0xb8] sm:$0xff] %v1493
        %s1518 = scalar_lea.vmem [#allocation8], 210
        %v1519 = vld [vmem:[%s1518] ss:$8 sm:$0xf]
        %v1520 = vld [vmem:[%s1518] ss:$8 sm:$0xf0]
        %v1521 = vor.u32 %v1519, %v1520
        %s1522 = scalar_lea.vmem [#allocation8], 274
        %v1523 = vld [vmem:[%s1522] ss:$8 sm:$0xf]
        %v1524 = vld [vmem:[%s1522] ss:$8 sm:$0xf0]
        %v1525 = vor.u32 %v1523, %v1524
        %s1526 = scalar_lea.vmem [#allocation8], 338
        %v1527 = vld [vmem:[%s1526] ss:$8 sm:$0xf]
        %v1528 = vld [vmem:[%s1526] ss:$8 sm:$0xf0]
        %v1529 = vor.u32 %v1527, %v1528
        %s1530 = scalar_lea.vmem [#allocation8], 211
        %v1531 = vld [vmem:[%s1530] ss:$8 sm:$0xf]
        %v1532 = vld [vmem:[%s1530] ss:$8 sm:$0xf0]
        %v1533 = vor.u32 %v1531, %v1532
        %s1534 = scalar_lea.vmem [#allocation8], 275
        %v1535 = vld [vmem:[%s1534] ss:$8 sm:$0xf]
        %v1536 = vld [vmem:[%s1534] ss:$8 sm:$0xf0]
        %v1537 = vor.u32 %v1535, %v1536
        %s1538 = scalar_lea.vmem [#allocation8], 339
        %v1539 = vld [vmem:[%s1538] ss:$8 sm:$0xf]
        %v1540 = vld [vmem:[%s1538] ss:$8 sm:$0xf0]
        %v1541 = vor.u32 %v1539, %v1540
        %s1542 = scalar_lea.vmem [#allocation8], 212
        %v1543 = vld [vmem:[%s1542] ss:$8 sm:$0xf]
        %v1544 = vld [vmem:[%s1542] ss:$8 sm:$0xf0]
        %v1545 = vor.u32 %v1543, %v1544
        %s1546 = scalar_lea.vmem [#allocation8], 276
        %v1547 = vld [vmem:[%s1546] ss:$8 sm:$0xf]
        %v1548 = vld [vmem:[%s1546] ss:$8 sm:$0xf0]
        %v1549 = vor.u32 %v1547, %v1548
        %s1550 = scalar_lea.vmem [#allocation8], 340
        %v1551 = vld [vmem:[%s1550] ss:$8 sm:$0xf]
        %v1552 = vld [vmem:[%s1550] ss:$8 sm:$0xf0]
        %v1553 = vor.u32 %v1551, %v1552
        %s1554 = scalar_lea.vmem [#allocation8], 213
        %v1555 = vld [vmem:[%s1554] ss:$8 sm:$0xf]
        %v1556 = vld [vmem:[%s1554] ss:$8 sm:$0xf0]
        %v1557 = vor.u32 %v1555, %v1556
        %s1558 = scalar_lea.vmem [#allocation8], 277
        %v1559 = vld [vmem:[%s1558] ss:$8 sm:$0xf]
        %v1560 = vld [vmem:[%s1558] ss:$8 sm:$0xf0]
        %v1561 = vor.u32 %v1559, %v1560
        %s1562 = scalar_lea.vmem [#allocation8], 341
        %v1563 = vld [vmem:[%s1562] ss:$8 sm:$0xf]
        %v1564 = vld [vmem:[%s1562] ss:$8 sm:$0xf0]
        %v1565 = vor.u32 %v1563, %v1564
        %v1566 = vld [vmem:[#allocation4] sm:$0xff]
        %v1567 = vld [vmem:[#allocation4 + $0x8] sm:$0xff]
        %v1568 = vld [vmem:[#allocation4 + $0x10] sm:$0xff]
        %v1569 = vld [vmem:[#allocation4 + $0x18] sm:$0xff]
        %v1570 = vld [vmem:[#allocation4 + $0x20] sm:$0xff]
        %v1571 = vld [vmem:[#allocation4 + $0x28] sm:$0xff]
        %v1572 = vld [vmem:[#allocation4 + $0x30] sm:$0xff]
        %v1573 = vld [vmem:[#allocation4 + $0x38] sm:$0xff]
        %v1574 = vld [vmem:[#allocation4 + $0x40] sm:$0xff]
        %v1575 = vld [vmem:[#allocation4 + $0x48] sm:$0xff]
        %v1576 = vld [vmem:[#allocation4 + $0x50] sm:$0xff]
        %v1577 = vld [vmem:[#allocation4 + $0x58] sm:$0xff]
        %v1578 = vld [vmem:[#allocation4 + $0x60] sm:$0xff]
        %v1579 = vld [vmem:[#allocation4 + $0x68] sm:$0xff]
        %v1580 = vld [vmem:[#allocation4 + $0x70] sm:$0xff]
        %v1581 = vld [vmem:[#allocation4 + $0x78] sm:$0xff]
        %v1582 = vld [vmem:[#allocation4 + $0x80] sm:$0xff]
        %v1583 = vld [vmem:[#allocation4 + $0x88] sm:$0xff]
        %v1584 = vld [vmem:[#allocation4 + $0x90] sm:$0xff]
        %v1585 = vld [vmem:[#allocation4 + $0x98] sm:$0xff]
        %v1586 = vld [vmem:[#allocation4 + $0xa0] sm:$0xff]
        %v1587 = vld [vmem:[#allocation4 + $0xa8] sm:$0xff]
        %v1588 = vld [vmem:[#allocation4 + $0xb0] sm:$0xff]
        %v1589 = vld [vmem:[#allocation2] sm:$0xff]
        %v1590 = vld [vmem:[#allocation2 + $0x8] sm:$0xff]
        %v1591 = vld [vmem:[#allocation2 + $0x10] sm:$0xff]
        %v1592 = vld [vmem:[#allocation2 + $0x18] sm:$0xff]
        %v1593 = vld [vmem:[#allocation2 + $0x20] sm:$0xff]
        %v1594 = vld [vmem:[#allocation2 + $0x28] sm:$0xff]
        %v1595 = vld [vmem:[#allocation2 + $0x30] sm:$0xff]
        %v1596 = vld [vmem:[#allocation2 + $0x38] sm:$0xff]
        %v1597 = vld [vmem:[#allocation2 + $0x40] sm:$0xff]
        %v1598 = vld [vmem:[#allocation2 + $0x48] sm:$0xff]
        %v1599 = vld [vmem:[#allocation2 + $0x50] sm:$0xff]
        %v1600 = vld [vmem:[#allocation2 + $0x58] sm:$0xff]
        %v1601 = vld [vmem:[#allocation2 + $0x60] sm:$0xff]
        %v1602 = vld [vmem:[#allocation2 + $0x68] sm:$0xff]
        %v1603 = vld [vmem:[#allocation2 + $0x70] sm:$0xff]
        %v1604 = vld [vmem:[#allocation2 + $0x78] sm:$0xff]
        %v1605 = vld [vmem:[#allocation2 + $0x80] sm:$0xff]
        %v1606 = vld [vmem:[#allocation2 + $0x88] sm:$0xff]
        %v1607 = vld [vmem:[#allocation2 + $0x90] sm:$0xff]
        %v1608 = vld [vmem:[#allocation2 + $0x98] sm:$0xff]
        %v1609 = vld [vmem:[#allocation2 + $0xa0] sm:$0xff]
        %v1610 = vld [vmem:[#allocation2 + $0xa8] sm:$0xff]
        %v1611 = vld [vmem:[#allocation2 + $0xb0] sm:$0xff]
        %v1612 = vld [vmem:[#allocation2 + $0xb8] sm:$0xff]
        %v1616 = vperm.slane %v1521, 0
        %v1617 = vperm.slane %v1521, 1
        %v1618 = vperm.slane %v1521, 2
        %v1619 = vperm.slane %v1521, 3
        %v1620 = vperm.slane %v1521, 4
        %v1621 = vperm.slane %v1521, 5
        %v1622 = vperm.slane %v1521, 6
        %v1623 = vperm.slane %v1521, 7
        %v1624 = vperm.slane %v1525, 0
        %v1625 = vperm.slane %v1525, 1
        %v1626 = vperm.slane %v1525, 2
        %v1627 = vperm.slane %v1525, 3
        %v1628 = vperm.slane %v1525, 4
        %v1629 = vperm.slane %v1525, 5
        %v1630 = vperm.slane %v1525, 6
        %v1631 = vperm.slane %v1525, 7
        %v1632 = vperm.slane %v1529, 0
        %v1633 = vperm.slane %v1529, 1
        %v1634 = vperm.slane %v1529, 2
        %v1635 = vperm.slane %v1529, 3
        %v1636 = vperm.slane %v1529, 4
        %v1637 = vperm.slane %v1529, 5
        %v1638 = vperm.slane %v1529, 6
        %v1662 = vmul.f32 %v1566, %v1616
        %v1663 = vmul.f32 %v1567, %v1617
        %v1664 = vmul.f32 %v1568, %v1618
        %v1665 = vmul.f32 %v1569, %v1619
        %v1666 = vmul.f32 %v1570, %v1620
        %v1667 = vmul.f32 %v1571, %v1621
        %v1668 = vmul.f32 %v1572, %v1622
        %v1669 = vmul.f32 %v1573, %v1623
        %v1670 = vmul.f32 %v1574, %v1624
        %v1671 = vmul.f32 %v1575, %v1625
        %v1672 = vmul.f32 %v1576, %v1626
        %v1673 = vmul.f32 %v1577, %v1627
        %v1674 = vmul.f32 %v1578, %v1628
        %v1675 = vmul.f32 %v1579, %v1629
        %v1676 = vmul.f32 %v1580, %v1630
        %v1677 = vmul.f32 %v1581, %v1631
        %v1678 = vmul.f32 %v1582, %v1632
        %v1679 = vmul.f32 %v1583, %v1633
        %v1680 = vmul.f32 %v1584, %v1634
        %v1681 = vmul.f32 %v1585, %v1635
        %v1682 = vmul.f32 %v1586, %v1636
        %v1683 = vmul.f32 %v1587, %v1637
        %v1684 = vmul.f32 %v1588, %v1638
        %v1688 = vperm.slane %v1533, 0
        %v1689 = vperm.slane %v1533, 1
        %v1690 = vperm.slane %v1533, 2
        %v1691 = vperm.slane %v1533, 3
        %v1692 = vperm.slane %v1533, 4
        %v1693 = vperm.slane %v1533, 5
        %v1694 = vperm.slane %v1533, 6
        %v1695 = vperm.slane %v1533, 7
        %v1696 = vperm.slane %v1537, 0
        %v1697 = vperm.slane %v1537, 1
        %v1698 = vperm.slane %v1537, 2
        %v1699 = vperm.slane %v1537, 3
        %v1700 = vperm.slane %v1537, 4
        %v1701 = vperm.slane %v1537, 5
        %v1702 = vperm.slane %v1537, 6
        %v1703 = vperm.slane %v1537, 7
        %v1704 = vperm.slane %v1541, 0
        %v1705 = vperm.slane %v1541, 1
        %v1706 = vperm.slane %v1541, 2
        %v1707 = vperm.slane %v1541, 3
        %v1708 = vperm.slane %v1541, 4
        %v1709 = vperm.slane %v1541, 5
        %v1710 = vperm.slane %v1541, 6
        %v1734 = vadd.f32 %v1662, %v1688
        %v1735 = vadd.f32 %v1663, %v1689
        %v1736 = vadd.f32 %v1664, %v1690
        %v1737 = vadd.f32 %v1665, %v1691
        %v1738 = vadd.f32 %v1666, %v1692
        %v1739 = vadd.f32 %v1667, %v1693
        %v1740 = vadd.f32 %v1668, %v1694
        %v1741 = vadd.f32 %v1669, %v1695
        %v1742 = vadd.f32 %v1670, %v1696
        %v1743 = vadd.f32 %v1671, %v1697
        %v1744 = vadd.f32 %v1672, %v1698
        %v1745 = vadd.f32 %v1673, %v1699
        %v1746 = vadd.f32 %v1674, %v1700
        %v1747 = vadd.f32 %v1675, %v1701
        %v1748 = vadd.f32 %v1676, %v1702
        %v1749 = vadd.f32 %v1677, %v1703
        %v1750 = vadd.f32 %v1678, %v1704
        %v1751 = vadd.f32 %v1679, %v1705
        %v1752 = vadd.f32 %v1680, %v1706
        %v1753 = vadd.f32 %v1681, %v1707
        %v1754 = vadd.f32 %v1682, %v1708
        %v1755 = vadd.f32 %v1683, %v1709
        %v1756 = vadd.f32 %v1684, %v1710
        %v1757 = vmul.f32 %v1734, %v1589
        %v1758 = vmul.f32 %v1735, %v1590
        %v1759 = vmul.f32 %v1736, %v1591
        %v1760 = vmul.f32 %v1737, %v1592
        %v1761 = vmul.f32 %v1738, %v1593
        %v1762 = vmul.f32 %v1739, %v1594
        %v1763 = vmul.f32 %v1740, %v1595
        %v1764 = vmul.f32 %v1741, %v1596
        %v1765 = vmul.f32 %v1742, %v1597
        %v1766 = vmul.f32 %v1743, %v1598
        %v1767 = vmul.f32 %v1744, %v1599
        %v1768 = vmul.f32 %v1745, %v1600
        %v1769 = vmul.f32 %v1746, %v1601
        %v1770 = vmul.f32 %v1747, %v1602
        %v1771 = vmul.f32 %v1748, %v1603
        %v1772 = vmul.f32 %v1749, %v1604
        %v1773 = vmul.f32 %v1750, %v1605
        %v1774 = vmul.f32 %v1751, %v1606
        %v1775 = vmul.f32 %v1752, %v1607
        %v1776 = vmul.f32 %v1753, %v1608
        %v1777 = vmul.f32 %v1754, %v1609
        %v1778 = vmul.f32 %v1755, %v1610
        %v1779 = vmul.f32 %v1756, %v1611
        %v1783 = vperm.slane %v1545, 0
        %v1784 = vperm.slane %v1545, 1
        %v1785 = vperm.slane %v1545, 2
        %v1786 = vperm.slane %v1545, 3
        %v1787 = vperm.slane %v1545, 4
        %v1788 = vperm.slane %v1545, 5
        %v1789 = vperm.slane %v1545, 6
        %v1790 = vperm.slane %v1545, 7
        %v1791 = vperm.slane %v1549, 0
        %v1792 = vperm.slane %v1549, 1
        %v1793 = vperm.slane %v1549, 2
        %v1794 = vperm.slane %v1549, 3
        %v1795 = vperm.slane %v1549, 4
        %v1796 = vperm.slane %v1549, 5
        %v1797 = vperm.slane %v1549, 6
        %v1798 = vperm.slane %v1549, 7
        %v1799 = vperm.slane %v1553, 0
        %v1800 = vperm.slane %v1553, 1
        %v1801 = vperm.slane %v1553, 2
        %v1802 = vperm.slane %v1553, 3
        %v1803 = vperm.slane %v1553, 4
        %v1804 = vperm.slane %v1553, 5
        %v1805 = vperm.slane %v1553, 6
        %v1829 = vmul.f32 %v1566, %v1783
        %v1830 = vmul.f32 %v1567, %v1784
        %v1831 = vmul.f32 %v1568, %v1785
        %v1832 = vmul.f32 %v1569, %v1786
        %v1833 = vmul.f32 %v1570, %v1787
        %v1834 = vmul.f32 %v1571, %v1788
        %v1835 = vmul.f32 %v1572, %v1789
        %v1836 = vmul.f32 %v1573, %v1790
        %v1837 = vmul.f32 %v1574, %v1791
        %v1838 = vmul.f32 %v1575, %v1792
        %v1839 = vmul.f32 %v1576, %v1793
        %v1840 = vmul.f32 %v1577, %v1794
        %v1841 = vmul.f32 %v1578, %v1795
        %v1842 = vmul.f32 %v1579, %v1796
        %v1843 = vmul.f32 %v1580, %v1797
        %v1844 = vmul.f32 %v1581, %v1798
        %v1845 = vmul.f32 %v1582, %v1799
        %v1846 = vmul.f32 %v1583, %v1800
        %v1847 = vmul.f32 %v1584, %v1801
        %v1848 = vmul.f32 %v1585, %v1802
        %v1849 = vmul.f32 %v1586, %v1803
        %v1850 = vmul.f32 %v1587, %v1804
        %v1851 = vmul.f32 %v1588, %v1805
        %v1855 = vperm.slane %v1557, 0
        %v1856 = vperm.slane %v1557, 1
        %v1857 = vperm.slane %v1557, 2
        %v1858 = vperm.slane %v1557, 3
        %v1859 = vperm.slane %v1557, 4
        %v1860 = vperm.slane %v1557, 5
        %v1861 = vperm.slane %v1557, 6
        %v1862 = vperm.slane %v1557, 7
        %v1863 = vperm.slane %v1561, 0
        %v1864 = vperm.slane %v1561, 1
        %v1865 = vperm.slane %v1561, 2
        %v1866 = vperm.slane %v1561, 3
        %v1867 = vperm.slane %v1561, 4
        %v1868 = vperm.slane %v1561, 5
        %v1869 = vperm.slane %v1561, 6
        %v1870 = vperm.slane %v1561, 7
        %v1871 = vperm.slane %v1565, 0
        %v1872 = vperm.slane %v1565, 1
        %v1873 = vperm.slane %v1565, 2
        %v1874 = vperm.slane %v1565, 3
        %v1875 = vperm.slane %v1565, 4
        %v1876 = vperm.slane %v1565, 5
        %v1877 = vperm.slane %v1565, 6
        %v1901 = vadd.f32 %v1829, %v1855
        %v1902 = vadd.f32 %v1830, %v1856
        %v1903 = vadd.f32 %v1831, %v1857
        %v1904 = vadd.f32 %v1832, %v1858
        %v1905 = vadd.f32 %v1833, %v1859
        %v1906 = vadd.f32 %v1834, %v1860
        %v1907 = vadd.f32 %v1835, %v1861
        %v1908 = vadd.f32 %v1836, %v1862
        %v1909 = vadd.f32 %v1837, %v1863
        %v1910 = vadd.f32 %v1838, %v1864
        %v1911 = vadd.f32 %v1839, %v1865
        %v1912 = vadd.f32 %v1840, %v1866
        %v1913 = vadd.f32 %v1841, %v1867
        %v1914 = vadd.f32 %v1842, %v1868
        %v1915 = vadd.f32 %v1843, %v1869
        %v1916 = vadd.f32 %v1844, %v1870
        %v1917 = vadd.f32 %v1845, %v1871
        %v1918 = vadd.f32 %v1846, %v1872
        %v1919 = vadd.f32 %v1847, %v1873
        %v1920 = vadd.f32 %v1848, %v1874
        %v1921 = vadd.f32 %v1849, %v1875
        %v1922 = vadd.f32 %v1850, %v1876
        %v1923 = vadd.f32 %v1851, %v1877
        %v1924 = vmul.f32 %v1901, %v1590
        %v1925 = vmul.f32 %v1902, %v1591
        %v1926 = vmul.f32 %v1903, %v1592
        %v1927 = vmul.f32 %v1904, %v1593
        %v1928 = vmul.f32 %v1905, %v1594
        %v1929 = vmul.f32 %v1906, %v1595
        %v1930 = vmul.f32 %v1907, %v1596
        %v1931 = vmul.f32 %v1908, %v1597
        %v1932 = vmul.f32 %v1909, %v1598
        %v1933 = vmul.f32 %v1910, %v1599
        %v1934 = vmul.f32 %v1911, %v1600
        %v1935 = vmul.f32 %v1912, %v1601
        %v1936 = vmul.f32 %v1913, %v1602
        %v1937 = vmul.f32 %v1914, %v1603
        %v1938 = vmul.f32 %v1915, %v1604
        %v1939 = vmul.f32 %v1916, %v1605
        %v1940 = vmul.f32 %v1917, %v1606
        %v1941 = vmul.f32 %v1918, %v1607
        %v1942 = vmul.f32 %v1919, %v1608
        %v1943 = vmul.f32 %v1920, %v1609
        %v1944 = vmul.f32 %v1921, %v1610
        %v1945 = vmul.f32 %v1922, %v1611
        %v1946 = vmul.f32 %v1923, %v1612
        %v1947 = vadd.f32 %v1757, %v1924
        %v1948 = vadd.f32 %v1758, %v1925
        %v1949 = vadd.f32 %v1759, %v1926
        %v1950 = vadd.f32 %v1760, %v1927
        %v1951 = vadd.f32 %v1761, %v1928
        %v1952 = vadd.f32 %v1762, %v1929
        %v1953 = vadd.f32 %v1763, %v1930
        %v1954 = vadd.f32 %v1764, %v1931
        %v1955 = vadd.f32 %v1765, %v1932
        %v1956 = vadd.f32 %v1766, %v1933
        %v1957 = vadd.f32 %v1767, %v1934
        %v1958 = vadd.f32 %v1768, %v1935
        %v1959 = vadd.f32 %v1769, %v1936
        %v1960 = vadd.f32 %v1770, %v1937
        %v1961 = vadd.f32 %v1771, %v1938
        %v1962 = vadd.f32 %v1772, %v1939
        %v1963 = vadd.f32 %v1773, %v1940
        %v1964 = vadd.f32 %v1774, %v1941
        %v1965 = vadd.f32 %v1775, %v1942
        %v1966 = vadd.f32 %v1776, %v1943
        %v1967 = vadd.f32 %v1777, %v1944
        %v1968 = vadd.f32 %v1778, %v1945
        %v1969 = vadd.f32 %v1779, %v1946
        %1970 = vst [vmem:[#allocation3] sm:$0xff] %v1947
        %1971 = vst [vmem:[#allocation3 + $0x8] sm:$0xff] %v1948
        %1972 = vst [vmem:[#allocation3 + $0x10] sm:$0xff] %v1949
        %1973 = vst [vmem:[#allocation3 + $0x18] sm:$0xff] %v1950
        %1974 = vst [vmem:[#allocation3 + $0x20] sm:$0xff] %v1951
        %1975 = vst [vmem:[#allocation3 + $0x28] sm:$0xff] %v1952
        %1976 = vst [vmem:[#allocation3 + $0x30] sm:$0xff] %v1953
        %1977 = vst [vmem:[#allocation3 + $0x38] sm:$0xff] %v1954
        %1978 = vst [vmem:[#allocation3 + $0x40] sm:$0xff] %v1955
        %1979 = vst [vmem:[#allocation3 + $0x48] sm:$0xff] %v1956
        %1980 = vst [vmem:[#allocation3 + $0x50] sm:$0xff] %v1957
        %1981 = vst [vmem:[#allocation3 + $0x58] sm:$0xff] %v1958
        %1982 = vst [vmem:[#allocation3 + $0x60] sm:$0xff] %v1959
        %1983 = vst [vmem:[#allocation3 + $0x68] sm:$0xff] %v1960
        %1984 = vst [vmem:[#allocation3 + $0x70] sm:$0xff] %v1961
        %1985 = vst [vmem:[#allocation3 + $0x78] sm:$0xff] %v1962
        %1986 = vst [vmem:[#allocation3 + $0x80] sm:$0xff] %v1963
        %1987 = vst [vmem:[#allocation3 + $0x88] sm:$0xff] %v1964
        %1988 = vst [vmem:[#allocation3 + $0x90] sm:$0xff] %v1965
        %1989 = vst [vmem:[#allocation3 + $0x98] sm:$0xff] %v1966
        %1990 = vst [vmem:[#allocation3 + $0xa0] sm:$0xff] %v1967
        %1991 = vst [vmem:[#allocation3 + $0xa8] sm:$0xff] %v1968
        %1992 = vst [vmem:[#allocation3 + $0xb0] sm:$0xff] %v1969
        %s1993 = scalar_lea.vmem [#allocation8], 214
        %v1994 = vld [vmem:[%s1993] ss:$8 sm:$0xf]
        %v1995 = vld [vmem:[%s1993] ss:$8 sm:$0xf0]
        %v1996 = vor.u32 %v1994, %v1995
        %s1997 = scalar_lea.vmem [#allocation8], 278
        %v1998 = vld [vmem:[%s1997] ss:$8 sm:$0xf]
        %v1999 = vld [vmem:[%s1997] ss:$8 sm:$0xf0]
        %v2000 = vor.u32 %v1998, %v1999
        %s2001 = scalar_lea.vmem [#allocation8], 342
        %v2002 = vld [vmem:[%s2001] ss:$8 sm:$0xf]
        %v2003 = vld [vmem:[%s2001] ss:$8 sm:$0x30]
        %v2004 = vor.u32 %v2002, %v2003
        %s2005 = scalar_lea.vmem [#allocation8], 215
        %v2006 = vld [vmem:[%s2005] ss:$8 sm:$0xf]
        %v2007 = vld [vmem:[%s2005] ss:$8 sm:$0xf0]
        %v2008 = vor.u32 %v2006, %v2007
        %s2009 = scalar_lea.vmem [#allocation8], 279
        %v2010 = vld [vmem:[%s2009] ss:$8 sm:$0xf]
        %v2011 = vld [vmem:[%s2009] ss:$8 sm:$0xf0]
        %v2012 = vor.u32 %v2010, %v2011
        %s2013 = scalar_lea.vmem [#allocation8], 343
        %v2014 = vld [vmem:[%s2013] ss:$8 sm:$0xf]
        %v2015 = vld [vmem:[%s2013] ss:$8 sm:$0x30]
        %v2016 = vor.u32 %v2014, %v2015
        %s2017 = scalar_lea.vmem [#allocation8], 416
        %v2018 = vld [vmem:[%s2017] ss:$8 sm:$0xf]
        %v2019 = vld [vmem:[%s2017] ss:$8 sm:$0xf0]
        %v2020 = vor.u32 %v2018, %v2019
        %s2021 = scalar_lea.vmem [#allocation8], 480
        %v2022 = vld [vmem:[%s2021] ss:$8 sm:$0xf]
        %v2023 = vld [vmem:[%s2021] ss:$8 sm:$0xf0]
        %v2024 = vor.u32 %v2022, %v2023
        %s2025 = scalar_lea.vmem [#allocation8], 544
        %v2026 = vld [vmem:[%s2025] ss:$8 sm:$0xf]
        %v2027 = vld [vmem:[%s2025] ss:$8 sm:$0x30]
        %v2028 = vor.u32 %v2026, %v2027
        %s2029 = scalar_lea.vmem [#allocation8], 417
        %v2030 = vld [vmem:[%s2029] ss:$8 sm:$0xf]
        %v2031 = vld [vmem:[%s2029] ss:$8 sm:$0xf0]
        %v2032 = vor.u32 %v2030, %v2031
        %s2033 = scalar_lea.vmem [#allocation8], 481
        %v2034 = vld [vmem:[%s2033] ss:$8 sm:$0xf]
        %v2035 = vld [vmem:[%s2033] ss:$8 sm:$0xf0]
        %v2036 = vor.u32 %v2034, %v2035
        %s2037 = scalar_lea.vmem [#allocation8], 545
        %v2038 = vld [vmem:[%s2037] ss:$8 sm:$0xf]
        %v2039 = vld [vmem:[%s2037] ss:$8 sm:$0x30]
        %v2040 = vor.u32 %v2038, %v2039
        %v2041 = vld [vmem:[#allocation4] sm:$0xff]
        %v2042 = vld [vmem:[#allocation4 + $0x8] sm:$0xff]
        %v2043 = vld [vmem:[#allocation4 + $0x10] sm:$0xff]
        %v2044 = vld [vmem:[#allocation4 + $0x18] sm:$0xff]
        %v2045 = vld [vmem:[#allocation4 + $0x20] sm:$0xff]
        %v2046 = vld [vmem:[#allocation4 + $0x28] sm:$0xff]
        %v2047 = vld [vmem:[#allocation4 + $0x30] sm:$0xff]
        %v2048 = vld [vmem:[#allocation4 + $0x38] sm:$0xff]
        %v2049 = vld [vmem:[#allocation4 + $0x40] sm:$0xff]
        %v2050 = vld [vmem:[#allocation4 + $0x48] sm:$0xff]
        %v2051 = vld [vmem:[#allocation4 + $0x50] sm:$0xff]
        %v2052 = vld [vmem:[#allocation4 + $0x58] sm:$0xff]
        %v2053 = vld [vmem:[#allocation4 + $0x60] sm:$0xff]
        %v2054 = vld [vmem:[#allocation4 + $0x68] sm:$0xff]
        %v2055 = vld [vmem:[#allocation4 + $0x70] sm:$0xff]
        %v2056 = vld [vmem:[#allocation4 + $0x78] sm:$0xff]
        %v2057 = vld [vmem:[#allocation4 + $0x80] sm:$0xff]
        %v2058 = vld [vmem:[#allocation4 + $0x88] sm:$0xff]
        %v2059 = vld [vmem:[#allocation4 + $0x90] sm:$0xff]
        %v2060 = vld [vmem:[#allocation4 + $0x98] sm:$0xff]
        %v2061 = vld [vmem:[#allocation4 + $0xa0] sm:$0xff]
        %v2062 = vld [vmem:[#allocation4 + $0xa8] sm:$0xff]
        %v2063 = vld [vmem:[#allocation3] sm:$0xff]
        %v2064 = vld [vmem:[#allocation3 + $0x8] sm:$0xff]
        %v2065 = vld [vmem:[#allocation3 + $0x10] sm:$0xff]
        %v2066 = vld [vmem:[#allocation3 + $0x18] sm:$0xff]
        %v2067 = vld [vmem:[#allocation3 + $0x20] sm:$0xff]
        %v2068 = vld [vmem:[#allocation3 + $0x28] sm:$0xff]
        %v2069 = vld [vmem:[#allocation3 + $0x30] sm:$0xff]
        %v2070 = vld [vmem:[#allocation3 + $0x38] sm:$0xff]
        %v2071 = vld [vmem:[#allocation3 + $0x40] sm:$0xff]
        %v2072 = vld [vmem:[#allocation3 + $0x48] sm:$0xff]
        %v2073 = vld [vmem:[#allocation3 + $0x50] sm:$0xff]
        %v2074 = vld [vmem:[#allocation3 + $0x58] sm:$0xff]
        %v2075 = vld [vmem:[#allocation3 + $0x60] sm:$0xff]
        %v2076 = vld [vmem:[#allocation3 + $0x68] sm:$0xff]
        %v2077 = vld [vmem:[#allocation3 + $0x70] sm:$0xff]
        %v2078 = vld [vmem:[#allocation3 + $0x78] sm:$0xff]
        %v2079 = vld [vmem:[#allocation3 + $0x80] sm:$0xff]
        %v2080 = vld [vmem:[#allocation3 + $0x88] sm:$0xff]
        %v2081 = vld [vmem:[#allocation3 + $0x90] sm:$0xff]
        %v2082 = vld [vmem:[#allocation3 + $0x98] sm:$0xff]
        %v2083 = vld [vmem:[#allocation3 + $0xa0] sm:$0xff]
        %v2084 = vld [vmem:[#allocation3 + $0xa8] sm:$0xff]
        %v2085 = vld [vmem:[#allocation3 + $0xb0] sm:$0xff]
        %v2089 = vperm.slane %v1996, 0
        %v2090 = vperm.slane %v1996, 1
        %v2091 = vperm.slane %v1996, 2
        %v2092 = vperm.slane %v1996, 3
        %v2093 = vperm.slane %v1996, 4
        %v2094 = vperm.slane %v1996, 5
        %v2095 = vperm.slane %v1996, 6
        %v2096 = vperm.slane %v1996, 7
        %v2097 = vperm.slane %v2000, 0
        %v2098 = vperm.slane %v2000, 1
        %v2099 = vperm.slane %v2000, 2
        %v2100 = vperm.slane %v2000, 3
        %v2101 = vperm.slane %v2000, 4
        %v2102 = vperm.slane %v2000, 5
        %v2103 = vperm.slane %v2000, 6
        %v2104 = vperm.slane %v2000, 7
        %v2105 = vperm.slane %v2004, 0
        %v2106 = vperm.slane %v2004, 1
        %v2107 = vperm.slane %v2004, 2
        %v2108 = vperm.slane %v2004, 3
        %v2109 = vperm.slane %v2004, 4
        %v2110 = vperm.slane %v2004, 5
        %v2133 = vmul.f32 %v2041, %v2089
        %v2134 = vmul.f32 %v2042, %v2090
        %v2135 = vmul.f32 %v2043, %v2091
        %v2136 = vmul.f32 %v2044, %v2092
        %v2137 = vmul.f32 %v2045, %v2093
        %v2138 = vmul.f32 %v2046, %v2094
        %v2139 = vmul.f32 %v2047, %v2095
        %v2140 = vmul.f32 %v2048, %v2096
        %v2141 = vmul.f32 %v2049, %v2097
        %v2142 = vmul.f32 %v2050, %v2098
        %v2143 = vmul.f32 %v2051, %v2099
        %v2144 = vmul.f32 %v2052, %v2100
        %v2145 = vmul.f32 %v2053, %v2101
        %v2146 = vmul.f32 %v2054, %v2102
        %v2147 = vmul.f32 %v2055, %v2103
        %v2148 = vmul.f32 %v2056, %v2104
        %v2149 = vmul.f32 %v2057, %v2105
        %v2150 = vmul.f32 %v2058, %v2106
        %v2151 = vmul.f32 %v2059, %v2107
        %v2152 = vmul.f32 %v2060, %v2108
        %v2153 = vmul.f32 %v2061, %v2109
        %v2154 = vmul.f32 %v2062, %v2110
        %v2158 = vperm.slane %v2008, 0
        %v2159 = vperm.slane %v2008, 1
        %v2160 = vperm.slane %v2008, 2
        %v2161 = vperm.slane %v2008, 3
        %v2162 = vperm.slane %v2008, 4
        %v2163 = vperm.slane %v2008, 5
        %v2164 = vperm.slane %v2008, 6
        %v2165 = vperm.slane %v2008, 7
        %v2166 = vperm.slane %v2012, 0
        %v2167 = vperm.slane %v2012, 1
        %v2168 = vperm.slane %v2012, 2
        %v2169 = vperm.slane %v2012, 3
        %v2170 = vperm.slane %v2012, 4
        %v2171 = vperm.slane %v2012, 5
        %v2172 = vperm.slane %v2012, 6
        %v2173 = vperm.slane %v2012, 7
        %v2174 = vperm.slane %v2016, 0
        %v2175 = vperm.slane %v2016, 1
        %v2176 = vperm.slane %v2016, 2
        %v2177 = vperm.slane %v2016, 3
        %v2178 = vperm.slane %v2016, 4
        %v2179 = vperm.slane %v2016, 5
        %v2202 = vadd.f32 %v2133, %v2158
        %v2203 = vadd.f32 %v2134, %v2159
        %v2204 = vadd.f32 %v2135, %v2160
        %v2205 = vadd.f32 %v2136, %v2161
        %v2206 = vadd.f32 %v2137, %v2162
        %v2207 = vadd.f32 %v2138, %v2163
        %v2208 = vadd.f32 %v2139, %v2164
        %v2209 = vadd.f32 %v2140, %v2165
        %v2210 = vadd.f32 %v2141, %v2166
        %v2211 = vadd.f32 %v2142, %v2167
        %v2212 = vadd.f32 %v2143, %v2168
        %v2213 = vadd.f32 %v2144, %v2169
        %v2214 = vadd.f32 %v2145, %v2170
        %v2215 = vadd.f32 %v2146, %v2171
        %v2216 = vadd.f32 %v2147, %v2172
        %v2217 = vadd.f32 %v2148, %v2173
        %v2218 = vadd.f32 %v2149, %v2174
        %v2219 = vadd.f32 %v2150, %v2175
        %v2220 = vadd.f32 %v2151, %v2176
        %v2221 = vadd.f32 %v2152, %v2177
        %v2222 = vadd.f32 %v2153, %v2178
        %v2223 = vadd.f32 %v2154, %v2179
        %v2224 = vmul.f32 %v2202, %v2063
        %v2225 = vmul.f32 %v2203, %v2064
        %v2226 = vmul.f32 %v2204, %v2065
        %v2227 = vmul.f32 %v2205, %v2066
        %v2228 = vmul.f32 %v2206, %v2067
        %v2229 = vmul.f32 %v2207, %v2068
        %v2230 = vmul.f32 %v2208, %v2069
        %v2231 = vmul.f32 %v2209, %v2070
        %v2232 = vmul.f32 %v2210, %v2071
        %v2233 = vmul.f32 %v2211, %v2072
        %v2234 = vmul.f32 %v2212, %v2073
        %v2235 = vmul.f32 %v2213, %v2074
        %v2236 = vmul.f32 %v2214, %v2075
        %v2237 = vmul.f32 %v2215, %v2076
        %v2238 = vmul.f32 %v2216, %v2077
        %v2239 = vmul.f32 %v2217, %v2078
        %v2240 = vmul.f32 %v2218, %v2079
        %v2241 = vmul.f32 %v2219, %v2080
        %v2242 = vmul.f32 %v2220, %v2081
        %v2243 = vmul.f32 %v2221, %v2082
        %v2244 = vmul.f32 %v2222, %v2083
        %v2245 = vmul.f32 %v2223, %v2084
        %v2249 = vperm.slane %v2020, 0
        %v2250 = vperm.slane %v2020, 1
        %v2251 = vperm.slane %v2020, 2
        %v2252 = vperm.slane %v2020, 3
        %v2253 = vperm.slane %v2020, 4
        %v2254 = vperm.slane %v2020, 5
        %v2255 = vperm.slane %v2020, 6
        %v2256 = vperm.slane %v2020, 7
        %v2257 = vperm.slane %v2024, 0
        %v2258 = vperm.slane %v2024, 1
        %v2259 = vperm.slane %v2024, 2
        %v2260 = vperm.slane %v2024, 3
        %v2261 = vperm.slane %v2024, 4
        %v2262 = vperm.slane %v2024, 5
        %v2263 = vperm.slane %v2024, 6
        %v2264 = vperm.slane %v2024, 7
        %v2265 = vperm.slane %v2028, 0
        %v2266 = vperm.slane %v2028, 1
        %v2267 = vperm.slane %v2028, 2
        %v2268 = vperm.slane %v2028, 3
        %v2269 = vperm.slane %v2028, 4
        %v2270 = vperm.slane %v2028, 5
        %v2293 = vmul.f32 %v2041, %v2249
        %v2294 = vmul.f32 %v2042, %v2250
        %v2295 = vmul.f32 %v2043, %v2251
        %v2296 = vmul.f32 %v2044, %v2252
        %v2297 = vmul.f32 %v2045, %v2253
        %v2298 = vmul.f32 %v2046, %v2254
        %v2299 = vmul.f32 %v2047, %v2255
        %v2300 = vmul.f32 %v2048, %v2256
        %v2301 = vmul.f32 %v2049, %v2257
        %v2302 = vmul.f32 %v2050, %v2258
        %v2303 = vmul.f32 %v2051, %v2259
        %v2304 = vmul.f32 %v2052, %v2260
        %v2305 = vmul.f32 %v2053, %v2261
        %v2306 = vmul.f32 %v2054, %v2262
        %v2307 = vmul.f32 %v2055, %v2263
        %v2308 = vmul.f32 %v2056, %v2264
        %v2309 = vmul.f32 %v2057, %v2265
        %v2310 = vmul.f32 %v2058, %v2266
        %v2311 = vmul.f32 %v2059, %v2267
        %v2312 = vmul.f32 %v2060, %v2268
        %v2313 = vmul.f32 %v2061, %v2269
        %v2314 = vmul.f32 %v2062, %v2270
        %v2318 = vperm.slane %v2032, 0
        %v2319 = vperm.slane %v2032, 1
        %v2320 = vperm.slane %v2032, 2
        %v2321 = vperm.slane %v2032, 3
        %v2322 = vperm.slane %v2032, 4
        %v2323 = vperm.slane %v2032, 5
        %v2324 = vperm.slane %v2032, 6
        %v2325 = vperm.slane %v2032, 7
        %v2326 = vperm.slane %v2036, 0
        %v2327 = vperm.slane %v2036, 1
        %v2328 = vperm.slane %v2036, 2
        %v2329 = vperm.slane %v2036, 3
        %v2330 = vperm.slane %v2036, 4
        %v2331 = vperm.slane %v2036, 5
        %v2332 = vperm.slane %v2036, 6
        %v2333 = vperm.slane %v2036, 7
        %v2334 = vperm.slane %v2040, 0
        %v2335 = vperm.slane %v2040, 1
        %v2336 = vperm.slane %v2040, 2
        %v2337 = vperm.slane %v2040, 3
        %v2338 = vperm.slane %v2040, 4
        %v2339 = vperm.slane %v2040, 5
        %v2362 = vadd.f32 %v2293, %v2318
        %v2363 = vadd.f32 %v2294, %v2319
        %v2364 = vadd.f32 %v2295, %v2320
        %v2365 = vadd.f32 %v2296, %v2321
        %v2366 = vadd.f32 %v2297, %v2322
        %v2367 = vadd.f32 %v2298, %v2323
        %v2368 = vadd.f32 %v2299, %v2324
        %v2369 = vadd.f32 %v2300, %v2325
        %v2370 = vadd.f32 %v2301, %v2326
        %v2371 = vadd.f32 %v2302, %v2327
        %v2372 = vadd.f32 %v2303, %v2328
        %v2373 = vadd.f32 %v2304, %v2329
        %v2374 = vadd.f32 %v2305, %v2330
        %v2375 = vadd.f32 %v2306, %v2331
        %v2376 = vadd.f32 %v2307, %v2332
        %v2377 = vadd.f32 %v2308, %v2333
        %v2378 = vadd.f32 %v2309, %v2334
        %v2379 = vadd.f32 %v2310, %v2335
        %v2380 = vadd.f32 %v2311, %v2336
        %v2381 = vadd.f32 %v2312, %v2337
        %v2382 = vadd.f32 %v2313, %v2338
        %v2383 = vadd.f32 %v2314, %v2339
        %v2384 = vmul.f32 %v2362, %v2064
        %v2385 = vmul.f32 %v2363, %v2065
        %v2386 = vmul.f32 %v2364, %v2066
        %v2387 = vmul.f32 %v2365, %v2067
        %v2388 = vmul.f32 %v2366, %v2068
        %v2389 = vmul.f32 %v2367, %v2069
        %v2390 = vmul.f32 %v2368, %v2070
        %v2391 = vmul.f32 %v2369, %v2071
        %v2392 = vmul.f32 %v2370, %v2072
        %v2393 = vmul.f32 %v2371, %v2073
        %v2394 = vmul.f32 %v2372, %v2074
        %v2395 = vmul.f32 %v2373, %v2075
        %v2396 = vmul.f32 %v2374, %v2076
        %v2397 = vmul.f32 %v2375, %v2077
        %v2398 = vmul.f32 %v2376, %v2078
        %v2399 = vmul.f32 %v2377, %v2079
        %v2400 = vmul.f32 %v2378, %v2080
        %v2401 = vmul.f32 %v2379, %v2081
        %v2402 = vmul.f32 %v2380, %v2082
        %v2403 = vmul.f32 %v2381, %v2083
        %v2404 = vmul.f32 %v2382, %v2084
        %v2405 = vmul.f32 %v2383, %v2085
        %v2406 = vadd.f32 %v2224, %v2384
        %v2407 = vadd.f32 %v2225, %v2385
        %v2408 = vadd.f32 %v2226, %v2386
        %v2409 = vadd.f32 %v2227, %v2387
        %v2410 = vadd.f32 %v2228, %v2388
        %v2411 = vadd.f32 %v2229, %v2389
        %v2412 = vadd.f32 %v2230, %v2390
        %v2413 = vadd.f32 %v2231, %v2391
        %v2414 = vadd.f32 %v2232, %v2392
        %v2415 = vadd.f32 %v2233, %v2393
        %v2416 = vadd.f32 %v2234, %v2394
        %v2417 = vadd.f32 %v2235, %v2395
        %v2418 = vadd.f32 %v2236, %v2396
        %v2419 = vadd.f32 %v2237, %v2397
        %v2420 = vadd.f32 %v2238, %v2398
        %v2421 = vadd.f32 %v2239, %v2399
        %v2422 = vadd.f32 %v2240, %v2400
        %v2423 = vadd.f32 %v2241, %v2401
        %v2424 = vadd.f32 %v2242, %v2402
        %v2425 = vadd.f32 %v2243, %v2403
        %v2426 = vadd.f32 %v2244, %v2404
        %v2427 = vadd.f32 %v2245, %v2405
        %2428 = vst [vmem:[#allocation2] sm:$0xff] %v2406
        %2429 = vst [vmem:[#allocation2 + $0x8] sm:$0xff] %v2407
        %2430 = vst [vmem:[#allocation2 + $0x10] sm:$0xff] %v2408
        %2431 = vst [vmem:[#allocation2 + $0x18] sm:$0xff] %v2409
        %2432 = vst [vmem:[#allocation2 + $0x20] sm:$0xff] %v2410
        %2433 = vst [vmem:[#allocation2 + $0x28] sm:$0xff] %v2411
        %2434 = vst [vmem:[#allocation2 + $0x30] sm:$0xff] %v2412
        %2435 = vst [vmem:[#allocation2 + $0x38] sm:$0xff] %v2413
        %2436 = vst [vmem:[#allocation2 + $0x40] sm:$0xff] %v2414
        %2437 = vst [vmem:[#allocation2 + $0x48] sm:$0xff] %v2415
        %2438 = vst [vmem:[#allocation2 + $0x50] sm:$0xff] %v2416
        %2439 = vst [vmem:[#allocation2 + $0x58] sm:$0xff] %v2417
        %2440 = vst [vmem:[#allocation2 + $0x60] sm:$0xff] %v2418
        %2441 = vst [vmem:[#allocation2 + $0x68] sm:$0xff] %v2419
        %2442 = vst [vmem:[#allocation2 + $0x70] sm:$0xff] %v2420
        %2443 = vst [vmem:[#allocation2 + $0x78] sm:$0xff] %v2421
        %2444 = vst [vmem:[#allocation2 + $0x80] sm:$0xff] %v2422
        %2445 = vst [vmem:[#allocation2 + $0x88] sm:$0xff] %v2423
        %2446 = vst [vmem:[#allocation2 + $0x90] sm:$0xff] %v2424
        %2447 = vst [vmem:[#allocation2 + $0x98] sm:$0xff] %v2425
        %2448 = vst [vmem:[#allocation2 + $0xa0] sm:$0xff] %v2426
        %2449 = vst [vmem:[#allocation2 + $0xa8] sm:$0xff] %v2427
        %s2450 = scalar_lea.vmem [#allocation8], 418
        %v2451 = vld [vmem:[%s2450] ss:$8 sm:$0xf]
        %v2452 = vld [vmem:[%s2450] ss:$8 sm:$0xf0]
        %v2453 = vor.u32 %v2451, %v2452
        %s2454 = scalar_lea.vmem [#allocation8], 482
        %v2455 = vld [vmem:[%s2454] ss:$8 sm:$0xf]
        %v2456 = vld [vmem:[%s2454] ss:$8 sm:$0xf0]
        %v2457 = vor.u32 %v2455, %v2456
        %s2458 = scalar_lea.vmem [#allocation8], 546
        %v2459 = vld [vmem:[%s2458] ss:$8 sm:$0xf]
        %v2460 = vld [vmem:[%s2458] ss:$8 sm:$0x10]
        %v2461 = vor.u32 %v2459, %v2460
        %s2462 = scalar_lea.vmem [#allocation8], 419
        %v2463 = vld [vmem:[%s2462] ss:$8 sm:$0xf]
        %v2464 = vld [vmem:[%s2462] ss:$8 sm:$0xf0]
        %v2465 = vor.u32 %v2463, %v2464
        %s2466 = scalar_lea.vmem [#allocation8], 483
        %v2467 = vld [vmem:[%s2466] ss:$8 sm:$0xf]
        %v2468 = vld [vmem:[%s2466] ss:$8 sm:$0xf0]
        %v2469 = vor.u32 %v2467, %v2468
        %s2470 = scalar_lea.vmem [#allocation8], 547
        %v2471 = vld [vmem:[%s2470] ss:$8 sm:$0xf]
        %v2472 = vld [vmem:[%s2470] ss:$8 sm:$0x10]
        %v2473 = vor.u32 %v2471, %v2472
        %s2474 = scalar_lea.vmem [#allocation8], 420
        %v2475 = vld [vmem:[%s2474] ss:$8 sm:$0xf]
        %v2476 = vld [vmem:[%s2474] ss:$8 sm:$0xf0]
        %v2477 = vor.u32 %v2475, %v2476
        %s2478 = scalar_lea.vmem [#allocation8], 484
        %v2479 = vld [vmem:[%s2478] ss:$8 sm:$0xf]
        %v2480 = vld [vmem:[%s2478] ss:$8 sm:$0xf0]
        %v2481 = vor.u32 %v2479, %v2480
        %s2482 = scalar_lea.vmem [#allocation8], 548
        %v2483 = vld [vmem:[%s2482] ss:$8 sm:$0xf]
        %v2484 = vld [vmem:[%s2482] ss:$8 sm:$0x10]
        %v2485 = vor.u32 %v2483, %v2484
        %s2486 = scalar_lea.vmem [#allocation8], 421
        %v2487 = vld [vmem:[%s2486] ss:$8 sm:$0xf]
        %v2488 = vld [vmem:[%s2486] ss:$8 sm:$0xf0]
        %v2489 = vor.u32 %v2487, %v2488
        %s2490 = scalar_lea.vmem [#allocation8], 485
        %v2491 = vld [vmem:[%s2490] ss:$8 sm:$0xf]
        %v2492 = vld [vmem:[%s2490] ss:$8 sm:$0xf0]
        %v2493 = vor.u32 %v2491, %v2492
        %s2494 = scalar_lea.vmem [#allocation8], 549
        %v2495 = vld [vmem:[%s2494] ss:$8 sm:$0xf]
        %v2496 = vld [vmem:[%s2494] ss:$8 sm:$0x10]
        %v2497 = vor.u32 %v2495, %v2496
        %v2498 = vld [vmem:[#allocation4] sm:$0xff]
        %v2499 = vld [vmem:[#allocation4 + $0x8] sm:$0xff]
        %v2500 = vld [vmem:[#allocation4 + $0x10] sm:$0xff]
        %v2501 = vld [vmem:[#allocation4 + $0x18] sm:$0xff]
        %v2502 = vld [vmem:[#allocation4 + $0x20] sm:$0xff]
        %v2503 = vld [vmem:[#allocation4 + $0x28] sm:$0xff]
        %v2504 = vld [vmem:[#allocation4 + $0x30] sm:$0xff]
        %v2505 = vld [vmem:[#allocation4 + $0x38] sm:$0xff]
        %v2506 = vld [vmem:[#allocation4 + $0x40] sm:$0xff]
        %v2507 = vld [vmem:[#allocation4 + $0x48] sm:$0xff]
        %v2508 = vld [vmem:[#allocation4 + $0x50] sm:$0xff]
        %v2509 = vld [vmem:[#allocation4 + $0x58] sm:$0xff]
        %v2510 = vld [vmem:[#allocation4 + $0x60] sm:$0xff]
        %v2511 = vld [vmem:[#allocation4 + $0x68] sm:$0xff]
        %v2512 = vld [vmem:[#allocation4 + $0x70] sm:$0xff]
        %v2513 = vld [vmem:[#allocation4 + $0x78] sm:$0xff]
        %v2514 = vld [vmem:[#allocation4 + $0x80] sm:$0xff]
        %v2515 = vld [vmem:[#allocation4 + $0x88] sm:$0xff]
        %v2516 = vld [vmem:[#allocation4 + $0x90] sm:$0xff]
        %v2517 = vld [vmem:[#allocation4 + $0x98] sm:$0xff]
        %v2518 = vld [vmem:[#allocation4 + $0xa0] sm:$0xff]
        %v2519 = vld [vmem:[#allocation2] sm:$0xff]
        %v2520 = vld [vmem:[#allocation2 + $0x8] sm:$0xff]
        %v2521 = vld [vmem:[#allocation2 + $0x10] sm:$0xff]
        %v2522 = vld [vmem:[#allocation2 + $0x18] sm:$0xff]
        %v2523 = vld [vmem:[#allocation2 + $0x20] sm:$0xff]
        %v2524 = vld [vmem:[#allocation2 + $0x28] sm:$0xff]
        %v2525 = vld [vmem:[#allocation2 + $0x30] sm:$0xff]
        %v2526 = vld [vmem:[#allocation2 + $0x38] sm:$0xff]
        %v2527 = vld [vmem:[#allocation2 + $0x40] sm:$0xff]
        %v2528 = vld [vmem:[#allocation2 + $0x48] sm:$0xff]
        %v2529 = vld [vmem:[#allocation2 + $0x50] sm:$0xff]
        %v2530 = vld [vmem:[#allocation2 + $0x58] sm:$0xff]
        %v2531 = vld [vmem:[#allocation2 + $0x60] sm:$0xff]
        %v2532 = vld [vmem:[#allocation2 + $0x68] sm:$0xff]
        %v2533 = vld [vmem:[#allocation2 + $0x70] sm:$0xff]
        %v2534 = vld [vmem:[#allocation2 + $0x78] sm:$0xff]
        %v2535 = vld [vmem:[#allocation2 + $0x80] sm:$0xff]
        %v2536 = vld [vmem:[#allocation2 + $0x88] sm:$0xff]
        %v2537 = vld [vmem:[#allocation2 + $0x90] sm:$0xff]
        %v2538 = vld [vmem:[#allocation2 + $0x98] sm:$0xff]
        %v2539 = vld [vmem:[#allocation2 + $0xa0] sm:$0xff]
        %v2540 = vld [vmem:[#allocation2 + $0xa8] sm:$0xff]
        %v2544 = vperm.slane %v2453, 0
        %v2545 = vperm.slane %v2453, 1
        %v2546 = vperm.slane %v2453, 2
        %v2547 = vperm.slane %v2453, 3
        %v2548 = vperm.slane %v2453, 4
        %v2549 = vperm.slane %v2453, 5
        %v2550 = vperm.slane %v2453, 6
        %v2551 = vperm.slane %v2453, 7
        %v2552 = vperm.slane %v2457, 0
        %v2553 = vperm.slane %v2457, 1
        %v2554 = vperm.slane %v2457, 2
        %v2555 = vperm.slane %v2457, 3
        %v2556 = vperm.slane %v2457, 4
        %v2557 = vperm.slane %v2457, 5
        %v2558 = vperm.slane %v2457, 6
        %v2559 = vperm.slane %v2457, 7
        %v2560 = vperm.slane %v2461, 0
        %v2561 = vperm.slane %v2461, 1
        %v2562 = vperm.slane %v2461, 2
        %v2563 = vperm.slane %v2461, 3
        %v2564 = vperm.slane %v2461, 4
        %v2586 = vmul.f32 %v2498, %v2544
        %v2587 = vmul.f32 %v2499, %v2545
        %v2588 = vmul.f32 %v2500, %v2546
        %v2589 = vmul.f32 %v2501, %v2547
        %v2590 = vmul.f32 %v2502, %v2548
        %v2591 = vmul.f32 %v2503, %v2549
        %v2592 = vmul.f32 %v2504, %v2550
        %v2593 = vmul.f32 %v2505, %v2551
        %v2594 = vmul.f32 %v2506, %v2552
        %v2595 = vmul.f32 %v2507, %v2553
        %v2596 = vmul.f32 %v2508, %v2554
        %v2597 = vmul.f32 %v2509, %v2555
        %v2598 = vmul.f32 %v2510, %v2556
        %v2599 = vmul.f32 %v2511, %v2557
        %v2600 = vmul.f32 %v2512, %v2558
        %v2601 = vmul.f32 %v2513, %v2559
        %v2602 = vmul.f32 %v2514, %v2560
        %v2603 = vmul.f32 %v2515, %v2561
        %v2604 = vmul.f32 %v2516, %v2562
        %v2605 = vmul.f32 %v2517, %v2563
        %v2606 = vmul.f32 %v2518, %v2564
        %v2610 = vperm.slane %v2465, 0
        %v2611 = vperm.slane %v2465, 1
        %v2612 = vperm.slane %v2465, 2
        %v2613 = vperm.slane %v2465, 3
        %v2614 = vperm.slane %v2465, 4
        %v2615 = vperm.slane %v2465, 5
        %v2616 = vperm.slane %v2465, 6
        %v2617 = vperm.slane %v2465, 7
        %v2618 = vperm.slane %v2469, 0
        %v2619 = vperm.slane %v2469, 1
        %v2620 = vperm.slane %v2469, 2
        %v2621 = vperm.slane %v2469, 3
        %v2622 = vperm.slane %v2469, 4
        %v2623 = vperm.slane %v2469, 5
        %v2624 = vperm.slane %v2469, 6
        %v2625 = vperm.slane %v2469, 7
        %v2626 = vperm.slane %v2473, 0
        %v2627 = vperm.slane %v2473, 1
        %v2628 = vperm.slane %v2473, 2
        %v2629 = vperm.slane %v2473, 3
        %v2630 = vperm.slane %v2473, 4
        %v2652 = vadd.f32 %v2586, %v2610
        %v2653 = vadd.f32 %v2587, %v2611
        %v2654 = vadd.f32 %v2588, %v2612
        %v2655 = vadd.f32 %v2589, %v2613
        %v2656 = vadd.f32 %v2590, %v2614
        %v2657 = vadd.f32 %v2591, %v2615
        %v2658 = vadd.f32 %v2592, %v2616
        %v2659 = vadd.f32 %v2593, %v2617
        %v2660 = vadd.f32 %v2594, %v2618
        %v2661 = vadd.f32 %v2595, %v2619
        %v2662 = vadd.f32 %v2596, %v2620
        %v2663 = vadd.f32 %v2597, %v2621
        %v2664 = vadd.f32 %v2598, %v2622
        %v2665 = vadd.f32 %v2599, %v2623
        %v2666 = vadd.f32 %v2600, %v2624
        %v2667 = vadd.f32 %v2601, %v2625
        %v2668 = vadd.f32 %v2602, %v2626
        %v2669 = vadd.f32 %v2603, %v2627
        %v2670 = vadd.f32 %v2604, %v2628
        %v2671 = vadd.f32 %v2605, %v2629
        %v2672 = vadd.f32 %v2606, %v2630
        %v2673 = vmul.f32 %v2652, %v2519
        %v2674 = vmul.f32 %v2653, %v2520
        %v2675 = vmul.f32 %v2654, %v2521
        %v2676 = vmul.f32 %v2655, %v2522
        %v2677 = vmul.f32 %v2656, %v2523
        %v2678 = vmul.f32 %v2657, %v2524
        %v2679 = vmul.f32 %v2658, %v2525
        %v2680 = vmul.f32 %v2659, %v2526
        %v2681 = vmul.f32 %v2660, %v2527
        %v2682 = vmul.f32 %v2661, %v2528
        %v2683 = vmul.f32 %v2662, %v2529
        %v2684 = vmul.f32 %v2663, %v2530
        %v2685 = vmul.f32 %v2664, %v2531
        %v2686 = vmul.f32 %v2665, %v2532
        %v2687 = vmul.f32 %v2666, %v2533
        %v2688 = vmul.f32 %v2667, %v2534
        %v2689 = vmul.f32 %v2668, %v2535
        %v2690 = vmul.f32 %v2669, %v2536
        %v2691 = vmul.f32 %v2670, %v2537
        %v2692 = vmul.f32 %v2671, %v2538
        %v2693 = vmul.f32 %v2672, %v2539
        %v2697 = vperm.slane %v2477, 0
        %v2698 = vperm.slane %v2477, 1
        %v2699 = vperm.slane %v2477, 2
        %v2700 = vperm.slane %v2477, 3
        %v2701 = vperm.slane %v2477, 4
        %v2702 = vperm.slane %v2477, 5
        %v2703 = vperm.slane %v2477, 6
        %v2704 = vperm.slane %v2477, 7
        %v2705 = vperm.slane %v2481, 0
        %v2706 = vperm.slane %v2481, 1
        %v2707 = vperm.slane %v2481, 2
        %v2708 = vperm.slane %v2481, 3
        %v2709 = vperm.slane %v2481, 4
        %v2710 = vperm.slane %v2481, 5
        %v2711 = vperm.slane %v2481, 6
        %v2712 = vperm.slane %v2481, 7
        %v2713 = vperm.slane %v2485, 0
        %v2714 = vperm.slane %v2485, 1
        %v2715 = vperm.slane %v2485, 2
        %v2716 = vperm.slane %v2485, 3
        %v2717 = vperm.slane %v2485, 4
        %v2739 = vmul.f32 %v2498, %v2697
        %v2740 = vmul.f32 %v2499, %v2698
        %v2741 = vmul.f32 %v2500, %v2699
        %v2742 = vmul.f32 %v2501, %v2700
        %v2743 = vmul.f32 %v2502, %v2701
        %v2744 = vmul.f32 %v2503, %v2702
        %v2745 = vmul.f32 %v2504, %v2703
        %v2746 = vmul.f32 %v2505, %v2704
        %v2747 = vmul.f32 %v2506, %v2705
        %v2748 = vmul.f32 %v2507, %v2706
        %v2749 = vmul.f32 %v2508, %v2707
        %v2750 = vmul.f32 %v2509, %v2708
        %v2751 = vmul.f32 %v2510, %v2709
        %v2752 = vmul.f32 %v2511, %v2710
        %v2753 = vmul.f32 %v2512, %v2711
        %v2754 = vmul.f32 %v2513, %v2712
        %v2755 = vmul.f32 %v2514, %v2713
        %v2756 = vmul.f32 %v2515, %v2714
        %v2757 = vmul.f32 %v2516, %v2715
        %v2758 = vmul.f32 %v2517, %v2716
        %v2759 = vmul.f32 %v2518, %v2717
        %v2763 = vperm.slane %v2489, 0
        %v2764 = vperm.slane %v2489, 1
        %v2765 = vperm.slane %v2489, 2
        %v2766 = vperm.slane %v2489, 3
        %v2767 = vperm.slane %v2489, 4
        %v2768 = vperm.slane %v2489, 5
        %v2769 = vperm.slane %v2489, 6
        %v2770 = vperm.slane %v2489, 7
        %v2771 = vperm.slane %v2493, 0
        %v2772 = vperm.slane %v2493, 1
        %v2773 = vperm.slane %v2493, 2
        %v2774 = vperm.slane %v2493, 3
        %v2775 = vperm.slane %v2493, 4
        %v2776 = vperm.slane %v2493, 5
        %v2777 = vperm.slane %v2493, 6
        %v2778 = vperm.slane %v2493, 7
        %v2779 = vperm.slane %v2497, 0
        %v2780 = vperm.slane %v2497, 1
        %v2781 = vperm.slane %v2497, 2
        %v2782 = vperm.slane %v2497, 3
        %v2783 = vperm.slane %v2497, 4
        %v2805 = vadd.f32 %v2739, %v2763
        %v2806 = vadd.f32 %v2740, %v2764
        %v2807 = vadd.f32 %v2741, %v2765
        %v2808 = vadd.f32 %v2742, %v2766
        %v2809 = vadd.f32 %v2743, %v2767
        %v2810 = vadd.f32 %v2744, %v2768
        %v2811 = vadd.f32 %v2745, %v2769
        %v2812 = vadd.f32 %v2746, %v2770
        %v2813 = vadd.f32 %v2747, %v2771
        %v2814 = vadd.f32 %v2748, %v2772
        %v2815 = vadd.f32 %v2749, %v2773
        %v2816 = vadd.f32 %v2750, %v2774
        %v2817 = vadd.f32 %v2751, %v2775
        %v2818 = vadd.f32 %v2752, %v2776
        %v2819 = vadd.f32 %v2753, %v2777
        %v2820 = vadd.f32 %v2754, %v2778
        %v2821 = vadd.f32 %v2755, %v2779
        %v2822 = vadd.f32 %v2756, %v2780
        %v2823 = vadd.f32 %v2757, %v2781
        %v2824 = vadd.f32 %v2758, %v2782
        %v2825 = vadd.f32 %v2759, %v2783
        %v2826 = vmul.f32 %v2805, %v2520
        %v2827 = vmul.f32 %v2806, %v2521
        %v2828 = vmul.f32 %v2807, %v2522
        %v2829 = vmul.f32 %v2808, %v2523
        %v2830 = vmul.f32 %v2809, %v2524
        %v2831 = vmul.f32 %v2810, %v2525
        %v2832 = vmul.f32 %v2811, %v2526
        %v2833 = vmul.f32 %v2812, %v2527
        %v2834 = vmul.f32 %v2813, %v2528
        %v2835 = vmul.f32 %v2814, %v2529
        %v2836 = vmul.f32 %v2815, %v2530
        %v2837 = vmul.f32 %v2816, %v2531
        %v2838 = vmul.f32 %v2817, %v2532
        %v2839 = vmul.f32 %v2818, %v2533
        %v2840 = vmul.f32 %v2819, %v2534
        %v2841 = vmul.f32 %v2820, %v2535
        %v2842 = vmul.f32 %v2821, %v2536
        %v2843 = vmul.f32 %v2822, %v2537
        %v2844 = vmul.f32 %v2823, %v2538
        %v2845 = vmul.f32 %v2824, %v2539
        %v2846 = vmul.f32 %v2825, %v2540
        %v2847 = vadd.f32 %v2673, %v2826
        %v2848 = vadd.f32 %v2674, %v2827
        %v2849 = vadd.f32 %v2675, %v2828
        %v2850 = vadd.f32 %v2676, %v2829
        %v2851 = vadd.f32 %v2677, %v2830
        %v2852 = vadd.f32 %v2678, %v2831
        %v2853 = vadd.f32 %v2679, %v2832
        %v2854 = vadd.f32 %v2680, %v2833
        %v2855 = vadd.f32 %v2681, %v2834
        %v2856 = vadd.f32 %v2682, %v2835
        %v2857 = vadd.f32 %v2683, %v2836
        %v2858 = vadd.f32 %v2684, %v2837
        %v2859 = vadd.f32 %v2685, %v2838
        %v2860 = vadd.f32 %v2686, %v2839
        %v2861 = vadd.f32 %v2687, %v2840
        %v2862 = vadd.f32 %v2688, %v2841
        %v2863 = vadd.f32 %v2689, %v2842
        %v2864 = vadd.f32 %v2690, %v2843
        %v2865 = vadd.f32 %v2691, %v2844
        %v2866 = vadd.f32 %v2692, %v2845
        %v2867 = vadd.f32 %v2693, %v2846
        %2868 = vst [vmem:[#allocation3] sm:$0xff] %v2847
        %2869 = vst [vmem:[#allocation3 + $0x8] sm:$0xff] %v2848
        %2870 = vst [vmem:[#allocation3 + $0x10] sm:$0xff] %v2849
        %2871 = vst [vmem:[#allocation3 + $0x18] sm:$0xff] %v2850
        %2872 = vst [vmem:[#allocation3 + $0x20] sm:$0xff] %v2851
        %2873 = vst [vmem:[#allocation3 + $0x28] sm:$0xff] %v2852
        %2874 = vst [vmem:[#allocation3 + $0x30] sm:$0xff] %v2853
        %2875 = vst [vmem:[#allocation3 + $0x38] sm:$0xff] %v2854
        %2876 = vst [vmem:[#allocation3 + $0x40] sm:$0xff] %v2855
        %2877 = vst [vmem:[#allocation3 + $0x48] sm:$0xff] %v2856
        %2878 = vst [vmem:[#allocation3 + $0x50] sm:$0xff] %v2857
        %2879 = vst [vmem:[#allocation3 + $0x58] sm:$0xff] %v2858
        %2880 = vst [vmem:[#allocation3 + $0x60] sm:$0xff] %v2859
        %2881 = vst [vmem:[#allocation3 + $0x68] sm:$0xff] %v2860
        %2882 = vst [vmem:[#allocation3 + $0x70] sm:$0xff] %v2861
        %2883 = vst [vmem:[#allocation3 + $0x78] sm:$0xff] %v2862
        %2884 = vst [vmem:[#allocation3 + $0x80] sm:$0xff] %v2863
        %2885 = vst [vmem:[#allocation3 + $0x88] sm:$0xff] %v2864
        %2886 = vst [vmem:[#allocation3 + $0x90] sm:$0xff] %v2865
        %2887 = vst [vmem:[#allocation3 + $0x98] sm:$0xff] %v2866
        %2888 = vst [vmem:[#allocation3 + $0xa0] sm:$0xff] %v2867
        %s2889 = scalar_lea.vmem [#allocation8], 422
        %v2890 = vld [vmem:[%s2889] ss:$8 sm:$0xf]
        %v2891 = vld [vmem:[%s2889] ss:$8 sm:$0xf0]
        %v2892 = vor.u32 %v2890, %v2891
        %s2893 = scalar_lea.vmem [#allocation8], 486
        %v2894 = vld [vmem:[%s2893] ss:$8 sm:$0xf]
        %v2895 = vld [vmem:[%s2893] ss:$8 sm:$0xf0]
        %v2896 = vor.u32 %v2894, %v2895
        %s2897 = scalar_lea.vmem [#allocation8], 550
        %v2898 = vld [vmem:[%s2897] ss:$8 sm:$0xf]
        %s2899 = scalar_lea.vmem [#allocation8], 423
        %v2900 = vld [vmem:[%s2899] ss:$8 sm:$0xf]
        %v2901 = vld [vmem:[%s2899] ss:$8 sm:$0xf0]
        %v2902 = vor.u32 %v2900, %v2901
        %s2903 = scalar_lea.vmem [#allocation8], 487
        %v2904 = vld [vmem:[%s2903] ss:$8 sm:$0xf]
        %v2905 = vld [vmem:[%s2903] ss:$8 sm:$0xf0]
        %v2906 = vor.u32 %v2904, %v2905
        %s2907 = scalar_lea.vmem [#allocation8], 551
        %v2908 = vld [vmem:[%s2907] ss:$8 sm:$0xf]
        %s2909 = scalar_lea.vmem [#allocation8], 624
        %v2910 = vld [vmem:[%s2909] ss:$8 sm:$0xf]
        %v2911 = vld [vmem:[%s2909] ss:$8 sm:$0xf0]
        %v2912 = vor.u32 %v2910, %v2911
        %s2913 = scalar_lea.vmem [#allocation8], 688
        %v2914 = vld [vmem:[%s2913] ss:$8 sm:$0xf]
        %v2915 = vld [vmem:[%s2913] ss:$8 sm:$0xf0]
        %v2916 = vor.u32 %v2914, %v2915
        %s2917 = scalar_lea.vmem [#allocation8], 752
        %v2918 = vld [vmem:[%s2917] ss:$8 sm:$0xf]
        %s2919 = scalar_lea.vmem [#allocation8], 625
        %v2920 = vld [vmem:[%s2919] ss:$8 sm:$0xf]
        %v2921 = vld [vmem:[%s2919] ss:$8 sm:$0xf0]
        %v2922 = vor.u32 %v2920, %v2921
        %s2923 = scalar_lea.vmem [#allocation8], 689
        %v2924 = vld [vmem:[%s2923] ss:$8 sm:$0xf]
        %v2925 = vld [vmem:[%s2923] ss:$8 sm:$0xf0]
        %v2926 = vor.u32 %v2924, %v2925
        %s2927 = scalar_lea.vmem [#allocation8], 753
        %v2928 = vld [vmem:[%s2927] ss:$8 sm:$0xf]
        %v2929 = vld [vmem:[#allocation4] sm:$0xff]
        %v2930 = vld [vmem:[#allocation4 + $0x8] sm:$0xff]
        %v2931 = vld [vmem:[#allocation4 + $0x10] sm:$0xff]
        %v2932 = vld [vmem:[#allocation4 + $0x18] sm:$0xff]
        %v2933 = vld [vmem:[#allocation4 + $0x20] sm:$0xff]
        %v2934 = vld [vmem:[#allocation4 + $0x28] sm:$0xff]
        %v2935 = vld [vmem:[#allocation4 + $0x30] sm:$0xff]
        %v2936 = vld [vmem:[#allocation4 + $0x38] sm:$0xff]
        %v2937 = vld [vmem:[#allocation4 + $0x40] sm:$0xff]
        %v2938 = vld [vmem:[#allocation4 + $0x48] sm:$0xff]
        %v2939 = vld [vmem:[#allocation4 + $0x50] sm:$0xff]
        %v2940 = vld [vmem:[#allocation4 + $0x58] sm:$0xff]
        %v2941 = vld [vmem:[#allocation4 + $0x60] sm:$0xff]
        %v2942 = vld [vmem:[#allocation4 + $0x68] sm:$0xff]
        %v2943 = vld [vmem:[#allocation4 + $0x70] sm:$0xff]
        %v2944 = vld [vmem:[#allocation4 + $0x78] sm:$0xff]
        %v2945 = vld [vmem:[#allocation4 + $0x80] sm:$0xff]
        %v2946 = vld [vmem:[#allocation4 + $0x88] sm:$0xff]
        %v2947 = vld [vmem:[#allocation4 + $0x90] sm:$0xff]
        %v2948 = vld [vmem:[#allocation4 + $0x98] sm:$0xff]
        %v2949 = vld [vmem:[#allocation3] sm:$0xff]
        %v2950 = vld [vmem:[#allocation3 + $0x8] sm:$0xff]
        %v2951 = vld [vmem:[#allocation3 + $0x10] sm:$0xff]
        %v2952 = vld [vmem:[#allocation3 + $0x18] sm:$0xff]
        %v2953 = vld [vmem:[#allocation3 + $0x20] sm:$0xff]
        %v2954 = vld [vmem:[#allocation3 + $0x28] sm:$0xff]
        %v2955 = vld [vmem:[#allocation3 + $0x30] sm:$0xff]
        %v2956 = vld [vmem:[#allocation3 + $0x38] sm:$0xff]
        %v2957 = vld [vmem:[#allocation3 + $0x40] sm:$0xff]
        %v2958 = vld [vmem:[#allocation3 + $0x48] sm:$0xff]
        %v2959 = vld [vmem:[#allocation3 + $0x50] sm:$0xff]
        %v2960 = vld [vmem:[#allocation3 + $0x58] sm:$0xff]
        %v2961 = vld [vmem:[#allocation3 + $0x60] sm:$0xff]
        %v2962 = vld [vmem:[#allocation3 + $0x68] sm:$0xff]
        %v2963 = vld [vmem:[#allocation3 + $0x70] sm:$0xff]
        %v2964 = vld [vmem:[#allocation3 + $0x78] sm:$0xff]
        %v2965 = vld [vmem:[#allocation3 + $0x80] sm:$0xff]
        %v2966 = vld [vmem:[#allocation3 + $0x88] sm:$0xff]
        %v2967 = vld [vmem:[#allocation3 + $0x90] sm:$0xff]
        %v2968 = vld [vmem:[#allocation3 + $0x98] sm:$0xff]
        %v2969 = vld [vmem:[#allocation3 + $0xa0] sm:$0xff]
        %v2973 = vperm.slane %v2892, 0
        %v2974 = vperm.slane %v2892, 1
        %v2975 = vperm.slane %v2892, 2
        %v2976 = vperm.slane %v2892, 3
        %v2977 = vperm.slane %v2892, 4
        %v2978 = vperm.slane %v2892, 5
        %v2979 = vperm.slane %v2892, 6
        %v2980 = vperm.slane %v2892, 7
        %v2981 = vperm.slane %v2896, 0
        %v2982 = vperm.slane %v2896, 1
        %v2983 = vperm.slane %v2896, 2
        %v2984 = vperm.slane %v2896, 3
        %v2985 = vperm.slane %v2896, 4
        %v2986 = vperm.slane %v2896, 5
        %v2987 = vperm.slane %v2896, 6
        %v2988 = vperm.slane %v2896, 7
        %v2989 = vperm.slane %v2898, 0
        %v2990 = vperm.slane %v2898, 1
        %v2991 = vperm.slane %v2898, 2
        %v2992 = vperm.slane %v2898, 3
        %v3013 = vmul.f32 %v2929, %v2973
        %v3014 = vmul.f32 %v2930, %v2974
        %v3015 = vmul.f32 %v2931, %v2975
        %v3016 = vmul.f32 %v2932, %v2976
        %v3017 = vmul.f32 %v2933, %v2977
        %v3018 = vmul.f32 %v2934, %v2978
        %v3019 = vmul.f32 %v2935, %v2979
        %v3020 = vmul.f32 %v2936, %v2980
        %v3021 = vmul.f32 %v2937, %v2981
        %v3022 = vmul.f32 %v2938, %v2982
        %v3023 = vmul.f32 %v2939, %v2983
        %v3024 = vmul.f32 %v2940, %v2984
        %v3025 = vmul.f32 %v2941, %v2985
        %v3026 = vmul.f32 %v2942, %v2986
        %v3027 = vmul.f32 %v2943, %v2987
        %v3028 = vmul.f32 %v2944, %v2988
        %v3029 = vmul.f32 %v2945, %v2989
        %v3030 = vmul.f32 %v2946, %v2990
        %v3031 = vmul.f32 %v2947, %v2991
        %v3032 = vmul.f32 %v2948, %v2992
        %v3036 = vperm.slane %v2902, 0
        %v3037 = vperm.slane %v2902, 1
        %v3038 = vperm.slane %v2902, 2
        %v3039 = vperm.slane %v2902, 3
        %v3040 = vperm.slane %v2902, 4
        %v3041 = vperm.slane %v2902, 5
        %v3042 = vperm.slane %v2902, 6
        %v3043 = vperm.slane %v2902, 7
        %v3044 = vperm.slane %v2906, 0
        %v3045 = vperm.slane %v2906, 1
        %v3046 = vperm.slane %v2906, 2
        %v3047 = vperm.slane %v2906, 3
        %v3048 = vperm.slane %v2906, 4
        %v3049 = vperm.slane %v2906, 5
        %v3050 = vperm.slane %v2906, 6
        %v3051 = vperm.slane %v2906, 7
        %v3052 = vperm.slane %v2908, 0
        %v3053 = vperm.slane %v2908, 1
        %v3054 = vperm.slane %v2908, 2
        %v3055 = vperm.slane %v2908, 3
        %v3076 = vadd.f32 %v3013, %v3036
        %v3077 = vadd.f32 %v3014, %v3037
        %v3078 = vadd.f32 %v3015, %v3038
        %v3079 = vadd.f32 %v3016, %v3039
        %v3080 = vadd.f32 %v3017, %v3040
        %v3081 = vadd.f32 %v3018, %v3041
        %v3082 = vadd.f32 %v3019, %v3042
        %v3083 = vadd.f32 %v3020, %v3043
        %v3084 = vadd.f32 %v3021, %v3044
        %v3085 = vadd.f32 %v3022, %v3045
        %v3086 = vadd.f32 %v3023, %v3046
        %v3087 = vadd.f32 %v3024, %v3047
        %v3088 = vadd.f32 %v3025, %v3048
        %v3089 = vadd.f32 %v3026, %v3049
        %v3090 = vadd.f32 %v3027, %v3050
        %v3091 = vadd.f32 %v3028, %v3051
        %v3092 = vadd.f32 %v3029, %v3052
        %v3093 = vadd.f32 %v3030, %v3053
        %v3094 = vadd.f32 %v3031, %v3054
        %v3095 = vadd.f32 %v3032, %v3055
        %v3096 = vmul.f32 %v3076, %v2949
        %v3097 = vmul.f32 %v3077, %v2950
        %v3098 = vmul.f32 %v3078, %v2951
        %v3099 = vmul.f32 %v3079, %v2952
        %v3100 = vmul.f32 %v3080, %v2953
        %v3101 = vmul.f32 %v3081, %v2954
        %v3102 = vmul.f32 %v3082, %v2955
        %v3103 = vmul.f32 %v3083, %v2956
        %v3104 = vmul.f32 %v3084, %v2957
        %v3105 = vmul.f32 %v3085, %v2958
        %v3106 = vmul.f32 %v3086, %v2959
        %v3107 = vmul.f32 %v3087, %v2960
        %v3108 = vmul.f32 %v3088, %v2961
        %v3109 = vmul.f32 %v3089, %v2962
        %v3110 = vmul.f32 %v3090, %v2963
        %v3111 = vmul.f32 %v3091, %v2964
        %v3112 = vmul.f32 %v3092, %v2965
        %v3113 = vmul.f32 %v3093, %v2966
        %v3114 = vmul.f32 %v3094, %v2967
        %v3115 = vmul.f32 %v3095, %v2968
        %v3119 = vperm.slane %v2912, 0
        %v3120 = vperm.slane %v2912, 1
        %v3121 = vperm.slane %v2912, 2
        %v3122 = vperm.slane %v2912, 3
        %v3123 = vperm.slane %v2912, 4
        %v3124 = vperm.slane %v2912, 5
        %v3125 = vperm.slane %v2912, 6
        %v3126 = vperm.slane %v2912, 7
        %v3127 = vperm.slane %v2916, 0
        %v3128 = vperm.slane %v2916, 1
        %v3129 = vperm.slane %v2916, 2
        %v3130 = vperm.slane %v2916, 3
        %v3131 = vperm.slane %v2916, 4
        %v3132 = vperm.slane %v2916, 5
        %v3133 = vperm.slane %v2916, 6
        %v3134 = vperm.slane %v2916, 7
        %v3135 = vperm.slane %v2918, 0
        %v3136 = vperm.slane %v2918, 1
        %v3137 = vperm.slane %v2918, 2
        %v3138 = vperm.slane %v2918, 3
        %v3159 = vmul.f32 %v2929, %v3119
        %v3160 = vmul.f32 %v2930, %v3120
        %v3161 = vmul.f32 %v2931, %v3121
        %v3162 = vmul.f32 %v2932, %v3122
        %v3163 = vmul.f32 %v2933, %v3123
        %v3164 = vmul.f32 %v2934, %v3124
        %v3165 = vmul.f32 %v2935, %v3125
        %v3166 = vmul.f32 %v2936, %v3126
        %v3167 = vmul.f32 %v2937, %v3127
        %v3168 = vmul.f32 %v2938, %v3128
        %v3169 = vmul.f32 %v2939, %v3129
        %v3170 = vmul.f32 %v2940, %v3130
        %v3171 = vmul.f32 %v2941, %v3131
        %v3172 = vmul.f32 %v2942, %v3132
        %v3173 = vmul.f32 %v2943, %v3133
        %v3174 = vmul.f32 %v2944, %v3134
        %v3175 = vmul.f32 %v2945, %v3135
        %v3176 = vmul.f32 %v2946, %v3136
        %v3177 = vmul.f32 %v2947, %v3137
        %v3178 = vmul.f32 %v2948, %v3138
        %v3182 = vperm.slane %v2922, 0
        %v3183 = vperm.slane %v2922, 1
        %v3184 = vperm.slane %v2922, 2
        %v3185 = vperm.slane %v2922, 3
        %v3186 = vperm.slane %v2922, 4
        %v3187 = vperm.slane %v2922, 5
        %v3188 = vperm.slane %v2922, 6
        %v3189 = vperm.slane %v2922, 7
        %v3190 = vperm.slane %v2926, 0
        %v3191 = vperm.slane %v2926, 1
        %v3192 = vperm.slane %v2926, 2
        %v3193 = vperm.slane %v2926, 3
        %v3194 = vperm.slane %v2926, 4
        %v3195 = vperm.slane %v2926, 5
        %v3196 = vperm.slane %v2926, 6
        %v3197 = vperm.slane %v2926, 7
        %v3198 = vperm.slane %v2928, 0
        %v3199 = vperm.slane %v2928, 1
        %v3200 = vperm.slane %v2928, 2
        %v3201 = vperm.slane %v2928, 3
        %v3222 = vadd.f32 %v3159, %v3182
        %v3223 = vadd.f32 %v3160, %v3183
        %v3224 = vadd.f32 %v3161, %v3184
        %v3225 = vadd.f32 %v3162, %v3185
        %v3226 = vadd.f32 %v3163, %v3186
        %v3227 = vadd.f32 %v3164, %v3187
        %v3228 = vadd.f32 %v3165, %v3188
        %v3229 = vadd.f32 %v3166, %v3189
        %v3230 = vadd.f32 %v3167, %v3190
        %v3231 = vadd.f32 %v3168, %v3191
        %v3232 = vadd.f32 %v3169, %v3192
        %v3233 = vadd.f32 %v3170, %v3193
        %v3234 = vadd.f32 %v3171, %v3194
        %v3235 = vadd.f32 %v3172, %v3195
        %v3236 = vadd.f32 %v3173, %v3196
        %v3237 = vadd.f32 %v3174, %v3197
        %v3238 = vadd.f32 %v3175, %v3198
        %v3239 = vadd.f32 %v3176, %v3199
        %v3240 = vadd.f32 %v3177, %v3200
        %v3241 = vadd.f32 %v3178, %v3201
        %v3242 = vmul.f32 %v3222, %v2950
        %v3243 = vmul.f32 %v3223, %v2951
        %v3244 = vmul.f32 %v3224, %v2952
        %v3245 = vmul.f32 %v3225, %v2953
        %v3246 = vmul.f32 %v3226, %v2954
        %v3247 = vmul.f32 %v3227, %v2955
        %v3248 = vmul.f32 %v3228, %v2956
        %v3249 = vmul.f32 %v3229, %v2957
        %v3250 = vmul.f32 %v3230, %v2958
        %v3251 = vmul.f32 %v3231, %v2959
        %v3252 = vmul.f32 %v3232, %v2960
        %v3253 = vmul.f32 %v3233, %v2961
        %v3254 = vmul.f32 %v3234, %v2962
        %v3255 = vmul.f32 %v3235, %v2963
        %v3256 = vmul.f32 %v3236, %v2964
        %v3257 = vmul.f32 %v3237, %v2965
        %v3258 = vmul.f32 %v3238, %v2966
        %v3259 = vmul.f32 %v3239, %v2967
        %v3260 = vmul.f32 %v3240, %v2968
        %v3261 = vmul.f32 %v3241, %v2969
        %v3262 = vadd.f32 %v3096, %v3242
        %v3263 = vadd.f32 %v3097, %v3243
        %v3264 = vadd.f32 %v3098, %v3244
        %v3265 = vadd.f32 %v3099, %v3245
        %v3266 = vadd.f32 %v3100, %v3246
        %v3267 = vadd.f32 %v3101, %v3247
        %v3268 = vadd.f32 %v3102, %v3248
        %v3269 = vadd.f32 %v3103, %v3249
        %v3270 = vadd.f32 %v3104, %v3250
        %v3271 = vadd.f32 %v3105, %v3251
        %v3272 = vadd.f32 %v3106, %v3252
        %v3273 = vadd.f32 %v3107, %v3253
        %v3274 = vadd.f32 %v3108, %v3254
        %v3275 = vadd.f32 %v3109, %v3255
        %v3276 = vadd.f32 %v3110, %v3256
        %v3277 = vadd.f32 %v3111, %v3257
        %v3278 = vadd.f32 %v3112, %v3258
        %v3279 = vadd.f32 %v3113, %v3259
        %v3280 = vadd.f32 %v3114, %v3260
        %v3281 = vadd.f32 %v3115, %v3261
        %3282 = vst [vmem:[#allocation2] sm:$0xff] %v3262
        %3283 = vst [vmem:[#allocation2 + $0x8] sm:$0xff] %v3263
        %3284 = vst [vmem:[#allocation2 + $0x10] sm:$0xff] %v3264
        %3285 = vst [vmem:[#allocation2 + $0x18] sm:$0xff] %v3265
        %3286 = vst [vmem:[#allocation2 + $0x20] sm:$0xff] %v3266
        %3287 = vst [vmem:[#allocation2 + $0x28] sm:$0xff] %v3267
        %3288 = vst [vmem:[#allocation2 + $0x30] sm:$0xff] %v3268
        %3289 = vst [vmem:[#allocation2 + $0x38] sm:$0xff] %v3269
        %3290 = vst [vmem:[#allocation2 + $0x40] sm:$0xff] %v3270
        %3291 = vst [vmem:[#allocation2 + $0x48] sm:$0xff] %v3271
        %3292 = vst [vmem:[#allocation2 + $0x50] sm:$0xff] %v3272
        %3293 = vst [vmem:[#allocation2 + $0x58] sm:$0xff] %v3273
        %3294 = vst [vmem:[#allocation2 + $0x60] sm:$0xff] %v3274
        %3295 = vst [vmem:[#allocation2 + $0x68] sm:$0xff] %v3275
        %3296 = vst [vmem:[#allocation2 + $0x70] sm:$0xff] %v3276
        %3297 = vst [vmem:[#allocation2 + $0x78] sm:$0xff] %v3277
        %3298 = vst [vmem:[#allocation2 + $0x80] sm:$0xff] %v3278
        %3299 = vst [vmem:[#allocation2 + $0x88] sm:$0xff] %v3279
        %3300 = vst [vmem:[#allocation2 + $0x90] sm:$0xff] %v3280
        %3301 = vst [vmem:[#allocation2 + $0x98] sm:$0xff] %v3281
        %s3302 = scalar_lea.vmem [#allocation8], 626
        %v3303 = vld [vmem:[%s3302] ss:$8 sm:$0xf]
        %v3304 = vld [vmem:[%s3302] ss:$8 sm:$0xf0]
        %v3305 = vor.u32 %v3303, %v3304
        %s3306 = scalar_lea.vmem [#allocation8], 690
        %v3307 = vld [vmem:[%s3306] ss:$8 sm:$0xf]
        %v3308 = vld [vmem:[%s3306] ss:$8 sm:$0xf0]
        %v3309 = vor.u32 %v3307, %v3308
        %s3310 = scalar_lea.vmem [#allocation8], 754
        %v3311 = vld [vmem:[%s3310] ss:$8 sm:$0x7]
        %s3312 = scalar_lea.vmem [#allocation8], 627
        %v3313 = vld [vmem:[%s3312] ss:$8 sm:$0xf]
        %v3314 = vld [vmem:[%s3312] ss:$8 sm:$0xf0]
        %v3315 = vor.u32 %v3313, %v3314
        %s3316 = scalar_lea.vmem [#allocation8], 691
        %v3317 = vld [vmem:[%s3316] ss:$8 sm:$0xf]
        %v3318 = vld [vmem:[%s3316] ss:$8 sm:$0xf0]
        %v3319 = vor.u32 %v3317, %v3318
        %s3320 = scalar_lea.vmem [#allocation8], 755
        %v3321 = vld [vmem:[%s3320] ss:$8 sm:$0x7]
        %s3322 = scalar_lea.vmem [#allocation8], 628
        %v3323 = vld [vmem:[%s3322] ss:$8 sm:$0xf]
        %v3324 = vld [vmem:[%s3322] ss:$8 sm:$0xf0]
        %v3325 = vor.u32 %v3323, %v3324
        %s3326 = scalar_lea.vmem [#allocation8], 692
        %v3327 = vld [vmem:[%s3326] ss:$8 sm:$0xf]
        %v3328 = vld [vmem:[%s3326] ss:$8 sm:$0xf0]
        %v3329 = vor.u32 %v3327, %v3328
        %s3330 = scalar_lea.vmem [#allocation8], 756
        %v3331 = vld [vmem:[%s3330] ss:$8 sm:$0x7]
        %s3332 = scalar_lea.vmem [#allocation8], 629
        %v3333 = vld [vmem:[%s3332] ss:$8 sm:$0xf]
        %v3334 = vld [vmem:[%s3332] ss:$8 sm:$0xf0]
        %v3335 = vor.u32 %v3333, %v3334
        %s3336 = scalar_lea.vmem [#allocation8], 693
        %v3337 = vld [vmem:[%s3336] ss:$8 sm:$0xf]
        %v3338 = vld [vmem:[%s3336] ss:$8 sm:$0xf0]
        %v3339 = vor.u32 %v3337, %v3338
        %s3340 = scalar_lea.vmem [#allocation8], 757
        %v3341 = vld [vmem:[%s3340] ss:$8 sm:$0x7]
        %v3342 = vld [vmem:[#allocation4] sm:$0xff]
        %v3343 = vld [vmem:[#allocation4 + $0x8] sm:$0xff]
        %v3344 = vld [vmem:[#allocation4 + $0x10] sm:$0xff]
        %v3345 = vld [vmem:[#allocation4 + $0x18] sm:$0xff]
        %v3346 = vld [vmem:[#allocation4 + $0x20] sm:$0xff]
        %v3347 = vld [vmem:[#allocation4 + $0x28] sm:$0xff]
        %v3348 = vld [vmem:[#allocation4 + $0x30] sm:$0xff]
        %v3349 = vld [vmem:[#allocation4 + $0x38] sm:$0xff]
        %v3350 = vld [vmem:[#allocation4 + $0x40] sm:$0xff]
        %v3351 = vld [vmem:[#allocation4 + $0x48] sm:$0xff]
        %v3352 = vld [vmem:[#allocation4 + $0x50] sm:$0xff]
        %v3353 = vld [vmem:[#allocation4 + $0x58] sm:$0xff]
        %v3354 = vld [vmem:[#allocation4 + $0x60] sm:$0xff]
        %v3355 = vld [vmem:[#allocation4 + $0x68] sm:$0xff]
        %v3356 = vld [vmem:[#allocation4 + $0x70] sm:$0xff]
        %v3357 = vld [vmem:[#allocation4 + $0x78] sm:$0xff]
        %v3358 = vld [vmem:[#allocation4 + $0x80] sm:$0xff]
        %v3359 = vld [vmem:[#allocation4 + $0x88] sm:$0xff]
        %v3360 = vld [vmem:[#allocation4 + $0x90] sm:$0xff]
        %v3361 = vld [vmem:[#allocation2] sm:$0xff]
        %v3362 = vld [vmem:[#allocation2 + $0x8] sm:$0xff]
        %v3363 = vld [vmem:[#allocation2 + $0x10] sm:$0xff]
        %v3364 = vld [vmem:[#allocation2 + $0x18] sm:$0xff]
        %v3365 = vld [vmem:[#allocation2 + $0x20] sm:$0xff]
        %v3366 = vld [vmem:[#allocation2 + $0x28] sm:$0xff]
        %v3367 = vld [vmem:[#allocation2 + $0x30] sm:$0xff]
        %v3368 = vld [vmem:[#allocation2 + $0x38] sm:$0xff]
        %v3369 = vld [vmem:[#allocation2 + $0x40] sm:$0xff]
        %v3370 = vld [vmem:[#allocation2 + $0x48] sm:$0xff]
        %v3371 = vld [vmem:[#allocation2 + $0x50] sm:$0xff]
        %v3372 = vld [vmem:[#allocation2 + $0x58] sm:$0xff]
        %v3373 = vld [vmem:[#allocation2 + $0x60] sm:$0xff]
        %v3374 = vld [vmem:[#allocation2 + $0x68] sm:$0xff]
        %v3375 = vld [vmem:[#allocation2 + $0x70] sm:$0xff]
        %v3376 = vld [vmem:[#allocation2 + $0x78] sm:$0xff]
        %v3377 = vld [vmem:[#allocation2 + $0x80] sm:$0xff]
        %v3378 = vld [vmem:[#allocation2 + $0x88] sm:$0xff]
        %v3379 = vld [vmem:[#allocation2 + $0x90] sm:$0xff]
        %v3380 = vld [vmem:[#allocation2 + $0x98] sm:$0xff]
        %v3384 = vperm.slane %v3305, 0
        %v3385 = vperm.slane %v3305, 1
        %v3386 = vperm.slane %v3305, 2
        %v3387 = vperm.slane %v3305, 3
        %v3388 = vperm.slane %v3305, 4
        %v3389 = vperm.slane %v3305, 5
        %v3390 = vperm.slane %v3305, 6
        %v3391 = vperm.slane %v3305, 7
        %v3392 = vperm.slane %v3309, 0
        %v3393 = vperm.slane %v3309, 1
        %v3394 = vperm.slane %v3309, 2
        %v3395 = vperm.slane %v3309, 3
        %v3396 = vperm.slane %v3309, 4
        %v3397 = vperm.slane %v3309, 5
        %v3398 = vperm.slane %v3309, 6
        %v3399 = vperm.slane %v3309, 7
        %v3400 = vperm.slane %v3311, 0
        %v3401 = vperm.slane %v3311, 1
        %v3402 = vperm.slane %v3311, 2
        %v3422 = vmul.f32 %v3342, %v3384
        %v3423 = vmul.f32 %v3343, %v3385
        %v3424 = vmul.f32 %v3344, %v3386
        %v3425 = vmul.f32 %v3345, %v3387
        %v3426 = vmul.f32 %v3346, %v3388
        %v3427 = vmul.f32 %v3347, %v3389
        %v3428 = vmul.f32 %v3348, %v3390
        %v3429 = vmul.f32 %v3349, %v3391
        %v3430 = vmul.f32 %v3350, %v3392
        %v3431 = vmul.f32 %v3351, %v3393
        %v3432 = vmul.f32 %v3352, %v3394
        %v3433 = vmul.f32 %v3353, %v3395
        %v3434 = vmul.f32 %v3354, %v3396
        %v3435 = vmul.f32 %v3355, %v3397
        %v3436 = vmul.f32 %v3356, %v3398
        %v3437 = vmul.f32 %v3357, %v3399
        %v3438 = vmul.f32 %v3358, %v3400
        %v3439 = vmul.f32 %v3359, %v3401
        %v3440 = vmul.f32 %v3360, %v3402
        %v3444 = vperm.slane %v3315, 0
        %v3445 = vperm.slane %v3315, 1
        %v3446 = vperm.slane %v3315, 2
        %v3447 = vperm.slane %v3315, 3
        %v3448 = vperm.slane %v3315, 4
        %v3449 = vperm.slane %v3315, 5
        %v3450 = vperm.slane %v3315, 6
        %v3451 = vperm.slane %v3315, 7
        %v3452 = vperm.slane %v3319, 0
        %v3453 = vperm.slane %v3319, 1
        %v3454 = vperm.slane %v3319, 2
        %v3455 = vperm.slane %v3319, 3
        %v3456 = vperm.slane %v3319, 4
        %v3457 = vperm.slane %v3319, 5
        %v3458 = vperm.slane %v3319, 6
        %v3459 = vperm.slane %v3319, 7
        %v3460 = vperm.slane %v3321, 0
        %v3461 = vperm.slane %v3321, 1
        %v3462 = vperm.slane %v3321, 2
        %v3482 = vadd.f32 %v3422, %v3444
        %v3483 = vadd.f32 %v3423, %v3445
        %v3484 = vadd.f32 %v3424, %v3446
        %v3485 = vadd.f32 %v3425, %v3447
        %v3486 = vadd.f32 %v3426, %v3448
        %v3487 = vadd.f32 %v3427, %v3449
        %v3488 = vadd.f32 %v3428, %v3450
        %v3489 = vadd.f32 %v3429, %v3451
        %v3490 = vadd.f32 %v3430, %v3452
        %v3491 = vadd.f32 %v3431, %v3453
        %v3492 = vadd.f32 %v3432, %v3454
        %v3493 = vadd.f32 %v3433, %v3455
        %v3494 = vadd.f32 %v3434, %v3456
        %v3495 = vadd.f32 %v3435, %v3457
        %v3496 = vadd.f32 %v3436, %v3458
        %v3497 = vadd.f32 %v3437, %v3459
        %v3498 = vadd.f32 %v3438, %v3460
        %v3499 = vadd.f32 %v3439, %v3461
        %v3500 = vadd.f32 %v3440, %v3462
        %v3501 = vmul.f32 %v3482, %v3361
        %v3502 = vmul.f32 %v3483, %v3362
        %v3503 = vmul.f32 %v3484, %v3363
        %v3504 = vmul.f32 %v3485, %v3364
        %v3505 = vmul.f32 %v3486, %v3365
        %v3506 = vmul.f32 %v3487, %v3366
        %v3507 = vmul.f32 %v3488, %v3367
        %v3508 = vmul.f32 %v3489, %v3368
        %v3509 = vmul.f32 %v3490, %v3369
        %v3510 = vmul.f32 %v3491, %v3370
        %v3511 = vmul.f32 %v3492, %v3371
        %v3512 = vmul.f32 %v3493, %v3372
        %v3513 = vmul.f32 %v3494, %v3373
        %v3514 = vmul.f32 %v3495, %v3374
        %v3515 = vmul.f32 %v3496, %v3375
        %v3516 = vmul.f32 %v3497, %v3376
        %v3517 = vmul.f32 %v3498, %v3377
        %v3518 = vmul.f32 %v3499, %v3378
        %v3519 = vmul.f32 %v3500, %v3379
        %v3523 = vperm.slane %v3325, 0
        %v3524 = vperm.slane %v3325, 1
        %v3525 = vperm.slane %v3325, 2
        %v3526 = vperm.slane %v3325, 3
        %v3527 = vperm.slane %v3325, 4
        %v3528 = vperm.slane %v3325, 5
        %v3529 = vperm.slane %v3325, 6
        %v3530 = vperm.slane %v3325, 7
        %v3531 = vperm.slane %v3329, 0
        %v3532 = vperm.slane %v3329, 1
        %v3533 = vperm.slane %v3329, 2
        %v3534 = vperm.slane %v3329, 3
        %v3535 = vperm.slane %v3329, 4
        %v3536 = vperm.slane %v3329, 5
        %v3537 = vperm.slane %v3329, 6
        %v3538 = vperm.slane %v3329, 7
        %v3539 = vperm.slane %v3331, 0
        %v3540 = vperm.slane %v3331, 1
        %v3541 = vperm.slane %v3331, 2
        %v3561 = vmul.f32 %v3342, %v3523
        %v3562 = vmul.f32 %v3343, %v3524
        %v3563 = vmul.f32 %v3344, %v3525
        %v3564 = vmul.f32 %v3345, %v3526
        %v3565 = vmul.f32 %v3346, %v3527
        %v3566 = vmul.f32 %v3347, %v3528
        %v3567 = vmul.f32 %v3348, %v3529
        %v3568 = vmul.f32 %v3349, %v3530
        %v3569 = vmul.f32 %v3350, %v3531
        %v3570 = vmul.f32 %v3351, %v3532
        %v3571 = vmul.f32 %v3352, %v3533
        %v3572 = vmul.f32 %v3353, %v3534
        %v3573 = vmul.f32 %v3354, %v3535
        %v3574 = vmul.f32 %v3355, %v3536
        %v3575 = vmul.f32 %v3356, %v3537
        %v3576 = vmul.f32 %v3357, %v3538
        %v3577 = vmul.f32 %v3358, %v3539
        %v3578 = vmul.f32 %v3359, %v3540
        %v3579 = vmul.f32 %v3360, %v3541
        %v3583 = vperm.slane %v3335, 0
        %v3584 = vperm.slane %v3335, 1
        %v3585 = vperm.slane %v3335, 2
        %v3586 = vperm.slane %v3335, 3
        %v3587 = vperm.slane %v3335, 4
        %v3588 = vperm.slane %v3335, 5
        %v3589 = vperm.slane %v3335, 6
        %v3590 = vperm.slane %v3335, 7
        %v3591 = vperm.slane %v3339, 0
        %v3592 = vperm.slane %v3339, 1
        %v3593 = vperm.slane %v3339, 2
        %v3594 = vperm.slane %v3339, 3
        %v3595 = vperm.slane %v3339, 4
        %v3596 = vperm.slane %v3339, 5
        %v3597 = vperm.slane %v3339, 6
        %v3598 = vperm.slane %v3339, 7
        %v3599 = vperm.slane %v3341, 0
        %v3600 = vperm.slane %v3341, 1
        %v3601 = vperm.slane %v3341, 2
        %v3621 = vadd.f32 %v3561, %v3583
        %v3622 = vadd.f32 %v3562, %v3584
        %v3623 = vadd.f32 %v3563, %v3585
        %v3624 = vadd.f32 %v3564, %v3586
        %v3625 = vadd.f32 %v3565, %v3587
        %v3626 = vadd.f32 %v3566, %v3588
        %v3627 = vadd.f32 %v3567, %v3589
        %v3628 = vadd.f32 %v3568, %v3590
        %v3629 = vadd.f32 %v3569, %v3591
        %v3630 = vadd.f32 %v3570, %v3592
        %v3631 = vadd.f32 %v3571, %v3593
        %v3632 = vadd.f32 %v3572, %v3594
        %v3633 = vadd.f32 %v3573, %v3595
        %v3634 = vadd.f32 %v3574, %v3596
        %v3635 = vadd.f32 %v3575, %v3597
        %v3636 = vadd.f32 %v3576, %v3598
        %v3637 = vadd.f32 %v3577, %v3599
        %v3638 = vadd.f32 %v3578, %v3600
        %v3639 = vadd.f32 %v3579, %v3601
        %v3640 = vmul.f32 %v3621, %v3362
        %v3641 = vmul.f32 %v3622, %v3363
        %v3642 = vmul.f32 %v3623, %v3364
        %v3643 = vmul.f32 %v3624, %v3365
        %v3644 = vmul.f32 %v3625, %v3366
        %v3645 = vmul.f32 %v3626, %v3367
        %v3646 = vmul.f32 %v3627, %v3368
        %v3647 = vmul.f32 %v3628, %v3369
        %v3648 = vmul.f32 %v3629, %v3370
        %v3649 = vmul.f32 %v3630, %v3371
        %v3650 = vmul.f32 %v3631, %v3372
        %v3651 = vmul.f32 %v3632, %v3373
        %v3652 = vmul.f32 %v3633, %v3374
        %v3653 = vmul.f32 %v3634, %v3375
        %v3654 = vmul.f32 %v3635, %v3376
        %v3655 = vmul.f32 %v3636, %v3377
        %v3656 = vmul.f32 %v3637, %v3378
        %v3657 = vmul.f32 %v3638, %v3379
        %v3658 = vmul.f32 %v3639, %v3380
        %v3659 = vadd.f32 %v3501, %v3640
        %v3660 = vadd.f32 %v3502, %v3641
        %v3661 = vadd.f32 %v3503, %v3642
        %v3662 = vadd.f32 %v3504, %v3643
        %v3663 = vadd.f32 %v3505, %v3644
        %v3664 = vadd.f32 %v3506, %v3645
        %v3665 = vadd.f32 %v3507, %v3646
        %v3666 = vadd.f32 %v3508, %v3647
        %v3667 = vadd.f32 %v3509, %v3648
        %v3668 = vadd.f32 %v3510, %v3649
        %v3669 = vadd.f32 %v3511, %v3650
        %v3670 = vadd.f32 %v3512, %v3651
        %v3671 = vadd.f32 %v3513, %v3652
        %v3672 = vadd.f32 %v3514, %v3653
        %v3673 = vadd.f32 %v3515, %v3654
        %v3674 = vadd.f32 %v3516, %v3655
        %v3675 = vadd.f32 %v3517, %v3656
        %v3676 = vadd.f32 %v3518, %v3657
        %v3677 = vadd.f32 %v3519, %v3658
        %3678 = vst [vmem:[#allocation3] sm:$0xff] %v3659
        %3679 = vst [vmem:[#allocation3 + $0x8] sm:$0xff] %v3660
        %3680 = vst [vmem:[#allocation3 + $0x10] sm:$0xff] %v3661
        %3681 = vst [vmem:[#allocation3 + $0x18] sm:$0xff] %v3662
        %3682 = vst [vmem:[#allocation3 + $0x20] sm:$0xff] %v3663
        %3683 = vst [vmem:[#allocation3 + $0x28] sm:$0xff] %v3664
        %3684 = vst [vmem:[#allocation3 + $0x30] sm:$0xff] %v3665
        %3685 = vst [vmem:[#allocation3 + $0x38] sm:$0xff] %v3666
        %3686 = vst [vmem:[#allocation3 + $0x40] sm:$0xff] %v3667
        %3687 = vst [vmem:[#allocation3 + $0x48] sm:$0xff] %v3668
        %3688 = vst [vmem:[#allocation3 + $0x50] sm:$0xff] %v3669
        %3689 = vst [vmem:[#allocation3 + $0x58] sm:$0xff] %v3670
        %3690 = vst [vmem:[#allocation3 + $0x60] sm:$0xff] %v3671
        %3691 = vst [vmem:[#allocation3 + $0x68] sm:$0xff] %v3672
        %3692 = vst [vmem:[#allocation3 + $0x70] sm:$0xff] %v3673
        %3693 = vst [vmem:[#allocation3 + $0x78] sm:$0xff] %v3674
        %3694 = vst [vmem:[#allocation3 + $0x80] sm:$0xff] %v3675
        %3695 = vst [vmem:[#allocation3 + $0x88] sm:$0xff] %v3676
        %3696 = vst [vmem:[#allocation3 + $0x90] sm:$0xff] %v3677
        %s3697 = scalar_lea.vmem [#allocation8], 630
        %v3698 = vld [vmem:[%s3697] ss:$8 sm:$0xf]
        %v3699 = vld [vmem:[%s3697] ss:$8 sm:$0xf0]
        %v3700 = vor.u32 %v3698, %v3699
        %s3701 = scalar_lea.vmem [#allocation8], 694
        %v3702 = vld [vmem:[%s3701] ss:$8 sm:$0xf]
        %v3703 = vld [vmem:[%s3701] ss:$8 sm:$0xf0]
        %v3704 = vor.u32 %v3702, %v3703
        %s3705 = scalar_lea.vmem [#allocation8], 758
        %v3706 = vld [vmem:[%s3705] ss:$8 sm:$0x3]
        %s3707 = scalar_lea.vmem [#allocation8], 631
        %v3708 = vld [vmem:[%s3707] ss:$8 sm:$0xf]
        %v3709 = vld [vmem:[%s3707] ss:$8 sm:$0xf0]
        %v3710 = vor.u32 %v3708, %v3709
        %s3711 = scalar_lea.vmem [#allocation8], 695
        %v3712 = vld [vmem:[%s3711] ss:$8 sm:$0xf]
        %v3713 = vld [vmem:[%s3711] ss:$8 sm:$0xf0]
        %v3714 = vor.u32 %v3712, %v3713
        %s3715 = scalar_lea.vmem [#allocation8], 759
        %v3716 = vld [vmem:[%s3715] ss:$8 sm:$0x3]
        %s3717 = scalar_lea.vmem [#allocation8], 832
        %v3718 = vld [vmem:[%s3717] ss:$8 sm:$0xf]
        %v3719 = vld [vmem:[%s3717] ss:$8 sm:$0xf0]
        %v3720 = vor.u32 %v3718, %v3719
        %s3721 = scalar_lea.vmem [#allocation8], 896
        %v3722 = vld [vmem:[%s3721] ss:$8 sm:$0xf]
        %v3723 = vld [vmem:[%s3721] ss:$8 sm:$0xf0]
        %v3724 = vor.u32 %v3722, %v3723
        %s3725 = scalar_lea.vmem [#allocation8], 960
        %v3726 = vld [vmem:[%s3725] ss:$8 sm:$0x3]
        %s3727 = scalar_lea.vmem [#allocation8], 833
        %v3728 = vld [vmem:[%s3727] ss:$8 sm:$0xf]
        %v3729 = vld [vmem:[%s3727] ss:$8 sm:$0xf0]
        %v3730 = vor.u32 %v3728, %v3729
        %s3731 = scalar_lea.vmem [#allocation8], 897
        %v3732 = vld [vmem:[%s3731] ss:$8 sm:$0xf]
        %v3733 = vld [vmem:[%s3731] ss:$8 sm:$0xf0]
        %v3734 = vor.u32 %v3732, %v3733
        %s3735 = scalar_lea.vmem [#allocation8], 961
        %v3736 = vld [vmem:[%s3735] ss:$8 sm:$0x3]
        %v3737 = vld [vmem:[#allocation4] sm:$0xff]
        %v3738 = vld [vmem:[#allocation4 + $0x8] sm:$0xff]
        %v3739 = vld [vmem:[#allocation4 + $0x10] sm:$0xff]
        %v3740 = vld [vmem:[#allocation4 + $0x18] sm:$0xff]
        %v3741 = vld [vmem:[#allocation4 + $0x20] sm:$0xff]
        %v3742 = vld [vmem:[#allocation4 + $0x28] sm:$0xff]
        %v3743 = vld [vmem:[#allocation4 + $0x30] sm:$0xff]
        %v3744 = vld [vmem:[#allocation4 + $0x38] sm:$0xff]
        %v3745 = vld [vmem:[#allocation4 + $0x40] sm:$0xff]
        %v3746 = vld [vmem:[#allocation4 + $0x48] sm:$0xff]
        %v3747 = vld [vmem:[#allocation4 + $0x50] sm:$0xff]
        %v3748 = vld [vmem:[#allocation4 + $0x58] sm:$0xff]
        %v3749 = vld [vmem:[#allocation4 + $0x60] sm:$0xff]
        %v3750 = vld [vmem:[#allocation4 + $0x68] sm:$0xff]
        %v3751 = vld [vmem:[#allocation4 + $0x70] sm:$0xff]
        %v3752 = vld [vmem:[#allocation4 + $0x78] sm:$0xff]
        %v3753 = vld [vmem:[#allocation4 + $0x80] sm:$0xff]
        %v3754 = vld [vmem:[#allocation4 + $0x88] sm:$0xff]
        %v3755 = vld [vmem:[#allocation3] sm:$0xff]
        %v3756 = vld [vmem:[#allocation3 + $0x8] sm:$0xff]
        %v3757 = vld [vmem:[#allocation3 + $0x10] sm:$0xff]
        %v3758 = vld [vmem:[#allocation3 + $0x18] sm:$0xff]
        %v3759 = vld [vmem:[#allocation3 + $0x20] sm:$0xff]
        %v3760 = vld [vmem:[#allocation3 + $0x28] sm:$0xff]
        %v3761 = vld [vmem:[#allocation3 + $0x30] sm:$0xff]
        %v3762 = vld [vmem:[#allocation3 + $0x38] sm:$0xff]
        %v3763 = vld [vmem:[#allocation3 + $0x40] sm:$0xff]
        %v3764 = vld [vmem:[#allocation3 + $0x48] sm:$0xff]
        %v3765 = vld [vmem:[#allocation3 + $0x50] sm:$0xff]
        %v3766 = vld [vmem:[#allocation3 + $0x58] sm:$0xff]
        %v3767 = vld [vmem:[#allocation3 + $0x60] sm:$0xff]
        %v3768 = vld [vmem:[#allocation3 + $0x68] sm:$0xff]
        %v3769 = vld [vmem:[#allocation3 + $0x70] sm:$0xff]
        %v3770 = vld [vmem:[#allocation3 + $0x78] sm:$0xff]
        %v3771 = vld [vmem:[#allocation3 + $0x80] sm:$0xff]
        %v3772 = vld [vmem:[#allocation3 + $0x88] sm:$0xff]
        %v3773 = vld [vmem:[#allocation3 + $0x90] sm:$0xff]
        %v3777 = vperm.slane %v3700, 0
        %v3778 = vperm.slane %v3700, 1
        %v3779 = vperm.slane %v3700, 2
        %v3780 = vperm.slane %v3700, 3
        %v3781 = vperm.slane %v3700, 4
        %v3782 = vperm.slane %v3700, 5
        %v3783 = vperm.slane %v3700, 6
        %v3784 = vperm.slane %v3700, 7
        %v3785 = vperm.slane %v3704, 0
        %v3786 = vperm.slane %v3704, 1
        %v3787 = vperm.slane %v3704, 2
        %v3788 = vperm.slane %v3704, 3
        %v3789 = vperm.slane %v3704, 4
        %v3790 = vperm.slane %v3704, 5
        %v3791 = vperm.slane %v3704, 6
        %v3792 = vperm.slane %v3704, 7
        %v3793 = vperm.slane %v3706, 0
        %v3794 = vperm.slane %v3706, 1
        %v3813 = vmul.f32 %v3737, %v3777
        %v3814 = vmul.f32 %v3738, %v3778
        %v3815 = vmul.f32 %v3739, %v3779
        %v3816 = vmul.f32 %v3740, %v3780
        %v3817 = vmul.f32 %v3741, %v3781
        %v3818 = vmul.f32 %v3742, %v3782
        %v3819 = vmul.f32 %v3743, %v3783
        %v3820 = vmul.f32 %v3744, %v3784
        %v3821 = vmul.f32 %v3745, %v3785
        %v3822 = vmul.f32 %v3746, %v3786
        %v3823 = vmul.f32 %v3747, %v3787
        %v3824 = vmul.f32 %v3748, %v3788
        %v3825 = vmul.f32 %v3749, %v3789
        %v3826 = vmul.f32 %v3750, %v3790
        %v3827 = vmul.f32 %v3751, %v3791
        %v3828 = vmul.f32 %v3752, %v3792
        %v3829 = vmul.f32 %v3753, %v3793
        %v3830 = vmul.f32 %v3754, %v3794
        %v3834 = vperm.slane %v3710, 0
        %v3835 = vperm.slane %v3710, 1
        %v3836 = vperm.slane %v3710, 2
        %v3837 = vperm.slane %v3710, 3
        %v3838 = vperm.slane %v3710, 4
        %v3839 = vperm.slane %v3710, 5
        %v3840 = vperm.slane %v3710, 6
        %v3841 = vperm.slane %v3710, 7
        %v3842 = vperm.slane %v3714, 0
        %v3843 = vperm.slane %v3714, 1
        %v3844 = vperm.slane %v3714, 2
        %v3845 = vperm.slane %v3714, 3
        %v3846 = vperm.slane %v3714, 4
        %v3847 = vperm.slane %v3714, 5
        %v3848 = vperm.slane %v3714, 6
        %v3849 = vperm.slane %v3714, 7
        %v3850 = vperm.slane %v3716, 0
        %v3851 = vperm.slane %v3716, 1
        %v3870 = vadd.f32 %v3813, %v3834
        %v3871 = vadd.f32 %v3814, %v3835
        %v3872 = vadd.f32 %v3815, %v3836
        %v3873 = vadd.f32 %v3816, %v3837
        %v3874 = vadd.f32 %v3817, %v3838
        %v3875 = vadd.f32 %v3818, %v3839
        %v3876 = vadd.f32 %v3819, %v3840
        %v3877 = vadd.f32 %v3820, %v3841
        %v3878 = vadd.f32 %v3821, %v3842
        %v3879 = vadd.f32 %v3822, %v3843
        %v3880 = vadd.f32 %v3823, %v3844
        %v3881 = vadd.f32 %v3824, %v3845
        %v3882 = vadd.f32 %v3825, %v3846
        %v3883 = vadd.f32 %v3826, %v3847
        %v3884 = vadd.f32 %v3827, %v3848
        %v3885 = vadd.f32 %v3828, %v3849
        %v3886 = vadd.f32 %v3829, %v3850
        %v3887 = vadd.f32 %v3830, %v3851
        %v3888 = vmul.f32 %v3870, %v3755
        %v3889 = vmul.f32 %v3871, %v3756
        %v3890 = vmul.f32 %v3872, %v3757
        %v3891 = vmul.f32 %v3873, %v3758
        %v3892 = vmul.f32 %v3874, %v3759
        %v3893 = vmul.f32 %v3875, %v3760
        %v3894 = vmul.f32 %v3876, %v3761
        %v3895 = vmul.f32 %v3877, %v3762
        %v3896 = vmul.f32 %v3878, %v3763
        %v3897 = vmul.f32 %v3879, %v3764
        %v3898 = vmul.f32 %v3880, %v3765
        %v3899 = vmul.f32 %v3881, %v3766
        %v3900 = vmul.f32 %v3882, %v3767
        %v3901 = vmul.f32 %v3883, %v3768
        %v3902 = vmul.f32 %v3884, %v3769
        %v3903 = vmul.f32 %v3885, %v3770
        %v3904 = vmul.f32 %v3886, %v3771
        %v3905 = vmul.f32 %v3887, %v3772
        %v3909 = vperm.slane %v3720, 0
        %v3910 = vperm.slane %v3720, 1
        %v3911 = vperm.slane %v3720, 2
        %v3912 = vperm.slane %v3720, 3
        %v3913 = vperm.slane %v3720, 4
        %v3914 = vperm.slane %v3720, 5
        %v3915 = vperm.slane %v3720, 6
        %v3916 = vperm.slane %v3720, 7
        %v3917 = vperm.slane %v3724, 0
        %v3918 = vperm.slane %v3724, 1
        %v3919 = vperm.slane %v3724, 2
        %v3920 = vperm.slane %v3724, 3
        %v3921 = vperm.slane %v3724, 4
        %v3922 = vperm.slane %v3724, 5
        %v3923 = vperm.slane %v3724, 6
        %v3924 = vperm.slane %v3724, 7
        %v3925 = vperm.slane %v3726, 0
        %v3926 = vperm.slane %v3726, 1
        %v3945 = vmul.f32 %v3737, %v3909
        %v3946 = vmul.f32 %v3738, %v3910
        %v3947 = vmul.f32 %v3739, %v3911
        %v3948 = vmul.f32 %v3740, %v3912
        %v3949 = vmul.f32 %v3741, %v3913
        %v3950 = vmul.f32 %v3742, %v3914
        %v3951 = vmul.f32 %v3743, %v3915
        %v3952 = vmul.f32 %v3744, %v3916
        %v3953 = vmul.f32 %v3745, %v3917
        %v3954 = vmul.f32 %v3746, %v3918
        %v3955 = vmul.f32 %v3747, %v3919
        %v3956 = vmul.f32 %v3748, %v3920
        %v3957 = vmul.f32 %v3749, %v3921
        %v3958 = vmul.f32 %v3750, %v3922
        %v3959 = vmul.f32 %v3751, %v3923
        %v3960 = vmul.f32 %v3752, %v3924
        %v3961 = vmul.f32 %v3753, %v3925
        %v3962 = vmul.f32 %v3754, %v3926
        %v3966 = vperm.slane %v3730, 0
        %v3967 = vperm.slane %v3730, 1
        %v3968 = vperm.slane %v3730, 2
        %v3969 = vperm.slane %v3730, 3
        %v3970 = vperm.slane %v3730, 4
        %v3971 = vperm.slane %v3730, 5
        %v3972 = vperm.slane %v3730, 6
        %v3973 = vperm.slane %v3730, 7
        %v3974 = vperm.slane %v3734, 0
        %v3975 = vperm.slane %v3734, 1
        %v3976 = vperm.slane %v3734, 2
        %v3977 = vperm.slane %v3734, 3
        %v3978 = vperm.slane %v3734, 4
        %v3979 = vperm.slane %v3734, 5
        %v3980 = vperm.slane %v3734, 6
        %v3981 = vperm.slane %v3734, 7
        %v3982 = vperm.slane %v3736, 0
        %v3983 = vperm.slane %v3736, 1
        %v4002 = vadd.f32 %v3945, %v3966
        %v4003 = vadd.f32 %v3946, %v3967
        %v4004 = vadd.f32 %v3947, %v3968
        %v4005 = vadd.f32 %v3948, %v3969
        %v4006 = vadd.f32 %v3949, %v3970
        %v4007 = vadd.f32 %v3950, %v3971
        %v4008 = vadd.f32 %v3951, %v3972
        %v4009 = vadd.f32 %v3952, %v3973
        %v4010 = vadd.f32 %v3953, %v3974
        %v4011 = vadd.f32 %v3954, %v3975
        %v4012 = vadd.f32 %v3955, %v3976
        %v4013 = vadd.f32 %v3956, %v3977
        %v4014 = vadd.f32 %v3957, %v3978
        %v4015 = vadd.f32 %v3958, %v3979
        %v4016 = vadd.f32 %v3959, %v3980
        %v4017 = vadd.f32 %v3960, %v3981
        %v4018 = vadd.f32 %v3961, %v3982
        %v4019 = vadd.f32 %v3962, %v3983
        %v4020 = vmul.f32 %v4002, %v3756
        %v4021 = vmul.f32 %v4003, %v3757
        %v4022 = vmul.f32 %v4004, %v3758
        %v4023 = vmul.f32 %v4005, %v3759
        %v4024 = vmul.f32 %v4006, %v3760
        %v4025 = vmul.f32 %v4007, %v3761
        %v4026 = vmul.f32 %v4008, %v3762
        %v4027 = vmul.f32 %v4009, %v3763
        %v4028 = vmul.f32 %v4010, %v3764
        %v4029 = vmul.f32 %v4011, %v3765
        %v4030 = vmul.f32 %v4012, %v3766
        %v4031 = vmul.f32 %v4013, %v3767
        %v4032 = vmul.f32 %v4014, %v3768
        %v4033 = vmul.f32 %v4015, %v3769
        %v4034 = vmul.f32 %v4016, %v3770
        %v4035 = vmul.f32 %v4017, %v3771
        %v4036 = vmul.f32 %v4018, %v3772
        %v4037 = vmul.f32 %v4019, %v3773
        %v4038 = vadd.f32 %v3888, %v4020
        %v4039 = vadd.f32 %v3889, %v4021
        %v4040 = vadd.f32 %v3890, %v4022
        %v4041 = vadd.f32 %v3891, %v4023
        %v4042 = vadd.f32 %v3892, %v4024
        %v4043 = vadd.f32 %v3893, %v4025
        %v4044 = vadd.f32 %v3894, %v4026
        %v4045 = vadd.f32 %v3895, %v4027
        %v4046 = vadd.f32 %v3896, %v4028
        %v4047 = vadd.f32 %v3897, %v4029
        %v4048 = vadd.f32 %v3898, %v4030
        %v4049 = vadd.f32 %v3899, %v4031
        %v4050 = vadd.f32 %v3900, %v4032
        %v4051 = vadd.f32 %v3901, %v4033
        %v4052 = vadd.f32 %v3902, %v4034
        %v4053 = vadd.f32 %v3903, %v4035
        %v4054 = vadd.f32 %v3904, %v4036
        %v4055 = vadd.f32 %v3905, %v4037
        %4056 = vst [vmem:[#allocation2] sm:$0xff] %v4038
        %4057 = vst [vmem:[#allocation2 + $0x8] sm:$0xff] %v4039
        %4058 = vst [vmem:[#allocation2 + $0x10] sm:$0xff] %v4040
        %4059 = vst [vmem:[#allocation2 + $0x18] sm:$0xff] %v4041
        %4060 = vst [vmem:[#allocation2 + $0x20] sm:$0xff] %v4042
        %4061 = vst [vmem:[#allocation2 + $0x28] sm:$0xff] %v4043
        %4062 = vst [vmem:[#allocation2 + $0x30] sm:$0xff] %v4044
        %4063 = vst [vmem:[#allocation2 + $0x38] sm:$0xff] %v4045
        %4064 = vst [vmem:[#allocation2 + $0x40] sm:$0xff] %v4046
        %4065 = vst [vmem:[#allocation2 + $0x48] sm:$0xff] %v4047
        %4066 = vst [vmem:[#allocation2 + $0x50] sm:$0xff] %v4048
        %4067 = vst [vmem:[#allocation2 + $0x58] sm:$0xff] %v4049
        %4068 = vst [vmem:[#allocation2 + $0x60] sm:$0xff] %v4050
        %4069 = vst [vmem:[#allocation2 + $0x68] sm:$0xff] %v4051
        %4070 = vst [vmem:[#allocation2 + $0x70] sm:$0xff] %v4052
        %4071 = vst [vmem:[#allocation2 + $0x78] sm:$0xff] %v4053
        %4072 = vst [vmem:[#allocation2 + $0x80] sm:$0xff] %v4054
        %4073 = vst [vmem:[#allocation2 + $0x88] sm:$0xff] %v4055
        %v4074 = vxor.u32 %v221, 2147483648
        %v4075 = vmul.f32 %v4074, 1.442695
        %v4076 = vpow.pop %v4075
        %v4077 = vadd.f32 %v4076, 1.0
        %v4078 = vrcp.pop %v4077
        %v4079 = vmul.f32 %v4077, %v4078
        %v4080 = vsub.f32 1.0, %v4079
        %v4081 = vmul.f32 %v4078, %v4080
        %v4082 = vadd.f32 %v4078, %v4081
        %vm4083 = vweird.f32 %v4077
        %vm4084 = vweird.f32 %v4078
        %vm4085 = vmor %vm4083, %vm4084
        %v4086 = vsel %vm4085, %v4078, %v4082
        %v4087 = vand.u32 2147483647, %v4077
        %vm4088 = vcmp.eq.f32.partialorder %v4087, 8.507059e+37
        %v4089 = vand.u32 %v4077, 2147483648
        %v4090 = vor.u32 1.1754944e-38, %v4089
        %v4091 = vsel %vm4088, %v4090, %v4086
        %v4092 = vmul.f32 1.0, %v4091
        %v4093 = vmul.f32 %v221, %v4092
        %4094 = vst [vmem:[#allocation2 + $0x90] sm:$0xff] %v4093
        %v4095 = vld [vmem:[#allocation2] sm:$0xff]
        %v4096 = vld [vmem:[#allocation2 + $0x8] sm:$0xff]
        %v4097 = vld [vmem:[#allocation2 + $0x10] sm:$0xff]
        %v4098 = vld [vmem:[#allocation2 + $0x18] sm:$0xff]
        %v4099 = vld [vmem:[#allocation2 + $0x20] sm:$0xff]
        %v4100 = vld [vmem:[#allocation2 + $0x28] sm:$0xff]
        %v4101 = vld [vmem:[#allocation2 + $0x30] sm:$0xff]
        %v4102 = vld [vmem:[#allocation2 + $0x38] sm:$0xff]
        %v4103 = vld [vmem:[#allocation2 + $0x40] sm:$0xff]
        %v4104 = vld [vmem:[#allocation2 + $0x48] sm:$0xff]
        %v4105 = vld [vmem:[#allocation2 + $0x50] sm:$0xff]
        %v4106 = vld [vmem:[#allocation2 + $0x58] sm:$0xff]
        %v4107 = vld [vmem:[#allocation2 + $0x60] sm:$0xff]
        %v4108 = vld [vmem:[#allocation2 + $0x68] sm:$0xff]
        %v4109 = vld [vmem:[#allocation2 + $0x70] sm:$0xff]
        %v4110 = vld [vmem:[#allocation2 + $0x78] sm:$0xff]
        %v4111 = vld [vmem:[#allocation2 + $0x80] sm:$0xff]
        %v4112 = vld [vmem:[#allocation2 + $0x88] sm:$0xff]
        %v4113 = vld [vmem:[#allocation2 + $0x90] sm:$0xff]
        %v4114 = vpack.c.bf16 %v4095, %v4095
        %v4115 = vpack.c.bf16 %v4096, %v4096
        %v4116 = vpack.c.bf16 %v4097, %v4097
        %v4117 = vpack.c.bf16 %v4098, %v4098
        %v4118 = vpack.c.bf16 %v4099, %v4099
        %v4119 = vpack.c.bf16 %v4100, %v4100
        %v4120 = vpack.c.bf16 %v4101, %v4101
        %v4121 = vpack.c.bf16 %v4102, %v4102
        %v4122 = vpack.c.bf16 %v4103, %v4103
        %v4123 = vpack.c.bf16 %v4104, %v4104
        %v4124 = vpack.c.bf16 %v4105, %v4105
        %v4125 = vpack.c.bf16 %v4106, %v4106
        %v4126 = vpack.c.bf16 %v4107, %v4107
        %v4127 = vpack.c.bf16 %v4108, %v4108
        %v4128 = vpack.c.bf16 %v4109, %v4109
        %v4129 = vpack.c.bf16 %v4110, %v4110
        %v4130 = vpack.c.bf16 %v4111, %v4111
        %v4131 = vpack.c.bf16 %v4112, %v4112
        %v4132 = vpack.c.bf16 %v4113, %v4113
        %v4133 = vld [vmem:[#allocation10] sm:$0xf]
        %v4134 = vld [vmem:[#allocation10 + $0x4] sm:$0xf]
        %v4135 = vld [vmem:[#allocation10 + $0x8] sm:$0xf]
        %v4136 = vld [vmem:[#allocation10 + $0xc] sm:$0xf]
        %v4137 = vld [vmem:[#allocation10 + $0x10] sm:$0xf]
        %v4138 = vld [vmem:[#allocation10 + $0x14] sm:$0xf]
        %v4139 = vld [vmem:[#allocation10 + $0x18] sm:$0xf]
        %v4140 = vld [vmem:[#allocation10 + $0x1c] sm:$0xf]
        %v4141 = vld [vmem:[#allocation10 + $0x20] sm:$0xf]
        %v4142 = vld [vmem:[#allocation10 + $0x24] sm:$0xf]
        %v4143 = vld [vmem:[#allocation10 + $0x28] sm:$0xf]
        %v4144 = vld [vmem:[#allocation10 + $0x2c] sm:$0xf]
        %v4145 = vld [vmem:[#allocation10 + $0x30] sm:$0xf]
        %v4146 = vld [vmem:[#allocation10 + $0x34] sm:$0xf]
        %v4147 = vld [vmem:[#allocation10 + $0x38] sm:$0xf]
        %v4148 = vld [vmem:[#allocation10 + $0x3c] sm:$0xf]
        %v4149 = vld [vmem:[#allocation10 + $0x40] sm:$0xf]
        %v4150 = vld [vmem:[#allocation10 + $0x44] sm:$0xf]
        %v4151 = vld [vmem:[#allocation10 + $0x48] sm:$0xf]
        %v4152 = vld [vmem:[#allocation10 + $0x4c] sm:$0xf]
        %v4153 = vld [vmem:[#allocation10 + $0x50] sm:$0xf]
        %v4154 = vld [vmem:[#allocation10 + $0x54] sm:$0xf]
        %v4155 = vld [vmem:[#allocation10 + $0x58] sm:$0xf]
        %v4156 = vld [vmem:[#allocation10 + $0x5c] sm:$0xf]
        %v4157 = vld [vmem:[#allocation10 + $0x60] sm:$0xf]
        %v4158 = vld [vmem:[#allocation10 + $0x64] sm:$0xf]
        %v4159 = vld [vmem:[#allocation10 + $0x68] sm:$0xf]
        %v4160 = vld [vmem:[#allocation10 + $0x6c] sm:$0xf]
        %v4161 = vld [vmem:[#allocation10 + $0x70] sm:$0xf]
        %v4162 = vld [vmem:[#allocation10 + $0x74] sm:$0xf]
        %v4163 = vld [vmem:[#allocation10 + $0x78] sm:$0xf]
        %v4164 = vld [vmem:[#allocation10 + $0x7c] sm:$0xf]
        %v4165 = vld [vmem:[#allocation10 + $0x80] sm:$0xf]
        %v4166 = vld [vmem:[#allocation10 + $0x84] sm:$0xf]
        %v4167 = vld [vmem:[#allocation10 + $0x88] sm:$0xf]
        %v4168 = vld [vmem:[#allocation10 + $0x8c] sm:$0xf]
        %v4169 = vld [vmem:[#allocation10 + $0x90] sm:$0xf]
        %v4170 = vld [vmem:[#allocation10 + $0x94] sm:$0xf]
        %v4171 = vld [vmem:[#allocation10 + $0x98] sm:$0xf]
        %v4172 = vld [vmem:[#allocation10 + $0x9c] sm:$0xf]
        %v4173 = vld [vmem:[#allocation10 + $0xa0] sm:$0xf]
        %v4174 = vld [vmem:[#allocation10 + $0xa4] sm:$0xf]
        %v4175 = vld [vmem:[#allocation10 + $0xa8] sm:$0xf]
        %v4176 = vld [vmem:[#allocation10 + $0xac] sm:$0xf]
        %v4177 = vld [vmem:[#allocation10 + $0xb0] sm:$0xf]
        %v4178 = vld [vmem:[#allocation10 + $0xb4] sm:$0xf]
        %v4179 = vld [vmem:[#allocation10 + $0xb8] sm:$0xf]
        %v4180 = vld [vmem:[#allocation10 + $0xbc] sm:$0xf]
        %v4181 = vld [vmem:[#allocation10 + $0xc0] sm:$0xf]
        %v4182 = vld [vmem:[#allocation10 + $0xc4] sm:$0xf]
        %v4183 = vld [vmem:[#allocation10 + $0xc8] sm:$0xf]
        %v4184 = vld [vmem:[#allocation10 + $0xcc] sm:$0xf]
        %v4185 = vld [vmem:[#allocation10 + $0xd0] sm:$0xf]
        %v4186 = vld [vmem:[#allocation10 + $0xd4] sm:$0xf]
        %v4187 = vld [vmem:[#allocation10 + $0xd8] sm:$0xf]
        %v4188 = vld [vmem:[#allocation10 + $0xdc] sm:$0xf]
        %v4189 = vld [vmem:[#allocation10 + $0xe0] sm:$0xf]
        %v4190 = vld [vmem:[#allocation10 + $0xe4] sm:$0xf]
        %v4191 = vld [vmem:[#allocation10 + $0xe8] sm:$0xf]
        %v4192 = vld [vmem:[#allocation10 + $0xec] sm:$0xf]
        %v4193 = vld [vmem:[#allocation10 + $0xf0] sm:$0xf]
        %v4194 = vld [vmem:[#allocation10 + $0xf4] sm:$0xf]
        %v4195 = vld [vmem:[#allocation10 + $0xf8] sm:$0xf]
        %v4196 = vld [vmem:[#allocation10 + $0xfc] sm:$0xf]
        %v4197 = vld [vmem:[#allocation10 + $0x100] sm:$0xf]
        %v4198 = vld [vmem:[#allocation10 + $0x104] sm:$0xf]
        %v4199 = vld [vmem:[#allocation10 + $0x108] sm:$0xf]
        %v4200 = vld [vmem:[#allocation10 + $0x10c] sm:$0xf]
        %v4201 = vld [vmem:[#allocation10 + $0x110] sm:$0xf]
        %v4202 = vld [vmem:[#allocation10 + $0x114] sm:$0xf]
        %v4203 = vld [vmem:[#allocation10 + $0x118] sm:$0xf]
        %v4204 = vld [vmem:[#allocation10 + $0x11c] sm:$0xf]
        %v4205 = vld [vmem:[#allocation10 + $0x120] sm:$0xf]
        %v4206 = vld [vmem:[#allocation10 + $0x124] sm:$0xf]
        %v4207 = vld [vmem:[#allocation10 + $0x128] sm:$0xf]
        %v4208 = vld [vmem:[#allocation10 + $0x12c] sm:$0xf]
        %v4209 = vld [vmem:[#allocation10 + $0x130] sm:$0xf]
        %v4210 = vld [vmem:[#allocation10 + $0x134] sm:$0xf]
        %v4211 = vld [vmem:[#allocation10 + $0x138] sm:$0xf]
        %v4212 = vld [vmem:[#allocation10 + $0x13c] sm:$0xf]
        %v4213 = vld [vmem:[#allocation10 + $0x140] sm:$0xf]
        %v4214 = vld [vmem:[#allocation10 + $0x144] sm:$0xf]
        %v4215 = vld [vmem:[#allocation10 + $0x148] sm:$0xf]
        %v4216 = vld [vmem:[#allocation10 + $0x14c] sm:$0xf]
        %v4217 = vld [vmem:[#allocation10 + $0x150] sm:$0xf]
        %v4218 = vld [vmem:[#allocation10 + $0x154] sm:$0xf]
        %v4219 = vld [vmem:[#allocation10 + $0x158] sm:$0xf]
        %v4220 = vld [vmem:[#allocation10 + $0x15c] sm:$0xf]
        %v4221 = vld [vmem:[#allocation10 + $0x160] sm:$0xf]
        %v4222 = vld [vmem:[#allocation10 + $0x164] sm:$0xf]
        %v4223 = vld [vmem:[#allocation10 + $0x168] sm:$0xf]
        %v4224 = vld [vmem:[#allocation10 + $0x16c] sm:$0xf]
        %v4225 = vld [vmem:[#allocation10 + $0x170] sm:$0xf]
        %v4226 = vld [vmem:[#allocation10 + $0x174] sm:$0xf]
        %v4227 = vld [vmem:[#allocation10 + $0x178] sm:$0xf]
        %v4228 = vld [vmem:[#allocation10 + $0x17c] sm:$0xf]
        %v4229 = vld [vmem:[#allocation10 + $0x180] sm:$0xf]
        %v4230 = vld [vmem:[#allocation10 + $0x184] sm:$0xf]
        %v4231 = vld [vmem:[#allocation10 + $0x188] sm:$0xf]
        %v4232 = vld [vmem:[#allocation10 + $0x18c] sm:$0xf]
        %v4233 = vld [vmem:[#allocation10 + $0x190] sm:$0xf]
        %v4234 = vld [vmem:[#allocation10 + $0x194] sm:$0xf]
        %v4235 = vld [vmem:[#allocation10 + $0x198] sm:$0xf]
        %v4236 = vld [vmem:[#allocation10 + $0x19c] sm:$0xf]
        %v4237 = vld [vmem:[#allocation10 + $0x1a0] sm:$0xf]
        %v4238 = vld [vmem:[#allocation10 + $0x1a4] sm:$0xf]
        %v4239 = vld [vmem:[#allocation10 + $0x1a8] sm:$0xf]
        %v4240 = vld [vmem:[#allocation10 + $0x1ac] sm:$0xf]
        %v4241 = vld [vmem:[#allocation10 + $0x1b0] sm:$0xf]
        %v4242 = vld [vmem:[#allocation10 + $0x1b4] sm:$0xf]
        %v4243 = vld [vmem:[#allocation10 + $0x1b8] sm:$0xf]
        %v4244 = vld [vmem:[#allocation10 + $0x1bc] sm:$0xf]
        %v4245 = vld [vmem:[#allocation10 + $0x1c0] sm:$0xf]
        %v4246 = vld [vmem:[#allocation10 + $0x1c4] sm:$0xf]
        %v4247 = vld [vmem:[#allocation10 + $0x1c8] sm:$0xf]
        %v4248 = vld [vmem:[#allocation10 + $0x1cc] sm:$0xf]
        %v4249 = vld [vmem:[#allocation10 + $0x1d0] sm:$0xf]
        %v4250 = vld [vmem:[#allocation10 + $0x1d4] sm:$0xf]
        %v4251 = vld [vmem:[#allocation10 + $0x1d8] sm:$0xf]
        %v4252 = vld [vmem:[#allocation10 + $0x1dc] sm:$0xf]
        %v4253 = vld [vmem:[#allocation10 + $0x1e0] sm:$0xf]
        %v4254 = vld [vmem:[#allocation10 + $0x1e4] sm:$0xf]
        %v4255 = vld [vmem:[#allocation10 + $0x1e8] sm:$0xf]
        %v4256 = vld [vmem:[#allocation10 + $0x1ec] sm:$0xf]
        %v4257 = vld [vmem:[#allocation10 + $0x1f0] sm:$0xf]
        %v4258 = vld [vmem:[#allocation10 + $0x1f4] sm:$0xf]
        %v4259 = vld [vmem:[#allocation10 + $0x1f8] sm:$0xf]
        %v4260 = vld [vmem:[#allocation10 + $0x1fc] sm:$0xf]
        %v4261 = vld [vmem:[#allocation10 + $0x200] sm:$0xf]
        %v4262 = vld [vmem:[#allocation10 + $0x204] sm:$0xf]
        %v4263 = vld [vmem:[#allocation10 + $0x208] sm:$0xf]
        %v4264 = vld [vmem:[#allocation10 + $0x20c] sm:$0xf]
        %v4265 = vld [vmem:[#allocation10 + $0x210] sm:$0xf]
        %v4266 = vld [vmem:[#allocation10 + $0x214] sm:$0xf]
        %v4267 = vld [vmem:[#allocation10 + $0x218] sm:$0xf]
        %v4268 = vld [vmem:[#allocation10 + $0x21c] sm:$0xf]
        %v4269 = vld [vmem:[#allocation10 + $0x220] sm:$0xf]
        %v4270 = vld [vmem:[#allocation10 + $0x224] sm:$0xf]
        %v4271 = vld [vmem:[#allocation10 + $0x228] sm:$0xf]
        %v4272 = vld [vmem:[#allocation10 + $0x22c] sm:$0xf]
        %v4273 = vld [vmem:[#allocation10 + $0x230] sm:$0xf]
        %v4274 = vld [vmem:[#allocation10 + $0x234] sm:$0xf]
        %v4275 = vld [vmem:[#allocation10 + $0x238] sm:$0xf]
        %v4276 = vld [vmem:[#allocation10 + $0x23c] sm:$0xf]
        %v4277 = vld [vmem:[#allocation10 + $0x240] sm:$0xf]
        %v4278 = vld [vmem:[#allocation10 + $0x244] sm:$0xf]
        %v4279 = vld [vmem:[#allocation10 + $0x248] sm:$0xf]
        %v4280 = vld [vmem:[#allocation10 + $0x24c] sm:$0xf]
        %v4281 = vld [vmem:[#allocation10 + $0x250] sm:$0xf]
        %v4282 = vld [vmem:[#allocation10 + $0x254] sm:$0xf]
        %v4283 = vld [vmem:[#allocation10 + $0x258] sm:$0xf]
        %v4284 = vld [vmem:[#allocation10 + $0x25c] sm:$0xf]
        %v4285 = vld [vmem:[#allocation10 + $0x260] sm:$0xf]
        %v4286 = vld [vmem:[#allocation10 + $0x264] sm:$0xf]
        %v4287 = vld [vmem:[#allocation10 + $0x268] sm:$0xf]
        %v4288 = vld [vmem:[#allocation10 + $0x26c] sm:$0xf]
        %v4289 = vld [vmem:[#allocation10 + $0x270] sm:$0xf]
        %v4290 = vld [vmem:[#allocation10 + $0x274] sm:$0xf]
        %v4291 = vld [vmem:[#allocation10 + $0x278] sm:$0xf]
        %v4292 = vld [vmem:[#allocation10 + $0x27c] sm:$0xf]
        %v4293 = vld [vmem:[#allocation10 + $0x280] sm:$0xf]
        %v4294 = vld [vmem:[#allocation10 + $0x284] sm:$0xf]
        %v4295 = vld [vmem:[#allocation10 + $0x288] sm:$0xf]
        %v4296 = vld [vmem:[#allocation10 + $0x28c] sm:$0xf]
        %v4297 = vld [vmem:[#allocation10 + $0x290] sm:$0xf]
        %v4298 = vld [vmem:[#allocation10 + $0x294] sm:$0xf]
        %v4299 = vld [vmem:[#allocation10 + $0x298] sm:$0xf]
        %v4300 = vld [vmem:[#allocation10 + $0x29c] sm:$0xf]
        %v4301 = vld [vmem:[#allocation10 + $0x2a0] sm:$0xf]
        %v4302 = vld [vmem:[#allocation10 + $0x2a4] sm:$0xf]
        %v4303 = vld [vmem:[#allocation10 + $0x2a8] sm:$0xf]
        %v4304 = vld [vmem:[#allocation10 + $0x2ac] sm:$0xf]
        %v4305 = vld [vmem:[#allocation10 + $0x2b0] sm:$0xf]
        %v4306 = vld [vmem:[#allocation10 + $0x2b4] sm:$0xf]
        %v4307 = vld [vmem:[#allocation10 + $0x2b8] sm:$0xf]
        %v4308 = vld [vmem:[#allocation10 + $0x2bc] sm:$0xf]
        %v4309 = vld [vmem:[#allocation10 + $0x2c0] sm:$0xf]
        %v4310 = vld [vmem:[#allocation10 + $0x2c4] sm:$0xf]
        %v4311 = vld [vmem:[#allocation10 + $0x2c8] sm:$0xf]
        %v4312 = vld [vmem:[#allocation10 + $0x2cc] sm:$0xf]
        %v4313 = vld [vmem:[#allocation10 + $0x2d0] sm:$0xf]
        %v4314 = vld [vmem:[#allocation10 + $0x2d4] sm:$0xf]
        %v4315 = vld [vmem:[#allocation10 + $0x2d8] sm:$0xf]
        %v4316 = vld [vmem:[#allocation10 + $0x2dc] sm:$0xf]
        %v4317 = vld [vmem:[#allocation10 + $0x2e0] sm:$0xf]
        %v4318 = vld [vmem:[#allocation10 + $0x2e4] sm:$0xf]
        %v4319 = vld [vmem:[#allocation10 + $0x2e8] sm:$0xf]
        %v4320 = vld [vmem:[#allocation10 + $0x2ec] sm:$0xf]
        %v4321 = vld [vmem:[#allocation10 + $0x2f0] sm:$0xf]
        %v4322 = vld [vmem:[#allocation10 + $0x2f4] sm:$0xf]
        %v4323 = vld [vmem:[#allocation10 + $0x2f8] sm:$0xf]
        %v4324 = vld [vmem:[#allocation10 + $0x2fc] sm:$0xf]
        %v4325 = vld [vmem:[#allocation10 + $0x300] sm:$0xf]
        %v4326 = vld [vmem:[#allocation10 + $0x304] sm:$0xf]
        %v4327 = vld [vmem:[#allocation10 + $0x308] sm:$0xf]
        %v4328 = vld [vmem:[#allocation10 + $0x30c] sm:$0xf]
        %v4329 = vld [vmem:[#allocation10 + $0x310] sm:$0xf]
        %v4330 = vld [vmem:[#allocation10 + $0x314] sm:$0xf]
        %v4331 = vld [vmem:[#allocation10 + $0x318] sm:$0xf]
        %v4332 = vld [vmem:[#allocation10 + $0x31c] sm:$0xf]
        %v4333 = vld [vmem:[#allocation10 + $0x320] sm:$0xf]
        %v4334 = vld [vmem:[#allocation10 + $0x324] sm:$0xf]
        %v4335 = vld [vmem:[#allocation10 + $0x328] sm:$0xf]
        %v4336 = vld [vmem:[#allocation10 + $0x32c] sm:$0xf]
        %v4337 = vld [vmem:[#allocation10 + $0x330] sm:$0xf]
        %v4338 = vld [vmem:[#allocation10 + $0x334] sm:$0xf]
        %v4339 = vld [vmem:[#allocation10 + $0x338] sm:$0xf]
        %v4340 = vld [vmem:[#allocation10 + $0x33c] sm:$0xf]
        %v4341 = vld [vmem:[#allocation10 + $0x340] sm:$0xf]
        %v4342 = vld [vmem:[#allocation10 + $0x344] sm:$0xf]
        %v4343 = vld [vmem:[#allocation10 + $0x348] sm:$0xf]
        %v4344 = vld [vmem:[#allocation10 + $0x34c] sm:$0xf]
        %v4345 = vld [vmem:[#allocation10 + $0x350] sm:$0xf]
        %v4346 = vld [vmem:[#allocation10 + $0x354] sm:$0xf]
        %v4347 = vld [vmem:[#allocation10 + $0x358] sm:$0xf]
        %v4348 = vld [vmem:[#allocation10 + $0x35c] sm:$0xf]
        %v4349 = vld [vmem:[#allocation10 + $0x360] sm:$0xf]
        %v4350 = vld [vmem:[#allocation10 + $0x364] sm:$0xf]
        %v4351 = vld [vmem:[#allocation10 + $0x368] sm:$0xf]
        %v4352 = vld [vmem:[#allocation10 + $0x36c] sm:$0xf]
        %v4353 = vld [vmem:[#allocation10 + $0x370] sm:$0xf]
        %v4354 = vld [vmem:[#allocation10 + $0x374] sm:$0xf]
        %v4355 = vld [vmem:[#allocation10 + $0x378] sm:$0xf]
        %v4356 = vld [vmem:[#allocation10 + $0x37c] sm:$0xf]
        %v4357 = vld [vmem:[#allocation10 + $0x380] sm:$0xf]
        %v4358 = vld [vmem:[#allocation10 + $0x384] sm:$0xf]
        %v4359 = vld [vmem:[#allocation10 + $0x388] sm:$0xf]
        %v4360 = vld [vmem:[#allocation10 + $0x38c] sm:$0xf]
        %v4361 = vld [vmem:[#allocation10 + $0x390] sm:$0xf]
        %v4362 = vld [vmem:[#allocation10 + $0x394] sm:$0xf]
        %v4363 = vld [vmem:[#allocation10 + $0x398] sm:$0xf]
        %v4364 = vld [vmem:[#allocation10 + $0x39c] sm:$0xf]
        %v4365 = vld [vmem:[#allocation10 + $0x3a0] sm:$0xf]
        %v4366 = vld [vmem:[#allocation10 + $0x3a4] sm:$0xf]
        %v4367 = vld [vmem:[#allocation10 + $0x3a8] sm:$0xf]
        %v4368 = vld [vmem:[#allocation10 + $0x3ac] sm:$0xf]
        %v4369 = vld [vmem:[#allocation10 + $0x3b0] sm:$0xf]
        %v4370 = vld [vmem:[#allocation10 + $0x3b4] sm:$0xf]
        %v4371 = vld [vmem:[#allocation10 + $0x3b8] sm:$0xf]
        %v4372 = vld [vmem:[#allocation10 + $0x3bc] sm:$0xf]
        %v4373 = vld [vmem:[#allocation10 + $0x3c0] sm:$0xf]
        %v4374 = vld [vmem:[#allocation10 + $0x3c4] sm:$0xf]
        %v4375 = vld [vmem:[#allocation10 + $0x3c8] sm:$0xf]
        %v4376 = vld [vmem:[#allocation10 + $0x3cc] sm:$0xf]
        %v4377 = vld [vmem:[#allocation10 + $0x3d0] sm:$0xf]
        %v4378 = vld [vmem:[#allocation10 + $0x3d4] sm:$0xf]
        %v4379 = vld [vmem:[#allocation10 + $0x3d8] sm:$0xf]
        %v4380 = vld [vmem:[#allocation10 + $0x3dc] sm:$0xf]
        %v4381 = vld [vmem:[#allocation10 + $0x3e0] sm:$0xf]
        %v4382 = vld [vmem:[#allocation10 + $0x3e4] sm:$0xf]
        %v4383 = vld [vmem:[#allocation10 + $0x3e8] sm:$0xf]
        %v4384 = vld [vmem:[#allocation10 + $0x3ec] sm:$0xf]
        %v4385 = vld [vmem:[#allocation10 + $0x3f0] sm:$0xf]
        %v4386 = vld [vmem:[#allocation10 + $0x3f4] sm:$0xf]
        %v4387 = vld [vmem:[#allocation10 + $0x3f8] sm:$0xf]
        %v4388 = vld [vmem:[#allocation10 + $0x3fc] sm:$0xf]
        %v4389 = vld [vmem:[#allocation10 + $0x400] sm:$0xf]
        %v4390 = vld [vmem:[#allocation10 + $0x404] sm:$0xf]
        %v4391 = vld [vmem:[#allocation10 + $0x408] sm:$0xf]
        %v4392 = vld [vmem:[#allocation10 + $0x40c] sm:$0xf]
        %v4393 = vld [vmem:[#allocation10 + $0x410] sm:$0xf]
        %v4394 = vld [vmem:[#allocation10 + $0x414] sm:$0xf]
        %v4395 = vld [vmem:[#allocation10 + $0x418] sm:$0xf]
        %v4396 = vld [vmem:[#allocation10 + $0x41c] sm:$0xf]
        %v4397 = vld [vmem:[#allocation10 + $0x420] sm:$0xf]
        %v4398 = vld [vmem:[#allocation10 + $0x424] sm:$0xf]
        %v4399 = vld [vmem:[#allocation10 + $0x428] sm:$0xf]
        %v4400 = vld [vmem:[#allocation10 + $0x42c] sm:$0xf]
        %v4401 = vld [vmem:[#allocation10 + $0x430] sm:$0xf]
        %v4402 = vld [vmem:[#allocation10 + $0x434] sm:$0xf]
        %v4403 = vld [vmem:[#allocation10 + $0x438] sm:$0xf]
        %v4404 = vld [vmem:[#allocation10 + $0x43c] sm:$0xf]
        %v4405 = vld [vmem:[#allocation10 + $0x440] sm:$0xf]
        %v4406 = vld [vmem:[#allocation10 + $0x444] sm:$0xf]
        %v4407 = vld [vmem:[#allocation10 + $0x448] sm:$0xf]
        %v4408 = vld [vmem:[#allocation10 + $0x44c] sm:$0xf]
        %v4409 = vld [vmem:[#allocation10 + $0x450] sm:$0xf]
        %v4410 = vld [vmem:[#allocation10 + $0x454] sm:$0xf]
        %v4411 = vld [vmem:[#allocation10 + $0x458] sm:$0xf]
        %v4412 = vld [vmem:[#allocation10 + $0x45c] sm:$0xf]
        %v4413 = vld [vmem:[#allocation10 + $0x460] sm:$0xf]
        %v4414 = vld [vmem:[#allocation10 + $0x464] sm:$0xf]
        %v4415 = vld [vmem:[#allocation10 + $0x468] sm:$0xf]
        %v4416 = vld [vmem:[#allocation10 + $0x46c] sm:$0xf]
        %v4417 = vld [vmem:[#allocation10 + $0x470] sm:$0xf]
        %v4418 = vld [vmem:[#allocation10 + $0x474] sm:$0xf]
        %v4419 = vld [vmem:[#allocation10 + $0x478] sm:$0xf]
        %v4420 = vld [vmem:[#allocation10 + $0x47c] sm:$0xf]
        %v4421 = vld [vmem:[#allocation10 + $0x480] sm:$0xf]
        %v4422 = vld [vmem:[#allocation10 + $0x484] sm:$0xf]
        %v4423 = vld [vmem:[#allocation10 + $0x488] sm:$0xf]
        %v4424 = vld [vmem:[#allocation10 + $0x48c] sm:$0xf]
        %v4425 = vld [vmem:[#allocation10 + $0x490] sm:$0xf]
        %v4426 = vld [vmem:[#allocation10 + $0x494] sm:$0xf]
        %v4427 = vld [vmem:[#allocation10 + $0x498] sm:$0xf]
        %v4428 = vld [vmem:[#allocation10 + $0x49c] sm:$0xf]
        %v4429 = vld [vmem:[#allocation10 + $0x4a0] sm:$0xf]
        %v4430 = vld [vmem:[#allocation10 + $0x4a4] sm:$0xf]
        %v4431 = vld [vmem:[#allocation10 + $0x4a8] sm:$0xf]
        %v4432 = vld [vmem:[#allocation10 + $0x4ac] sm:$0xf]
        %v4433 = vld [vmem:[#allocation10 + $0x4b0] sm:$0xf]
        %v4434 = vld [vmem:[#allocation10 + $0x4b4] sm:$0xf]
        %v4435 = vld [vmem:[#allocation10 + $0x4b8] sm:$0xf]
        %v4436 = vld [vmem:[#allocation10 + $0x4bc] sm:$0xf]
        %v4741 = vunpack.c.l.b16 %v4133
        %v4742 = vunpack.c.l.b16 %v4134
        %v4743 = vunpack.c.l.b16 %v4135
        %v4744 = vunpack.c.l.b16 %v4136
        %v4745 = vunpack.c.l.b16 %v4137
        %v4746 = vunpack.c.l.b16 %v4138
        %v4747 = vunpack.c.l.b16 %v4139
        %v4748 = vunpack.c.l.b16 %v4140
        %v4749 = vunpack.c.l.b16 %v4141
        %v4750 = vunpack.c.l.b16 %v4142
        %v4751 = vunpack.c.l.b16 %v4143
        %v4752 = vunpack.c.l.b16 %v4144
        %v4753 = vunpack.c.l.b16 %v4145
        %v4754 = vunpack.c.l.b16 %v4146
        %v4755 = vunpack.c.l.b16 %v4147
        %v4756 = vunpack.c.l.b16 %v4148
        %v4757 = vunpack.c.l.b16 %v4149
        %v4758 = vunpack.c.l.b16 %v4150
        %v4759 = vunpack.c.l.b16 %v4151
        %v4760 = vunpack.c.l.b16 %v4152
        %v4761 = vunpack.c.l.b16 %v4153
        %v4762 = vunpack.c.l.b16 %v4154
        %v4763 = vunpack.c.l.b16 %v4155
        %v4764 = vunpack.c.l.b16 %v4156
        %v4765 = vunpack.c.l.b16 %v4157
        %v4766 = vunpack.c.l.b16 %v4158
        %v4767 = vunpack.c.l.b16 %v4159
        %v4768 = vunpack.c.l.b16 %v4160
        %v4769 = vunpack.c.l.b16 %v4161
        %v4770 = vunpack.c.l.b16 %v4162
        %v4771 = vunpack.c.l.b16 %v4163
        %v4772 = vunpack.c.l.b16 %v4164
        %v4773 = vunpack.c.l.b16 %v4165
        %v4774 = vunpack.c.l.b16 %v4166
        %v4775 = vunpack.c.l.b16 %v4167
        %v4776 = vunpack.c.l.b16 %v4168
        %v4777 = vunpack.c.l.b16 %v4169
        %v4778 = vunpack.c.l.b16 %v4170
        %v4779 = vunpack.c.l.b16 %v4171
        %v4780 = vunpack.c.l.b16 %v4172
        %v4781 = vunpack.c.l.b16 %v4173
        %v4782 = vunpack.c.l.b16 %v4174
        %v4783 = vunpack.c.l.b16 %v4175
        %v4784 = vunpack.c.l.b16 %v4176
        %v4785 = vunpack.c.l.b16 %v4177
        %v4786 = vunpack.c.l.b16 %v4178
        %v4787 = vunpack.c.l.b16 %v4179
        %v4788 = vunpack.c.l.b16 %v4180
        %v4789 = vunpack.c.l.b16 %v4181
        %v4790 = vunpack.c.l.b16 %v4182
        %v4791 = vunpack.c.l.b16 %v4183
        %v4792 = vunpack.c.l.b16 %v4184
        %v4793 = vunpack.c.l.b16 %v4185
        %v4794 = vunpack.c.l.b16 %v4186
        %v4795 = vunpack.c.l.b16 %v4187
        %v4796 = vunpack.c.l.b16 %v4188
        %v4797 = vunpack.c.l.b16 %v4189
        %v4798 = vunpack.c.l.b16 %v4190
        %v4799 = vunpack.c.l.b16 %v4191
        %v4800 = vunpack.c.l.b16 %v4192
        %v4801 = vunpack.c.l.b16 %v4193
        %v4802 = vunpack.c.l.b16 %v4194
        %v4803 = vunpack.c.l.b16 %v4195
        %v4804 = vunpack.c.l.b16 %v4196
        %v4805 = vunpack.c.l.b16 %v4197
        %v4806 = vunpack.c.l.b16 %v4198
        %v4807 = vunpack.c.l.b16 %v4199
        %v4808 = vunpack.c.l.b16 %v4200
        %v4809 = vunpack.c.l.b16 %v4201
        %v4810 = vunpack.c.l.b16 %v4202
        %v4811 = vunpack.c.l.b16 %v4203
        %v4812 = vunpack.c.l.b16 %v4204
        %v4813 = vunpack.c.l.b16 %v4205
        %v4814 = vunpack.c.l.b16 %v4206
        %v4815 = vunpack.c.l.b16 %v4207
        %v4816 = vunpack.c.l.b16 %v4208
        %v4817 = vunpack.c.l.b16 %v4209
        %v4818 = vunpack.c.l.b16 %v4210
        %v4819 = vunpack.c.l.b16 %v4211
        %v4820 = vunpack.c.l.b16 %v4212
        %v4821 = vunpack.c.l.b16 %v4213
        %v4822 = vunpack.c.l.b16 %v4214
        %v4823 = vunpack.c.l.b16 %v4215
        %v4824 = vunpack.c.l.b16 %v4216
        %v4825 = vunpack.c.l.b16 %v4217
        %v4826 = vunpack.c.l.b16 %v4218
        %v4827 = vunpack.c.l.b16 %v4219
        %v4828 = vunpack.c.l.b16 %v4220
        %v4829 = vunpack.c.l.b16 %v4221
        %v4830 = vunpack.c.l.b16 %v4222
        %v4831 = vunpack.c.l.b16 %v4223
        %v4832 = vunpack.c.l.b16 %v4224
        %v4833 = vunpack.c.l.b16 %v4225
        %v4834 = vunpack.c.l.b16 %v4226
        %v4835 = vunpack.c.l.b16 %v4227
        %v4836 = vunpack.c.l.b16 %v4228
        %v4837 = vunpack.c.l.b16 %v4229
        %v4838 = vunpack.c.l.b16 %v4230
        %v4839 = vunpack.c.l.b16 %v4231
        %v4840 = vunpack.c.l.b16 %v4232
        %v4841 = vunpack.c.l.b16 %v4233
        %v4842 = vunpack.c.l.b16 %v4234
        %v4843 = vunpack.c.l.b16 %v4235
        %v4844 = vunpack.c.l.b16 %v4236
        %v4845 = vunpack.c.l.b16 %v4237
        %v4846 = vunpack.c.l.b16 %v4238
        %v4847 = vunpack.c.l.b16 %v4239
        %v4848 = vunpack.c.l.b16 %v4240
        %v4849 = vunpack.c.l.b16 %v4241
        %v4850 = vunpack.c.l.b16 %v4242
        %v4851 = vunpack.c.l.b16 %v4243
        %v4852 = vunpack.c.l.b16 %v4244
        %v4853 = vunpack.c.l.b16 %v4245
        %v4854 = vunpack.c.l.b16 %v4246
        %v4855 = vunpack.c.l.b16 %v4247
        %v4856 = vunpack.c.l.b16 %v4248
        %v4857 = vunpack.c.l.b16 %v4249
        %v4858 = vunpack.c.l.b16 %v4250
        %v4859 = vunpack.c.l.b16 %v4251
        %v4860 = vunpack.c.l.b16 %v4252
        %v4861 = vunpack.c.l.b16 %v4253
        %v4862 = vunpack.c.l.b16 %v4254
        %v4863 = vunpack.c.l.b16 %v4255
        %v4864 = vunpack.c.l.b16 %v4256
        %v4865 = vunpack.c.l.b16 %v4257
        %v4866 = vunpack.c.l.b16 %v4258
        %v4867 = vunpack.c.l.b16 %v4259
        %v4868 = vunpack.c.l.b16 %v4260
        %v4869 = vunpack.c.l.b16 %v4261
        %v4870 = vunpack.c.l.b16 %v4262
        %v4871 = vunpack.c.l.b16 %v4263
        %v4872 = vunpack.c.l.b16 %v4264
        %v4873 = vunpack.c.l.b16 %v4265
        %v4874 = vunpack.c.l.b16 %v4266
        %v4875 = vunpack.c.l.b16 %v4267
        %v4876 = vunpack.c.l.b16 %v4268
        %v4877 = vunpack.c.l.b16 %v4269
        %v4878 = vunpack.c.l.b16 %v4270
        %v4879 = vunpack.c.l.b16 %v4271
        %v4880 = vunpack.c.l.b16 %v4272
        %v4881 = vunpack.c.l.b16 %v4273
        %v4882 = vunpack.c.l.b16 %v4274
        %v4883 = vunpack.c.l.b16 %v4275
        %v4884 = vunpack.c.l.b16 %v4276
        %v4885 = vunpack.c.l.b16 %v4277
        %v4886 = vunpack.c.l.b16 %v4278
        %v4887 = vunpack.c.l.b16 %v4279
        %v4888 = vunpack.c.l.b16 %v4280
        %v4889 = vunpack.c.l.b16 %v4281
        %v4890 = vunpack.c.l.b16 %v4282
        %v4891 = vunpack.c.l.b16 %v4283
        %v4892 = vunpack.c.l.b16 %v4284
        %v4893 = vunpack.c.l.b16 %v4285
        %v4894 = vunpack.c.l.b16 %v4286
        %v4895 = vunpack.c.l.b16 %v4287
        %v4896 = vunpack.c.l.b16 %v4288
        %v4897 = vunpack.c.l.b16 %v4289
        %v4898 = vunpack.c.l.b16 %v4290
        %v4899 = vunpack.c.l.b16 %v4291
        %v4900 = vunpack.c.l.b16 %v4292
        %v4901 = vunpack.c.l.b16 %v4293
        %v4902 = vunpack.c.l.b16 %v4294
        %v4903 = vunpack.c.l.b16 %v4295
        %v4904 = vunpack.c.l.b16 %v4296
        %v4905 = vunpack.c.l.b16 %v4297
        %v4906 = vunpack.c.l.b16 %v4298
        %v4907 = vunpack.c.l.b16 %v4299
        %v4908 = vunpack.c.l.b16 %v4300
        %v4909 = vunpack.c.l.b16 %v4301
        %v4910 = vunpack.c.l.b16 %v4302
        %v4911 = vunpack.c.l.b16 %v4303
        %v4912 = vunpack.c.l.b16 %v4304
        %v4913 = vunpack.c.l.b16 %v4305
        %v4914 = vunpack.c.l.b16 %v4306
        %v4915 = vunpack.c.l.b16 %v4307
        %v4916 = vunpack.c.l.b16 %v4308
        %v4917 = vunpack.c.l.b16 %v4309
        %v4918 = vunpack.c.l.b16 %v4310
        %v4919 = vunpack.c.l.b16 %v4311
        %v4920 = vunpack.c.l.b16 %v4312
        %v4921 = vunpack.c.l.b16 %v4313
        %v4922 = vunpack.c.l.b16 %v4314
        %v4923 = vunpack.c.l.b16 %v4315
        %v4924 = vunpack.c.l.b16 %v4316
        %v4925 = vunpack.c.l.b16 %v4317
        %v4926 = vunpack.c.l.b16 %v4318
        %v4927 = vunpack.c.l.b16 %v4319
        %v4928 = vunpack.c.l.b16 %v4320
        %v4929 = vunpack.c.l.b16 %v4321
        %v4930 = vunpack.c.l.b16 %v4322
        %v4931 = vunpack.c.l.b16 %v4323
        %v4932 = vunpack.c.l.b16 %v4324
        %v4933 = vunpack.c.l.b16 %v4325
        %v4934 = vunpack.c.l.b16 %v4326
        %v4935 = vunpack.c.l.b16 %v4327
        %v4936 = vunpack.c.l.b16 %v4328
        %v4937 = vunpack.c.l.b16 %v4329
        %v4938 = vunpack.c.l.b16 %v4330
        %v4939 = vunpack.c.l.b16 %v4331
        %v4940 = vunpack.c.l.b16 %v4332
        %v4941 = vunpack.c.l.b16 %v4333
        %v4942 = vunpack.c.l.b16 %v4334
        %v4943 = vunpack.c.l.b16 %v4335
        %v4944 = vunpack.c.l.b16 %v4336
        %v4945 = vunpack.c.l.b16 %v4337
        %v4946 = vunpack.c.l.b16 %v4338
        %v4947 = vunpack.c.l.b16 %v4339
        %v4948 = vunpack.c.l.b16 %v4340
        %v4949 = vunpack.c.l.b16 %v4341
        %v4950 = vunpack.c.l.b16 %v4342
        %v4951 = vunpack.c.l.b16 %v4343
        %v4952 = vunpack.c.l.b16 %v4344
        %v4953 = vunpack.c.l.b16 %v4345
        %v4954 = vunpack.c.l.b16 %v4346
        %v4955 = vunpack.c.l.b16 %v4347
        %v4956 = vunpack.c.l.b16 %v4348
        %v4957 = vunpack.c.l.b16 %v4349
        %v4958 = vunpack.c.l.b16 %v4350
        %v4959 = vunpack.c.l.b16 %v4351
        %v4960 = vunpack.c.l.b16 %v4352
        %v4961 = vunpack.c.l.b16 %v4353
        %v4962 = vunpack.c.l.b16 %v4354
        %v4963 = vunpack.c.l.b16 %v4355
        %v4964 = vunpack.c.l.b16 %v4356
        %v4965 = vunpack.c.l.b16 %v4357
        %v4966 = vunpack.c.l.b16 %v4358
        %v4967 = vunpack.c.l.b16 %v4359
        %v4968 = vunpack.c.l.b16 %v4360
        %v4969 = vunpack.c.l.b16 %v4361
        %v4970 = vunpack.c.l.b16 %v4362
        %v4971 = vunpack.c.l.b16 %v4363
        %v4972 = vunpack.c.l.b16 %v4364
        %v4973 = vunpack.c.l.b16 %v4365
        %v4974 = vunpack.c.l.b16 %v4366
        %v4975 = vunpack.c.l.b16 %v4367
        %v4976 = vunpack.c.l.b16 %v4368
        %v4977 = vunpack.c.l.b16 %v4369
        %v4978 = vunpack.c.l.b16 %v4370
        %v4979 = vunpack.c.l.b16 %v4371
        %v4980 = vunpack.c.l.b16 %v4372
        %v4981 = vunpack.c.l.b16 %v4373
        %v4982 = vunpack.c.l.b16 %v4374
        %v4983 = vunpack.c.l.b16 %v4375
        %v4984 = vunpack.c.l.b16 %v4376
        %v4985 = vunpack.c.l.b16 %v4377
        %v4986 = vunpack.c.l.b16 %v4378
        %v4987 = vunpack.c.l.b16 %v4379
        %v4988 = vunpack.c.l.b16 %v4380
        %v4989 = vunpack.c.l.b16 %v4381
        %v4990 = vunpack.c.l.b16 %v4382
        %v4991 = vunpack.c.l.b16 %v4383
        %v4992 = vunpack.c.l.b16 %v4384
        %v4993 = vunpack.c.l.b16 %v4385
        %v4994 = vunpack.c.l.b16 %v4386
        %v4995 = vunpack.c.l.b16 %v4387
        %v4996 = vunpack.c.l.b16 %v4388
        %v4997 = vunpack.c.l.b16 %v4389
        %v4998 = vunpack.c.l.b16 %v4390
        %v4999 = vunpack.c.l.b16 %v4391
        %v5000 = vunpack.c.l.b16 %v4392
        %v5001 = vunpack.c.l.b16 %v4393
        %v5002 = vunpack.c.l.b16 %v4394
        %v5003 = vunpack.c.l.b16 %v4395
        %v5004 = vunpack.c.l.b16 %v4396
        %v5005 = vunpack.c.l.b16 %v4397
        %v5006 = vunpack.c.l.b16 %v4398
        %v5007 = vunpack.c.l.b16 %v4399
        %v5008 = vunpack.c.l.b16 %v4400
        %v5009 = vunpack.c.l.b16 %v4401
        %v5010 = vunpack.c.l.b16 %v4402
        %v5011 = vunpack.c.l.b16 %v4403
        %v5012 = vunpack.c.l.b16 %v4404
        %v5013 = vunpack.c.l.b16 %v4405
        %v5014 = vunpack.c.l.b16 %v4406
        %v5015 = vunpack.c.l.b16 %v4407
        %v5016 = vunpack.c.l.b16 %v4408
        %v5017 = vunpack.c.l.b16 %v4409
        %v5018 = vunpack.c.l.b16 %v4410
        %v5019 = vunpack.c.l.b16 %v4411
        %v5020 = vunpack.c.l.b16 %v4412
        %v5021 = vunpack.c.l.b16 %v4413
        %v5022 = vunpack.c.l.b16 %v4414
        %v5023 = vunpack.c.l.b16 %v4415
        %v5024 = vunpack.c.l.b16 %v4416
        %v5025 = vunpack.c.l.b16 %v4417
        %v5026 = vunpack.c.l.b16 %v4418
        %v5027 = vunpack.c.l.b16 %v4419
        %v5028 = vunpack.c.l.b16 %v4420
        %v5029 = vunpack.c.l.b16 %v4421
        %v5030 = vunpack.c.l.b16 %v4422
        %v5031 = vunpack.c.l.b16 %v4423
        %v5032 = vunpack.c.l.b16 %v4424
        %v5033 = vunpack.c.l.b16 %v4425
        %v5034 = vunpack.c.l.b16 %v4426
        %v5035 = vunpack.c.l.b16 %v4427
        %v5036 = vunpack.c.l.b16 %v4428
        %v5037 = vunpack.c.l.b16 %v4429
        %v5038 = vunpack.c.l.b16 %v4430
        %v5039 = vunpack.c.l.b16 %v4431
        %v5040 = vunpack.c.l.b16 %v4432
        %v5041 = vunpack.c.l.b16 %v4433
        %v5042 = vunpack.c.l.b16 %v4434
        %v5043 = vunpack.c.l.b16 %v4435
        %v5044 = vunpack.c.l.b16 %v4436
        %v5045 = vpack.c.b16 %v4742, %v4741
        %v5046 = vpack.c.b16 %v4744, %v4743
        %v5047 = vpack.c.b16 %v4746, %v4745
        %v5048 = vpack.c.b16 %v4748, %v4747
        %v5049 = vpack.c.b16 %v4750, %v4749
        %v5050 = vpack.c.b16 %v4752, %v4751
        %v5051 = vpack.c.b16 %v4754, %v4753
        %v5052 = vpack.c.b16 %v4756, %v4755
        %v5053 = vpack.c.b16 %v4758, %v4757
        %v5054 = vpack.c.b16 %v4760, %v4759
        %v5055 = vpack.c.b16 %v4762, %v4761
        %v5056 = vpack.c.b16 %v4764, %v4763
        %v5057 = vpack.c.b16 %v4766, %v4765
        %v5058 = vpack.c.b16 %v4768, %v4767
        %v5059 = vpack.c.b16 %v4770, %v4769
        %v5060 = vpack.c.b16 %v4772, %v4771
        %v5061 = vpack.c.b16 %v4774, %v4773
        %v5062 = vpack.c.b16 %v4776, %v4775
        %v5063 = vpack.c.b16 %v4778, %v4777
        %v5064 = vpack.c.b16 %v4780, %v4779
        %v5065 = vpack.c.b16 %v4782, %v4781
        %v5066 = vpack.c.b16 %v4784, %v4783
        %v5067 = vpack.c.b16 %v4786, %v4785
        %v5068 = vpack.c.b16 %v4788, %v4787
        %v5069 = vpack.c.b16 %v4790, %v4789
        %v5070 = vpack.c.b16 %v4792, %v4791
        %v5071 = vpack.c.b16 %v4794, %v4793
        %v5072 = vpack.c.b16 %v4796, %v4795
        %v5073 = vpack.c.b16 %v4798, %v4797
        %v5074 = vpack.c.b16 %v4800, %v4799
        %v5075 = vpack.c.b16 %v4802, %v4801
        %v5076 = vpack.c.b16 %v4804, %v4803
        %v5077 = vpack.c.b16 %v4806, %v4805
        %v5078 = vpack.c.b16 %v4808, %v4807
        %v5079 = vpack.c.b16 %v4810, %v4809
        %v5080 = vpack.c.b16 %v4812, %v4811
        %v5081 = vpack.c.b16 %v4814, %v4813
        %v5082 = vpack.c.b16 %v4816, %v4815
        %v5083 = vpack.c.b16 %v4818, %v4817
        %v5084 = vpack.c.b16 %v4820, %v4819
        %v5085 = vpack.c.b16 %v4822, %v4821
        %v5086 = vpack.c.b16 %v4824, %v4823
        %v5087 = vpack.c.b16 %v4826, %v4825
        %v5088 = vpack.c.b16 %v4828, %v4827
        %v5089 = vpack.c.b16 %v4830, %v4829
        %v5090 = vpack.c.b16 %v4832, %v4831
        %v5091 = vpack.c.b16 %v4834, %v4833
        %v5092 = vpack.c.b16 %v4836, %v4835
        %v5093 = vpack.c.b16 %v4838, %v4837
        %v5094 = vpack.c.b16 %v4840, %v4839
        %v5095 = vpack.c.b16 %v4842, %v4841
        %v5096 = vpack.c.b16 %v4844, %v4843
        %v5097 = vpack.c.b16 %v4846, %v4845
        %v5098 = vpack.c.b16 %v4848, %v4847
        %v5099 = vpack.c.b16 %v4850, %v4849
        %v5100 = vpack.c.b16 %v4852, %v4851
        %v5101 = vpack.c.b16 %v4854, %v4853
        %v5102 = vpack.c.b16 %v4856, %v4855
        %v5103 = vpack.c.b16 %v4858, %v4857
        %v5104 = vpack.c.b16 %v4860, %v4859
        %v5105 = vpack.c.b16 %v4862, %v4861
        %v5106 = vpack.c.b16 %v4864, %v4863
        %v5107 = vpack.c.b16 %v4866, %v4865
        %v5108 = vpack.c.b16 %v4868, %v4867
        %v5109 = vpack.c.b16 %v4870, %v4869
        %v5110 = vpack.c.b16 %v4872, %v4871
        %v5111 = vpack.c.b16 %v4874, %v4873
        %v5112 = vpack.c.b16 %v4876, %v4875
        %v5113 = vpack.c.b16 %v4878, %v4877
        %v5114 = vpack.c.b16 %v4880, %v4879
        %v5115 = vpack.c.b16 %v4882, %v4881
        %v5116 = vpack.c.b16 %v4884, %v4883
        %v5117 = vpack.c.b16 %v4886, %v4885
        %v5118 = vpack.c.b16 %v4888, %v4887
        %v5119 = vpack.c.b16 %v4890, %v4889
        %v5120 = vpack.c.b16 %v4892, %v4891
        %v5121 = vpack.c.b16 %v4894, %v4893
        %v5122 = vpack.c.b16 %v4896, %v4895
        %v5123 = vpack.c.b16 %v4898, %v4897
        %v5124 = vpack.c.b16 %v4900, %v4899
        %v5125 = vpack.c.b16 %v4902, %v4901
        %v5126 = vpack.c.b16 %v4904, %v4903
        %v5127 = vpack.c.b16 %v4906, %v4905
        %v5128 = vpack.c.b16 %v4908, %v4907
        %v5129 = vpack.c.b16 %v4910, %v4909
        %v5130 = vpack.c.b16 %v4912, %v4911
        %v5131 = vpack.c.b16 %v4914, %v4913
        %v5132 = vpack.c.b16 %v4916, %v4915
        %v5133 = vpack.c.b16 %v4918, %v4917
        %v5134 = vpack.c.b16 %v4920, %v4919
        %v5135 = vpack.c.b16 %v4922, %v4921
        %v5136 = vpack.c.b16 %v4924, %v4923
        %v5137 = vpack.c.b16 %v4926, %v4925
        %v5138 = vpack.c.b16 %v4928, %v4927
        %v5139 = vpack.c.b16 %v4930, %v4929
        %v5140 = vpack.c.b16 %v4932, %v4931
        %v5141 = vpack.c.b16 %v4934, %v4933
        %v5142 = vpack.c.b16 %v4936, %v4935
        %v5143 = vpack.c.b16 %v4938, %v4937
        %v5144 = vpack.c.b16 %v4940, %v4939
        %v5145 = vpack.c.b16 %v4942, %v4941
        %v5146 = vpack.c.b16 %v4944, %v4943
        %v5147 = vpack.c.b16 %v4946, %v4945
        %v5148 = vpack.c.b16 %v4948, %v4947
        %v5149 = vpack.c.b16 %v4950, %v4949
        %v5150 = vpack.c.b16 %v4952, %v4951
        %v5151 = vpack.c.b16 %v4954, %v4953
        %v5152 = vpack.c.b16 %v4956, %v4955
        %v5153 = vpack.c.b16 %v4958, %v4957
        %v5154 = vpack.c.b16 %v4960, %v4959
        %v5155 = vpack.c.b16 %v4962, %v4961
        %v5156 = vpack.c.b16 %v4964, %v4963
        %v5157 = vpack.c.b16 %v4966, %v4965
        %v5158 = vpack.c.b16 %v4968, %v4967
        %v5159 = vpack.c.b16 %v4970, %v4969
        %v5160 = vpack.c.b16 %v4972, %v4971
        %v5161 = vpack.c.b16 %v4974, %v4973
        %v5162 = vpack.c.b16 %v4976, %v4975
        %v5163 = vpack.c.b16 %v4978, %v4977
        %v5164 = vpack.c.b16 %v4980, %v4979
        %v5165 = vpack.c.b16 %v4982, %v4981
        %v5166 = vpack.c.b16 %v4984, %v4983
        %v5167 = vpack.c.b16 %v4986, %v4985
        %v5168 = vpack.c.b16 %v4988, %v4987
        %v5169 = vpack.c.b16 %v4990, %v4989
        %v5170 = vpack.c.b16 %v4992, %v4991
        %v5171 = vpack.c.b16 %v4994, %v4993
        %v5172 = vpack.c.b16 %v4996, %v4995
        %v5173 = vpack.c.b16 %v4998, %v4997
        %v5174 = vpack.c.b16 %v5000, %v4999
        %v5175 = vpack.c.b16 %v5002, %v5001
        %v5176 = vpack.c.b16 %v5004, %v5003
        %v5177 = vpack.c.b16 %v5006, %v5005
        %v5178 = vpack.c.b16 %v5008, %v5007
        %v5179 = vpack.c.b16 %v5010, %v5009
        %v5180 = vpack.c.b16 %v5012, %v5011
        %v5181 = vpack.c.b16 %v5014, %v5013
        %v5182 = vpack.c.b16 %v5016, %v5015
        %v5183 = vpack.c.b16 %v5018, %v5017
        %v5184 = vpack.c.b16 %v5020, %v5019
        %v5185 = vpack.c.b16 %v5022, %v5021
        %v5186 = vpack.c.b16 %v5024, %v5023
        %v5187 = vpack.c.b16 %v5026, %v5025
        %v5188 = vpack.c.b16 %v5028, %v5027
        %v5189 = vpack.c.b16 %v5030, %v5029
        %v5190 = vpack.c.b16 %v5032, %v5031
        %v5191 = vpack.c.b16 %v5034, %v5033
        %v5192 = vpack.c.b16 %v5036, %v5035
        %v5193 = vpack.c.b16 %v5038, %v5037
        %v5194 = vpack.c.b16 %v5040, %v5039
        %v5195 = vpack.c.b16 %v5042, %v5041
        %v5196 = vpack.c.b16 %v5044, %v5043
        %5349 = vmatpush.bf16.msra.mxu0 %v5052
        %5350 = vmatpush.bf16.msra.mxu0 %v5051
        %5351 = vmatpush.bf16.msra.mxu0 %v5050
        %5352 = vmatpush.bf16.msra.mxu0 %v5049
        %5353 = vmatpush.bf16.msra.mxu0 %v5048
        %5354 = vmatpush.bf16.msra.mxu0 %v5047
        %5355 = vmatpush.bf16.msra.mxu0 %v5046
        %5356 = vmatpush.bf16.msra.mxu0 %v5045
        %5357 = vmatmul.bf16.gmra.mxu0 %v4114
        %v5358 = vpop.f32.mrf.mxu0
        %v5359 = vadd.f32 0.0, %v5358
        %v5360 = vpop.f32.mrf.mxu0
        %5361 = vdwg.mxu0
        %5362 = vmatpush.bf16.msra.mxu0 %v5060
        %5363 = vmatpush.bf16.msra.mxu0 %v5059
        %5364 = vmatpush.bf16.msra.mxu0 %v5058
        %5365 = vmatpush.bf16.msra.mxu0 %v5057
        %5366 = vmatpush.bf16.msra.mxu0 %v5056
        %5367 = vmatpush.bf16.msra.mxu0 %v5055
        %5368 = vmatpush.bf16.msra.mxu0 %v5054
        %5369 = vmatpush.bf16.msra.mxu0 %v5053
        %5370 = vmatmul.bf16.gmra.mxu0 %v4115
        %v5371 = vpop.f32.mrf.mxu0
        %v5372 = vadd.f32 %v5359, %v5371
        %v5373 = vpop.f32.mrf.mxu0
        %5374 = vdwg.mxu0
        %5375 = vmatpush.bf16.msra.mxu0 %v5068
        %5376 = vmatpush.bf16.msra.mxu0 %v5067
        %5377 = vmatpush.bf16.msra.mxu0 %v5066
        %5378 = vmatpush.bf16.msra.mxu0 %v5065
        %5379 = vmatpush.bf16.msra.mxu0 %v5064
        %5380 = vmatpush.bf16.msra.mxu0 %v5063
        %5381 = vmatpush.bf16.msra.mxu0 %v5062
        %5382 = vmatpush.bf16.msra.mxu0 %v5061
        %5383 = vmatmul.bf16.gmra.mxu0 %v4116
        %v5384 = vpop.f32.mrf.mxu0
        %v5385 = vadd.f32 %v5372, %v5384
        %v5386 = vpop.f32.mrf.mxu0
        %5387 = vdwg.mxu0
        %5388 = vmatpush.bf16.msra.mxu0 %v5076
        %5389 = vmatpush.bf16.msra.mxu0 %v5075
        %5390 = vmatpush.bf16.msra.mxu0 %v5074
        %5391 = vmatpush.bf16.msra.mxu0 %v5073
        %5392 = vmatpush.bf16.msra.mxu0 %v5072
        %5393 = vmatpush.bf16.msra.mxu0 %v5071
        %5394 = vmatpush.bf16.msra.mxu0 %v5070
        %5395 = vmatpush.bf16.msra.mxu0 %v5069
        %5396 = vmatmul.bf16.gmra.mxu0 %v4117
        %v5397 = vpop.f32.mrf.mxu0
        %v5398 = vadd.f32 %v5385, %v5397
        %v5399 = vpop.f32.mrf.mxu0
        %5400 = vdwg.mxu0
        %5401 = vmatpush.bf16.msra.mxu0 %v5084
        %5402 = vmatpush.bf16.msra.mxu0 %v5083
        %5403 = vmatpush.bf16.msra.mxu0 %v5082
        %5404 = vmatpush.bf16.msra.mxu0 %v5081
        %5405 = vmatpush.bf16.msra.mxu0 %v5080
        %5406 = vmatpush.bf16.msra.mxu0 %v5079
        %5407 = vmatpush.bf16.msra.mxu0 %v5078
        %5408 = vmatpush.bf16.msra.mxu0 %v5077
        %5409 = vmatmul.bf16.gmra.mxu0 %v4118
        %v5410 = vpop.f32.mrf.mxu0
        %v5411 = vadd.f32 %v5398, %v5410
        %v5412 = vpop.f32.mrf.mxu0
        %5413 = vdwg.mxu0
        %5414 = vmatpush.bf16.msra.mxu0 %v5092
        %5415 = vmatpush.bf16.msra.mxu0 %v5091
        %5416 = vmatpush.bf16.msra.mxu0 %v5090
        %5417 = vmatpush.bf16.msra.mxu0 %v5089
        %5418 = vmatpush.bf16.msra.mxu0 %v5088
        %5419 = vmatpush.bf16.msra.mxu0 %v5087
        %5420 = vmatpush.bf16.msra.mxu0 %v5086
        %5421 = vmatpush.bf16.msra.mxu0 %v5085
        %5422 = vmatmul.bf16.gmra.mxu0 %v4119
        %v5423 = vpop.f32.mrf.mxu0
        %v5424 = vadd.f32 %v5411, %v5423
        %v5425 = vpop.f32.mrf.mxu0
        %5426 = vdwg.mxu0
        %5427 = vmatpush.bf16.msra.mxu0 %v5100
        %5428 = vmatpush.bf16.msra.mxu0 %v5099
        %5429 = vmatpush.bf16.msra.mxu0 %v5098
        %5430 = vmatpush.bf16.msra.mxu0 %v5097
        %5431 = vmatpush.bf16.msra.mxu0 %v5096
        %5432 = vmatpush.bf16.msra.mxu0 %v5095
        %5433 = vmatpush.bf16.msra.mxu0 %v5094
        %5434 = vmatpush.bf16.msra.mxu0 %v5093
        %5435 = vmatmul.bf16.gmra.mxu0 %v4120
        %v5436 = vpop.f32.mrf.mxu0
        %v5437 = vadd.f32 %v5424, %v5436
        %v5438 = vpop.f32.mrf.mxu0
        %5439 = vdwg.mxu0
        %5440 = vmatpush.bf16.msra.mxu0 %v5108
        %5441 = vmatpush.bf16.msra.mxu0 %v5107
        %5442 = vmatpush.bf16.msra.mxu0 %v5106
        %5443 = vmatpush.bf16.msra.mxu0 %v5105
        %5444 = vmatpush.bf16.msra.mxu0 %v5104
        %5445 = vmatpush.bf16.msra.mxu0 %v5103
        %5446 = vmatpush.bf16.msra.mxu0 %v5102
        %5447 = vmatpush.bf16.msra.mxu0 %v5101
        %5448 = vmatmul.bf16.gmra.mxu0 %v4121
        %v5449 = vpop.f32.mrf.mxu0
        %v5450 = vadd.f32 %v5437, %v5449
        %v5451 = vpop.f32.mrf.mxu0
        %5452 = vdwg.mxu0
        %5453 = vmatpush.bf16.msra.mxu0 %v5116
        %5454 = vmatpush.bf16.msra.mxu0 %v5115
        %5455 = vmatpush.bf16.msra.mxu0 %v5114
        %5456 = vmatpush.bf16.msra.mxu0 %v5113
        %5457 = vmatpush.bf16.msra.mxu0 %v5112
        %5458 = vmatpush.bf16.msra.mxu0 %v5111
        %5459 = vmatpush.bf16.msra.mxu0 %v5110
        %5460 = vmatpush.bf16.msra.mxu0 %v5109
        %5461 = vmatmul.bf16.gmra.mxu0 %v4122
        %v5462 = vpop.f32.mrf.mxu0
        %v5463 = vadd.f32 %v5450, %v5462
        %v5464 = vpop.f32.mrf.mxu0
        %5465 = vdwg.mxu0
        %5466 = vmatpush.bf16.msra.mxu0 %v5124
        %5467 = vmatpush.bf16.msra.mxu0 %v5123
        %5468 = vmatpush.bf16.msra.mxu0 %v5122
        %5469 = vmatpush.bf16.msra.mxu0 %v5121
        %5470 = vmatpush.bf16.msra.mxu0 %v5120
        %5471 = vmatpush.bf16.msra.mxu0 %v5119
        %5472 = vmatpush.bf16.msra.mxu0 %v5118
        %5473 = vmatpush.bf16.msra.mxu0 %v5117
        %5474 = vmatmul.bf16.gmra.mxu0 %v4123
        %v5475 = vpop.f32.mrf.mxu0
        %v5476 = vadd.f32 %v5463, %v5475
        %v5477 = vpop.f32.mrf.mxu0
        %5478 = vdwg.mxu0
        %5479 = vmatpush.bf16.msra.mxu0 %v5132
        %5480 = vmatpush.bf16.msra.mxu0 %v5131
        %5481 = vmatpush.bf16.msra.mxu0 %v5130
        %5482 = vmatpush.bf16.msra.mxu0 %v5129
        %5483 = vmatpush.bf16.msra.mxu0 %v5128
        %5484 = vmatpush.bf16.msra.mxu0 %v5127
        %5485 = vmatpush.bf16.msra.mxu0 %v5126
        %5486 = vmatpush.bf16.msra.mxu0 %v5125
        %5487 = vmatmul.bf16.gmra.mxu0 %v4124
        %v5488 = vpop.f32.mrf.mxu0
        %v5489 = vadd.f32 %v5476, %v5488
        %v5490 = vpop.f32.mrf.mxu0
        %5491 = vdwg.mxu0
        %5492 = vmatpush.bf16.msra.mxu0 %v5140
        %5493 = vmatpush.bf16.msra.mxu0 %v5139
        %5494 = vmatpush.bf16.msra.mxu0 %v5138
        %5495 = vmatpush.bf16.msra.mxu0 %v5137
        %5496 = vmatpush.bf16.msra.mxu0 %v5136
        %5497 = vmatpush.bf16.msra.mxu0 %v5135
        %5498 = vmatpush.bf16.msra.mxu0 %v5134
        %5499 = vmatpush.bf16.msra.mxu0 %v5133
        %5500 = vmatmul.bf16.gmra.mxu0 %v4125
        %v5501 = vpop.f32.mrf.mxu0
        %v5502 = vadd.f32 %v5489, %v5501
        %v5503 = vpop.f32.mrf.mxu0
        %5504 = vdwg.mxu0
        %5505 = vmatpush.bf16.msra.mxu0 %v5148
        %5506 = vmatpush.bf16.msra.mxu0 %v5147
        %5507 = vmatpush.bf16.msra.mxu0 %v5146
        %5508 = vmatpush.bf16.msra.mxu0 %v5145
        %5509 = vmatpush.bf16.msra.mxu0 %v5144
        %5510 = vmatpush.bf16.msra.mxu0 %v5143
        %5511 = vmatpush.bf16.msra.mxu0 %v5142
        %5512 = vmatpush.bf16.msra.mxu0 %v5141
        %5513 = vmatmul.bf16.gmra.mxu0 %v4126
        %v5514 = vpop.f32.mrf.mxu0
        %v5515 = vadd.f32 %v5502, %v5514
        %v5516 = vpop.f32.mrf.mxu0
        %5517 = vdwg.mxu0
        %5518 = vmatpush.bf16.msra.mxu0 %v5156
        %5519 = vmatpush.bf16.msra.mxu0 %v5155
        %5520 = vmatpush.bf16.msra.mxu0 %v5154
        %5521 = vmatpush.bf16.msra.mxu0 %v5153
        %5522 = vmatpush.bf16.msra.mxu0 %v5152
        %5523 = vmatpush.bf16.msra.mxu0 %v5151
        %5524 = vmatpush.bf16.msra.mxu0 %v5150
        %5525 = vmatpush.bf16.msra.mxu0 %v5149
        %5526 = vmatmul.bf16.gmra.mxu0 %v4127
        %v5527 = vpop.f32.mrf.mxu0
        %v5528 = vadd.f32 %v5515, %v5527
        %v5529 = vpop.f32.mrf.mxu0
        %5530 = vdwg.mxu0
        %5531 = vmatpush.bf16.msra.mxu0 %v5164
        %5532 = vmatpush.bf16.msra.mxu0 %v5163
        %5533 = vmatpush.bf16.msra.mxu0 %v5162
        %5534 = vmatpush.bf16.msra.mxu0 %v5161
        %5535 = vmatpush.bf16.msra.mxu0 %v5160
        %5536 = vmatpush.bf16.msra.mxu0 %v5159
        %5537 = vmatpush.bf16.msra.mxu0 %v5158
        %5538 = vmatpush.bf16.msra.mxu0 %v5157
        %5539 = vmatmul.bf16.gmra.mxu0 %v4128
        %v5540 = vpop.f32.mrf.mxu0
        %v5541 = vadd.f32 %v5528, %v5540
        %v5542 = vpop.f32.mrf.mxu0
        %5543 = vdwg.mxu0
        %5544 = vmatpush.bf16.msra.mxu0 %v5172
        %5545 = vmatpush.bf16.msra.mxu0 %v5171
        %5546 = vmatpush.bf16.msra.mxu0 %v5170
        %5547 = vmatpush.bf16.msra.mxu0 %v5169
        %5548 = vmatpush.bf16.msra.mxu0 %v5168
        %5549 = vmatpush.bf16.msra.mxu0 %v5167
        %5550 = vmatpush.bf16.msra.mxu0 %v5166
        %5551 = vmatpush.bf16.msra.mxu0 %v5165
        %5552 = vmatmul.bf16.gmra.mxu0 %v4129
        %v5553 = vpop.f32.mrf.mxu0
        %v5554 = vadd.f32 %v5541, %v5553
        %v5555 = vpop.f32.mrf.mxu0
        %5556 = vdwg.mxu0
        %5557 = vmatpush.bf16.msra.mxu0 %v5180
        %5558 = vmatpush.bf16.msra.mxu0 %v5179
        %5559 = vmatpush.bf16.msra.mxu0 %v5178
        %5560 = vmatpush.bf16.msra.mxu0 %v5177
        %5561 = vmatpush.bf16.msra.mxu0 %v5176
        %5562 = vmatpush.bf16.msra.mxu0 %v5175
        %5563 = vmatpush.bf16.msra.mxu0 %v5174
        %5564 = vmatpush.bf16.msra.mxu0 %v5173
        %5565 = vmatmul.bf16.gmra.mxu0 %v4130
        %v5566 = vpop.f32.mrf.mxu0
        %v5567 = vadd.f32 %v5554, %v5566
        %v5568 = vpop.f32.mrf.mxu0
        %5569 = vdwg.mxu0
        %5570 = vmatpush.bf16.msra.mxu0 %v5188
        %5571 = vmatpush.bf16.msra.mxu0 %v5187
        %5572 = vmatpush.bf16.msra.mxu0 %v5186
        %5573 = vmatpush.bf16.msra.mxu0 %v5185
        %5574 = vmatpush.bf16.msra.mxu0 %v5184
        %5575 = vmatpush.bf16.msra.mxu0 %v5183
        %5576 = vmatpush.bf16.msra.mxu0 %v5182
        %5577 = vmatpush.bf16.msra.mxu0 %v5181
        %5578 = vmatmul.bf16.gmra.mxu0 %v4131
        %v5579 = vpop.f32.mrf.mxu0
        %v5580 = vadd.f32 %v5567, %v5579
        %v5581 = vpop.f32.mrf.mxu0
        %5582 = vdwg.mxu0
        %5583 = vmatpush.bf16.msra.mxu0 %v5196
        %5584 = vmatpush.bf16.msra.mxu0 %v5195
        %5585 = vmatpush.bf16.msra.mxu0 %v5194
        %5586 = vmatpush.bf16.msra.mxu0 %v5193
        %5587 = vmatpush.bf16.msra.mxu0 %v5192
        %5588 = vmatpush.bf16.msra.mxu0 %v5191
        %5589 = vmatpush.bf16.msra.mxu0 %v5190
        %5590 = vmatpush.bf16.msra.mxu0 %v5189
        %5591 = vmatmul.bf16.gmra.mxu0 %v4132
        %v5592 = vpop.f32.mrf.mxu0
        %v5593 = vadd.f32 %v5580, %v5592
        %v5594 = vpop.f32.mrf.mxu0
        %5595 = vdwg.mxu0
        %5596 = vst [vmem:[%s220] sm:$0xff] %v5593
        %s5597 = sand.u32 %s97, 1
        %s5598 = scalar_lea.sflag [#allocation7], %s5597
        %s5599 = sand.u32 %s97, 1
        %s5600 = smul.addr %s5599, 8
        %s5601 = scalar_lea.vmem [#allocation11], %s5600
        // Predicated region
        $region45: #{tpu_custom_call.1} parent=31 // pred_check
          %p5602 = pneg %p107
        $region46: #{tpu_custom_call.1} parent=31 // pred_check_branch
          %5604 = sbr.rel (%p5602) target = $region48
        $region47: #{tpu_custom_call.1} parent=31 // pred_region
          %5606 = vsyncadd %s5598, 0
          %s5607 = smul.addr %s21, 8
          %s5608 = scalar_lea.hbm %s3, %s5607
          %s5610 = sshll.u32 %s5601, 4
          %s5611 = int_to_ptr.vmem [resolvable:$true] %s5610
          %s5612 = sshll.u32 %s5608, 4
          %s5613 = int_to_ptr.hbm [resolvable:$true] %s5612
          %5615 = dma.vmem_to_hbm [thread:$0]  %s5611, 128, %s5613, %s5598
        $region48: #{tpu_custom_call.1} parent=31 // pred_fallthru
          _
      $region32: #{tpu_custom_call.1} parent=5 // pred_fallthru
        _
      %p5616 = scmp.le.s32.totalorder 2, %s16
      // Predicated region
      $region49: #{tpu_custom_call.1} parent=5 // pred_check
        %p5617 = pneg %p5616
      $region50: #{tpu_custom_call.1} parent=5 // pred_check_branch
        %5619 = sbr.rel (%p5617) target = $region52
      $region51: #{tpu_custom_call.1} parent=5 // pred_region
        %s5620 = ssub.s32 %s16, 2
        // Predicated region
        $region53: #{tpu_custom_call.1} parent=51 // pred_check
          %p5621 = pneg %p113
        $region54: #{tpu_custom_call.1} parent=51 // pred_check_branch
          %5623 = sbr.rel (%p5621) target = $region56
        $region55: #{tpu_custom_call.1} parent=51 // pred_region
          %s5624 = sand.u32 %s98, 1
          %s5625 = scalar_lea.sflag [#allocation7], %s5624
          %s5626 = sand.u32 %s98, 1
          %s5627 = smul.addr %s5626, 8
          %s5628 = scalar_lea.vmem [#allocation11], %s5627
          %5630 = dma.done %s5625, 128
        $region56: #{tpu_custom_call.1} parent=51 // pred_fallthru
          _
      $region52: #{tpu_custom_call.1} parent=5 // pred_fallthru
        _
    $region6: #{tpu_custom_call.1} parent=1 // loop_footer
      %s20 = sadd.s32 1, %s16
    $region7: #{tpu_custom_call.1} parent=1 // loop_footer_branch
      %15 = sbr.rel target = $region3
    $region8: #{tpu_custom_call.1} parent=1 // loop_exit
      _
    %5631 = vsyncpa [#allocation6], 1
    %s5632 = scalar_lea.sflag [#allocation6], 1
    %5633 = vsyncpa %s5632, 1
    %5634 = vsyncpa [#allocation9], 1
    %5635 = vsyncpa [#allocation7], 1
    %s5636 = scalar_lea.sflag [#allocation7], 1
    %5637 = vsyncpa %s5636, 1

</llo_original>
